<compile_context>
chip_gen: v5e
topology: v5e:2x2
jax: 0.10.0
libtpu: 0.0.40
codegen_flags: <defaults>
</compile_context>

<pallas_src>
import functools

import jax
import jax.numpy as jnp
from jax import lax
from jax.experimental import pallas as pl
from jax.experimental.pallas import tpu as pltpu

COMMITMENT_COST = 0.25
_LANES = 128


def _round_up(a, b):
    return (a + b - 1) // b * b


def _vq_kernel(x_ref, ebt_ref, eb_ref, e2h_ref, code_ref,
               q_ref, idx_ref, sse_ref, *,
               pack, dim, num_codes, tile_rows, n_valid, needs_mask):
    """One tile of `tile_rows` logical rows, packed `pack` rows per vreg row.

    x_ref    : (tp, 128) f32   -- logical row pack*r + j lives in lanes [j*D, (j+1)*D)
    ebt_ref  : (128, pack*K)   -- block-interleaved codebook (transposed), resident
    eb_ref   : (pack*K, 128)   -- block-interleaved codebook, resident
    e2h_ref  : (1, pack*K)     -- 0.5*|e_k|^2 per score column
    code_ref : (1, pack*K)     -- code id per score column (= column // pack)
    q_ref    : (tp, 128)       -- quantized rows, packed like x (lane-dense store)
    idx_ref  : (tp, pack)      -- argmin code id per logical row
    sse_ref  : (8, 128)        -- per-tile partial sums of (q - x)^2
    """
    i = pl.program_id(0)
    kp = pack * num_codes                       # score width on the lane axis

    xp = x_ref[...].astype(jnp.float32)         # (tp, 128)

    # score[r, c] = 0.5*|e_{c//pack}|^2 - x_{pack*r + c%pack} . e_{c//pack}
    # (same argmin as the full L2 distance; |x|^2 is constant per row).
    xe = jnp.dot(xp, ebt_ref[...], preferred_element_type=jnp.float32,
                 precision=lax.Precision.HIGHEST)           # (tp, pack*K) MXU
    score = e2h_ref[...] - xe

    # Per-logical-row min over the K codes.  Logical row (c % pack) owns the
    # stride-`pack` residue class of lanes, so rotating by multiples of `pack`
    # never mixes rows; a log-tree of roll+min reduces each class in place.
    m = score
    shift = pack
    while shift < kp:
        m = jnp.minimum(m, pltpu.roll(m, shift=shift, axis=1))
        shift *= 2

    # First-index argmin (torch.argmin tie-break): smallest code id among ties.
    code = code_ref[...]
    cand = jnp.where(score == m, code, jnp.int32(num_codes))
    idxb = cand
    shift = pack
    while shift < kp:
        idxb = jnp.minimum(idxb, pltpu.roll(idxb, shift=shift, axis=1))
        shift *= 2

    # Exactly one hot per residue class -> codebook lookup on the MXU.
    onehot = (code == idxb).astype(jnp.float32)             # (tp, pack*K)
    q = jnp.dot(onehot, eb_ref[...], preferred_element_type=jnp.float32,
                precision=lax.Precision.HIGHEST)            # (tp, 128)

    q_ref[...] = q.astype(q_ref.dtype)
    idx_ref[...] = idxb[:, 0:pack]      # column j of row r = idx(pack*r + j)

    # Partial SSE: fold sublanes down to one (8, 128) block with pure vreg
    # adds; the scalar reduction over all tiles happens in the JAX epilogue.
    diff = q - xp
    sq = diff * diff

    def partial8(a):
        return jnp.sum(a.reshape(-1, 8, _LANES), axis=0)

    if not needs_mask:
        sse_ref[...] = partial8(sq)
    else:
        last = pl.num_programs(0) - 1

        @pl.when(i < last)
        def _():
            sse_ref[...] = partial8(sq)

        @pl.when(i == last)
        def _():
            # Only the last tile can contain padded rows: mask them here.
            r = lax.broadcasted_iota(jnp.int32, (sq.shape[0], 1), 0)
            j = lax.broadcasted_iota(jnp.int32, (1, _LANES), 1) // dim
            g_row = i * tile_rows + r * pack + j
            sse_ref[...] = partial8(jnp.where(g_row < n_valid, sq, 0.0))


def vector_quantizer_forward(x, embeddings, commitment_cost=COMMITMENT_COST,
                             tile_rows=8192):
    """Forward pass of the PyTorch VectorQuantizer (same forward values).

    Returns (quantized, loss, perplexity, encoding_indices).
    """
    orig_shape = x.shape
    orig_dtype = x.dtype
    k, d = embeddings.shape
    assert _LANES % d == 0, "embedding_dim must divide 128 for the packed kernel"
    # TODO(synk): add an unpacked fallback for embedding_dim not dividing 128.
    pack = _LANES // d                     # logical rows per 128-lane vreg row

    flat = x.reshape(-1, d).astype(jnp.float32)
    n = flat.shape[0]

    # Tile granularity: `pack` rows per packed row, 8 packed rows per sublane
    # tile -> logical-row tiles must be multiples of 8 * pack.
    unit = 8 * pack
    assert tile_rows % unit == 0, "tile_rows must be a multiple of 8*pack"
    tile = min(tile_rows, _round_up(n, unit))
    n_pad = _round_up(n, tile)
    grid_n = n_pad // tile
    tp = tile // pack                      # packed rows per tile

    flat_p = flat if n_pad == n else jnp.pad(flat, ((0, n_pad - n), (0, 0)))
    xp = flat_p.reshape(n_pad // pack, _LANES)       # contiguous reshape: free

    e = embeddings.astype(jnp.float32)               # (K, D)
    # Block-interleaved codebooks: score column c <-> (code k = c // pack,
    # packed row slot j = c % pack).  Built once in the wrapper (tiny, resident
    # in VMEM), already transposed so there is no in-kernel transpose.
    eye_p = jnp.eye(pack, dtype=jnp.float32)
    # e_blk_t[j*D + dd, kk*pack + j2] = e[kk, dd] * delta(j, j2)
    e_blk_t = (eye_p[:, None, None, :] * e.T[None, :, :, None]
               ).reshape(pack * d, k * pack)                     # (128, pack*K)
    e_blk = e_blk_t.T                                            # (pack*K, 128)
    e2_half = jnp.repeat(0.5 * jnp.sum(e * e, axis=1), pack)[None, :]   # (1, pack*K)
    code_id = (jnp.arange(k * pack, dtype=jnp.int32) // pack)[None, :]  # (1, pack*K)

    kernel = functools.partial(
        _vq_kernel, pack=pack, dim=d, num_codes=k, tile_rows=tile,
        n_valid=n, needs_mask=(n_pad != n))

    q_pad, idx_pad, sse_parts = pl.pallas_call(
        kernel,
        out_shape=(
            jax.ShapeDtypeStruct((n_pad // pack, _LANES), jnp.float32),  # q packed
            jax.ShapeDtypeStruct((n_pad // pack, pack), jnp.int32),      # indices
            jax.ShapeDtypeStruct((grid_n * 8, _LANES), jnp.float32),     # SSE parts
        ),
        grid_spec=pltpu.PrefetchScalarGridSpec(
            num_scalar_prefetch=0,
            grid=(grid_n,),
            in_specs=[
                pl.BlockSpec((tp, _LANES), lambda i: (i, 0)),          # x packed
                pl.BlockSpec((pack * d, k * pack), lambda i: (0, 0)),  # e_blk_t
                pl.BlockSpec((k * pack, pack * d), lambda i: (0, 0)),  # e_blk
                pl.BlockSpec((1, k * pack), lambda i: (0, 0)),         # 0.5*|e|^2
                pl.BlockSpec((1, k * pack), lambda i: (0, 0)),         # code ids
            ],
            out_specs=[
                pl.BlockSpec((tp, _LANES), lambda i: (i, 0)),
                pl.BlockSpec((tp, pack), lambda i: (i, 0)),
                pl.BlockSpec((8, _LANES), lambda i: (i, 0)),
            ],
        ),
        compiler_params=pltpu.CompilerParams(
            dimension_semantics=("parallel",),   # disjoint row tiles -> 2 TCs on v7x
            vmem_limit_bytes=48 * 1024 * 1024),
    )(xp, e_blk_t, e_blk, e2_half, code_id)

    # --- scalar glue (forward values identical to the PyTorch module) ---
    sse = jnp.sum(sse_parts)
    mse = sse / jnp.float32(n * d)
    # e_latent_loss == q_latent_loss in forward value; loss = (1 + beta) * mse
    loss = (1.0 + commitment_cost) * mse

    indices = idx_pad.reshape(-1)[:n].reshape(n, 1)

    # torch: avg_probs = mean(bincount(idx) / numel) == 1 / (max(idx) + 1)
    # perplexity = exp(-sum(avg_probs * log(avg_probs + 1e-10)))  (scalar form,
    # matching this reference module exactly — it is not the usual per-code
    # histogram perplexity).
    bincount_len = (jnp.max(indices) + 1).astype(jnp.float32)
    avg_probs = 1.0 / bincount_len
    perplexity = jnp.exp(-(avg_probs * jnp.log(avg_probs + 1e-10)))

    # Straight-through estimator: forward value is just `quantized`.
    # TODO(synk): backward of x + (quantized - x).detach() not implemented here.
    quantized = (q_pad.reshape(n_pad, d)[:n]
                 .reshape(orig_shape).astype(orig_dtype))
    return quantized, loss, perplexity, indices


if __name__ == "__main__":
    key = jax.random.PRNGKey(0)
    k_x, k_e = jax.random.split(key)

    num_embeddings = 64
    embedding_dim = 32

    # x: (batch=8, features=1024); flattening to (-1, D) gives N=256 rows.
    x = jax.random.normal(k_x, (8, 1024), dtype=jnp.float32)

    # nn.Embedding weight initialized uniform(-1/K, 1/K), deterministic.
    embeddings = jax.random.uniform(
        k_e, (num_embeddings, embedding_dim),
        minval=-1.0 / num_embeddings, maxval=1.0 / num_embeddings,
        dtype=jnp.float32)

    quantized, loss, perplexity, indices = vector_quantizer_forward(
        x, embeddings, COMMITMENT_COST)
    jax.block_until_ready((quantized, loss, perplexity, indices))

    # shape/dtype sanity
    assert quantized.shape == x.shape and quantized.dtype == x.dtype
    assert indices.shape == (x.size // embedding_dim, 1)
    assert loss.shape == () and perplexity.shape == ()
    assert int(jnp.min(indices)) >= 0 and int(jnp.max(indices)) < num_embeddings

    # numerical check against a pure-JAX reference of the torch forward
    flat = x.reshape(-1, embedding_dim)
    d2 = (jnp.sum(flat ** 2, axis=1, keepdims=True)
          + jnp.sum(embeddings ** 2, axis=1)[None, :]
          - 2.0 * flat @ embeddings.T)
    ref_idx = jnp.argmin(d2, axis=1)
    ref_q = embeddings[ref_idx].reshape(x.shape)
    ref_loss = (1.0 + COMMITMENT_COST) * jnp.mean((ref_q - x) ** 2)
    assert jnp.allclose(quantized, ref_q, rtol=1e-3, atol=1e-4)
    assert jnp.allclose(loss, ref_loss, rtol=1e-3, atol=1e-5)

    print("KERNEL_OK")
</pallas_src>

<mosaic_0001>
module attributes {stable_mosaic.version = 11 : i64} {
  func.func @_vq_kernel(%arg0: i32, %arg1: memref<64x128xf32, #tpu.memory_space<vmem>>, %arg2: memref<128x256xf32, #tpu.memory_space<vmem>>, %arg3: memref<256x128xf32, #tpu.memory_space<vmem>>, %arg4: memref<1x256xf32, #tpu.memory_space<vmem>>, %arg5: memref<1x256xi32, #tpu.memory_space<vmem>>, %arg6: memref<64x128xf32, #tpu.memory_space<vmem>>, %arg7: memref<64x4xi32, #tpu.memory_space<vmem>>, %arg8: memref<8x128xf32, #tpu.memory_space<vmem>>) attributes {dimension_semantics = [#tpu.dimension_semantics<parallel>], iteration_bounds = array<i64: 1>, scalar_prefetch = 0 : i64, scratch_operands = 0 : i64, tpu.core_type = #tpu.core_type<tc>, window_params = [{transform_indices = @transform_0, window_bounds = array<i64: 64, 128>}, {pipeline_mode = #tpu.pipeline_mode<synchronous>, transform_indices = @transform_1, window_bounds = array<i64: 128, 256>}, {pipeline_mode = #tpu.pipeline_mode<synchronous>, transform_indices = @transform_2, window_bounds = array<i64: 256, 128>}, {pipeline_mode = #tpu.pipeline_mode<synchronous>, transform_indices = @transform_3, window_bounds = array<i64: 1, 256>}, {pipeline_mode = #tpu.pipeline_mode<synchronous>, transform_indices = @transform_4, window_bounds = array<i64: 1, 256>}, {transform_indices = @transform_5, window_bounds = array<i64: 64, 128>}, {transform_indices = @transform_6, window_bounds = array<i64: 64, 4>}, {transform_indices = @transform_7, window_bounds = array<i64: 8, 128>}]} {
    %c0 = arith.constant 0 : index
    %c0_0 = arith.constant 0 : index
    %0 = vector.load %arg1[%c0, %c0_0] : memref<64x128xf32, #tpu.memory_space<vmem>>, vector<64x128xf32>
    %c0_1 = arith.constant 0 : index
    %c0_2 = arith.constant 0 : index
    %1 = vector.load %arg2[%c0_1, %c0_2] : memref<128x256xf32, #tpu.memory_space<vmem>>, vector<128x256xf32>
    %cst = arith.constant dense<0.000000e+00> : vector<64x256xf32>
    %2 = tpu.matmul %0, %1, %cst {dimension_numbers = #tpu.dot_dimension_numbers<[1], [0], [0], [1], [0, 0, 1, 1], [], []>, precision = #tpu.contract_precision<fp32>} : vector<64x128xf32>, vector<128x256xf32>, vector<64x256xf32> -> vector<64x256xf32>
    %c0_3 = arith.constant 0 : index
    %c0_4 = arith.constant 0 : index
    %3 = vector.load %arg4[%c0_3, %c0_4] : memref<1x256xf32, #tpu.memory_space<vmem>>, vector<1x256xf32>
    %4 = vector.broadcast %3 : vector<1x256xf32> to vector<64x256xf32>
    %5 = arith.subf %4, %2 : vector<64x256xf32>
    %c4_i32 = arith.constant 4 : i32
    %6 = tpu.dynamic_rotate %5 by %c4_i32 dim 1 : vector<64x256xf32>, i32 -> vector<64x256xf32>
    %7 = arith.minimumf %5, %6 : vector<64x256xf32>
    %c8_i32 = arith.constant 8 : i32
    %8 = tpu.dynamic_rotate %7 by %c8_i32 dim 1 : vector<64x256xf32>, i32 -> vector<64x256xf32>
    %9 = arith.minimumf %7, %8 : vector<64x256xf32>
    %c16_i32 = arith.constant 16 : i32
    %10 = tpu.dynamic_rotate %9 by %c16_i32 dim 1 : vector<64x256xf32>, i32 -> vector<64x256xf32>
    %11 = arith.minimumf %9, %10 : vector<64x256xf32>
    %c32_i32 = arith.constant 32 : i32
    %12 = tpu.dynamic_rotate %11 by %c32_i32 dim 1 : vector<64x256xf32>, i32 -> vector<64x256xf32>
    %13 = arith.minimumf %11, %12 : vector<64x256xf32>
    %c64_i32 = arith.constant 64 : i32
    %14 = tpu.dynamic_rotate %13 by %c64_i32 dim 1 : vector<64x256xf32>, i32 -> vector<64x256xf32>
    %15 = arith.minimumf %13, %14 : vector<64x256xf32>
    %c128_i32 = arith.constant 128 : i32
    %16 = tpu.dynamic_rotate %15 by %c128_i32 dim 1 : vector<64x256xf32>, i32 -> vector<64x256xf32>
    %17 = arith.minimumf %15, %16 : vector<64x256xf32>
    %c0_5 = arith.constant 0 : index
    %c0_6 = arith.constant 0 : index
    %18 = vector.load %arg5[%c0_5, %c0_6] : memref<1x256xi32, #tpu.memory_space<vmem>>, vector<1x256xi32>
    %19 = arith.cmpf oeq, %5, %17 : vector<64x256xf32>
    %c64_i32_7 = arith.constant 64 : i32
    %20 = vector.shape_cast %18 : vector<1x256xi32> to vector<1x256xi32>
    %21 = vector.broadcast %20 : vector<1x256xi32> to vector<64x256xi32>
    %22 = vector.broadcast %c64_i32_7 : i32 to vector<64x256xi32>
    %23 = arith.select %19, %21, %22 : vector<64x256xi1>, vector<64x256xi32>
    %c4_i32_8 = arith.constant 4 : i32
    %24 = tpu.dynamic_rotate %23 by %c4_i32_8 dim 1 : vector<64x256xi32>, i32 -> vector<64x256xi32>
    %25 = arith.minsi %23, %24 : vector<64x256xi32>
    %c8_i32_9 = arith.constant 8 : i32
    %26 = tpu.dynamic_rotate %25 by %c8_i32_9 dim 1 : vector<64x256xi32>, i32 -> vector<64x256xi32>
    %27 = arith.minsi %25, %26 : vector<64x256xi32>
    %c16_i32_10 = arith.constant 16 : i32
    %28 = tpu.dynamic_rotate %27 by %c16_i32_10 dim 1 : vector<64x256xi32>, i32 -> vector<64x256xi32>
    %29 = arith.minsi %27, %28 : vector<64x256xi32>
    %c32_i32_11 = arith.constant 32 : i32
    %30 = tpu.dynamic_rotate %29 by %c32_i32_11 dim 1 : vector<64x256xi32>, i32 -> vector<64x256xi32>
    %31 = arith.minsi %29, %30 : vector<64x256xi32>
    %c64_i32_12 = arith.constant 64 : i32
    %32 = tpu.dynamic_rotate %31 by %c64_i32_12 dim 1 : vector<64x256xi32>, i32 -> vector<64x256xi32>
    %33 = arith.minsi %31, %32 : vector<64x256xi32>
    %c128_i32_13 = arith.constant 128 : i32
    %34 = tpu.dynamic_rotate %33 by %c128_i32_13 dim 1 : vector<64x256xi32>, i32 -> vector<64x256xi32>
    %35 = arith.minsi %33, %34 : vector<64x256xi32>
    %36 = vector.broadcast %18 : vector<1x256xi32> to vector<64x256xi32>
    %37 = arith.cmpi eq, %36, %35 : vector<64x256xi32>
    %38 = arith.extui %37 : vector<64x256xi1> to vector<64x256xi32>
    %39 = arith.sitofp %38 : vector<64x256xi32> to vector<64x256xf32>
    %c0_14 = arith.constant 0 : index
    %c0_15 = arith.constant 0 : index
    %40 = vector.load %arg3[%c0_14, %c0_15] : memref<256x128xf32, #tpu.memory_space<vmem>>, vector<256x128xf32>
    %cst_16 = arith.constant dense<0.000000e+00> : vector<64x128xf32>
    %41 = tpu.matmul %39, %40, %cst_16 {dimension_numbers = #tpu.dot_dimension_numbers<[1], [0], [0], [1], [0, 0, 1, 1], [], []>, precision = #tpu.contract_precision<fp32>} : vector<64x256xf32>, vector<256x128xf32>, vector<64x128xf32> -> vector<64x128xf32>
    %c0_17 = arith.constant 0 : index
    %c0_18 = arith.constant 0 : index
    %42 = vector.load %arg6[%c0_17, %c0_18] : memref<64x128xf32, #tpu.memory_space<vmem>>, vector<64x128xf32>
    tpu.vector_store %arg6[%c0_17, %c0_18], %41 {strides = array<i32>} : memref<64x128xf32, #tpu.memory_space<vmem>>, vector<64x128xf32>,
    %43 = vector.extract_strided_slice %35 {offsets = [0, 0], sizes = [64, 4], strides = [1, 1]} : vector<64x256xi32> to vector<64x4xi32>
    %c0_19 = arith.constant 0 : index
    %c0_20 = arith.constant 0 : index
    %44 = vector.load %arg7[%c0_19, %c0_20] : memref<64x4xi32, #tpu.memory_space<vmem>>, vector<64x4xi32>
    tpu.vector_store %arg7[%c0_19, %c0_20], %43 {strides = array<i32>} : memref<64x4xi32, #tpu.memory_space<vmem>>, vector<64x4xi32>,
    %45 = arith.subf %41, %0 : vector<64x128xf32>
    %46 = arith.mulf %45, %45 : vector<64x128xf32>
    %47 = vector.shape_cast %46 : vector<64x128xf32> to vector<8x8x128xf32>
    %cst_21 = arith.constant dense<0.000000e+00> : vector<8x128xf32>
    %48 = vector.multi_reduction <add>, %47, %cst_21 [0] : vector<8x8x128xf32> to vector<8x128xf32>
    %c0_22 = arith.constant 0 : index
    %c0_23 = arith.constant 0 : index
    %49 = vector.load %arg8[%c0_22, %c0_23] : memref<8x128xf32, #tpu.memory_space<vmem>>, vector<8x128xf32>
    tpu.vector_store %arg8[%c0_22, %c0_23], %48 {strides = array<i32>} : memref<8x128xf32, #tpu.memory_space<vmem>>, vector<8x128xf32>,
    return
  }
  func.func @transform_0(%arg0: i32) -> (i32, i32) {
    %c0_i32 = arith.constant 0 : i32
    %c0_i32_0 = arith.constant 0 : i32
    return %arg0, %c0_i32 : i32, i32
  }
  func.func @transform_1(%arg0: i32) -> (i32, i32) {
    %c0_i32 = arith.constant 0 : i32
    %c0_i32_0 = arith.constant 0 : i32
    %c0_i32_1 = arith.constant 0 : i32
    return %c0_i32, %c0_i32_0 : i32, i32
  }
  func.func @transform_2(%arg0: i32) -> (i32, i32) {
    %c0_i32 = arith.constant 0 : i32
    %c0_i32_0 = arith.constant 0 : i32
    %c0_i32_1 = arith.constant 0 : i32
    return %c0_i32, %c0_i32_0 : i32, i32
  }
  func.func @transform_3(%arg0: i32) -> (i32, i32) {
    %c0_i32 = arith.constant 0 : i32
    %c0_i32_0 = arith.constant 0 : i32
    %c0_i32_1 = arith.constant 0 : i32
    return %c0_i32, %c0_i32_0 : i32, i32
  }
  func.func @transform_4(%arg0: i32) -> (i32, i32) {
    %c0_i32 = arith.constant 0 : i32
    %c0_i32_0 = arith.constant 0 : i32
    %c0_i32_1 = arith.constant 0 : i32
    return %c0_i32, %c0_i32_0 : i32, i32
  }
  func.func @transform_5(%arg0: i32) -> (i32, i32) {
    %c0_i32 = arith.constant 0 : i32
    %c0_i32_0 = arith.constant 0 : i32
    return %arg0, %c0_i32 : i32, i32
  }
  func.func @transform_6(%arg0: i32) -> (i32, i32) {
    %c0_i32 = arith.constant 0 : i32
    %c0_i32_0 = arith.constant 0 : i32
    return %arg0, %c0_i32 : i32, i32
  }
  func.func @transform_7(%arg0: i32) -> (i32, i32) {
    %c0_i32 = arith.constant 0 : i32
    %c0_i32_0 = arith.constant 0 : i32
    return %arg0, %c0_i32 : i32, i32
  }
}

</mosaic_0001>

<llo_original>
// kernel: tpu_custom_call.1
$region0: #{tpu_custom_call.1}
  #allocation0 [shape = 'u32[]', space=smem, size = 0x4, offset = 0x4, fixed_abs, tag = 'smem constant byte address 0x4 - core index']
  #allocation1 [shape = 'u32[72,128]{1,0:T(1,128)}', space=vmem, size = 0x9000, scoped, tag = 'internal scratch']
  %s0 = inlined_call_operand.hbm [shape: f32[64,128], index: 0, kind: input, shape index: {}]
  %s1 = inlined_call_operand.hbm [shape: f32[128,256], index: 1, kind: input, shape index: {}]
  %s2 = inlined_call_operand.hbm [shape: f32[256,128], index: 2, kind: input, shape index: {}]
  %s3 = inlined_call_operand.vmem [shape: f32[1,256], index: 3, kind: input, shape index: {}]
  %s4 = inlined_call_operand.hbm [shape: s32[1,256], index: 4, kind: input, shape index: {}]
  %s5 = inlined_call_operand.hbm [shape: f32[64,128], index: 5, kind: output, shape index: {0}]
  %s6 = inlined_call_operand.vmem [shape: s32[64,4], index: 6, kind: output, shape index: {1}]
  %s7 = inlined_call_operand.hbm [shape: f32[8,128], index: 7, kind: output, shape index: {2}]
  %8 = xla_tuple %s5, %s6, %s7
  %s9 = sld [smem:[#allocation0]]
  $region62: #{tpu_custom_call.1} parent=0
    _
  %s11 = ssub.s32 1, %s9
  %s12 = scalar_select 0, %s11, %s9
  $region1: #{tpu_custom_call.1} parent=0
    #allocation2 [shape = 'u8[32768]{0}', space=vmem, size = 0x8000, scoped, tag = 'input window, operand 0, single buffered']
    #allocation3 [shape = 's32[1]{0}', space=sflag, size = 0x4, scoped, tag = 'scoped memory for tpu_custom_call.1']
    #allocation4 [shape = 's32[1]{0}', space=sflag, size = 0x4, scoped, tag = 'scoped memory for tpu_custom_call.1']
    #allocation5 [shape = 'u8[131072]{0}', space=vmem, size = 0x20000, scoped, tag = 'input window, operand 1, single buffered']
    #allocation6 [shape = 's32[1]{0}', space=sflag, size = 0x4, scoped, tag = 'scoped memory for tpu_custom_call.1']
    #allocation7 [shape = 'u8[131072]{0}', space=vmem, size = 0x20000, scoped, tag = 'input window, operand 2, single buffered']
    #allocation8 [shape = 'u8[1024]{0}', space=vmem, size = 0x400, scoped, tag = 'input window, operand 4, single buffered']
    #allocation9 [shape = 's32[1]{0}', space=sflag, size = 0x4, scoped, tag = 'scoped memory for tpu_custom_call.1']
    #allocation10 [shape = 'u8[32768]{0}', space=vmem, size = 0x8000, scoped, tag = 'output window, operand 0, single buffered']
    #allocation11 [shape = 'u8[4096]{0}', space=vmem, size = 0x1000, scoped, tag = 'output window, operand 2, single buffered']
    #allocation12 [shape = 's32[1]{0}', space=sflag, size = 0x4, scoped, tag = 'scoped memory for tpu_custom_call.1']
    %13 = vsyncpa [#allocation3], 0
    %14 = vsyncpa [#allocation6], 0
    %15 = vsyncpa [#allocation9], 0
    %16 = vsyncpa [#allocation4], 0
    %17 = vsyncpa [#allocation12], 0
    // Predicated region
    $region2: #{tpu_custom_call.1} parent=1 // pred_check
      _
    $region3: #{tpu_custom_call.1} parent=1 // pred_check_branch
      %19 = sbr.rel (0) target = $region5
    $region4: #{tpu_custom_call.1} parent=1 // pred_region
      %21 = vsyncadd [#allocation3], 0
      %s22 = sshll.u32 %s0, 4
      %s23 = int_to_ptr.hbm [resolvable:$true] %s22
      %s24 = sshll.u32 [#allocation2], 4
      %s25 = int_to_ptr.vmem [resolvable:$true] %s24
      %30 = dma.hbm_to_vmem [thread:$0]  %s23, 1024, %s25, [#allocation3], 128, 128, 8
    $region5: #{tpu_custom_call.1} parent=1 // pred_fallthru
      _
    // Predicated region
    $region6: #{tpu_custom_call.1} parent=1 // pred_check
      _
    $region7: #{tpu_custom_call.1} parent=1 // pred_check_branch
      %32 = sbr.rel (0) target = $region9
    $region8: #{tpu_custom_call.1} parent=1 // pred_region
      %34 = vsyncadd [#allocation6], 0
      %s35 = sshll.u32 %s1, 4
      %s36 = int_to_ptr.hbm [resolvable:$true] %s35
      %s37 = sshll.u32 [#allocation5], 4
      %s38 = int_to_ptr.vmem [resolvable:$true] %s37
      %43 = dma.hbm_to_vmem [thread:$0]  %s36, 4096, %s38, [#allocation6], 256, 256, 16
    $region9: #{tpu_custom_call.1} parent=1 // pred_fallthru
      _
    // Predicated region
    $region10: #{tpu_custom_call.1} parent=1 // pred_check
      _
    $region11: #{tpu_custom_call.1} parent=1 // pred_check_branch
      %45 = sbr.rel (0) target = $region13
    $region12: #{tpu_custom_call.1} parent=1 // pred_region
      %47 = vsyncadd [#allocation6], 0
      %s48 = sshll.u32 %s2, 4
      %s49 = int_to_ptr.hbm [resolvable:$true] %s48
      %s50 = sshll.u32 [#allocation7], 4
      %s51 = int_to_ptr.vmem [resolvable:$true] %s50
      %56 = dma.hbm_to_vmem [thread:$0]  %s49, 4096, %s51, [#allocation6], 128, 128, 8
    $region13: #{tpu_custom_call.1} parent=1 // pred_fallthru
      _
    // Predicated region
    $region14: #{tpu_custom_call.1} parent=1 // pred_check
      _
    $region15: #{tpu_custom_call.1} parent=1 // pred_check_branch
      %58 = sbr.rel (0) target = $region17
    $region16: #{tpu_custom_call.1} parent=1 // pred_region
      _
    $region17: #{tpu_custom_call.1} parent=1 // pred_fallthru
      _
    // Predicated region
    $region18: #{tpu_custom_call.1} parent=1 // pred_check
      _
    $region19: #{tpu_custom_call.1} parent=1 // pred_check_branch
      %60 = sbr.rel (0) target = $region21
    $region20: #{tpu_custom_call.1} parent=1 // pred_region
      %62 = vsyncadd [#allocation9], 0
      %s64 = sshll.u32 %s4, 4
      %s65 = int_to_ptr.hbm [resolvable:$true] %s64
      %s66 = sshll.u32 [#allocation8], 4
      %s67 = int_to_ptr.vmem [resolvable:$true] %s66
      %69 = dma.hbm_to_vmem [thread:$0]  %s65, 32, %s67, [#allocation9]
    $region21: #{tpu_custom_call.1} parent=1 // pred_fallthru
      _
    // Predicated region
    $region22: #{tpu_custom_call.1} parent=1 // pred_check
      _
    $region23: #{tpu_custom_call.1} parent=1 // pred_check_branch
      %71 = sbr.rel (0) target = $region25
    $region24: #{tpu_custom_call.1} parent=1 // pred_region
      %73 = dma.done [#allocation3], 1024
    $region25: #{tpu_custom_call.1} parent=1 // pred_fallthru
      _
    // Predicated region
    $region26: #{tpu_custom_call.1} parent=1 // pred_check
      _
    $region27: #{tpu_custom_call.1} parent=1 // pred_check_branch
      %75 = sbr.rel (0) target = $region29
    $region28: #{tpu_custom_call.1} parent=1 // pred_region
      %77 = dma.done [#allocation6], 4096
    $region29: #{tpu_custom_call.1} parent=1 // pred_fallthru
      _
    // Predicated region
    $region30: #{tpu_custom_call.1} parent=1 // pred_check
      _
    $region31: #{tpu_custom_call.1} parent=1 // pred_check_branch
      %79 = sbr.rel (0) target = $region33
    $region32: #{tpu_custom_call.1} parent=1 // pred_region
      %81 = dma.done [#allocation6], 4096
    $region33: #{tpu_custom_call.1} parent=1 // pred_fallthru
      _
    // Predicated region
    $region34: #{tpu_custom_call.1} parent=1 // pred_check
      _
    $region35: #{tpu_custom_call.1} parent=1 // pred_check_branch
      %83 = sbr.rel (0) target = $region37
    $region36: #{tpu_custom_call.1} parent=1 // pred_region
      %85 = dma.done [#allocation9], 32
    $region37: #{tpu_custom_call.1} parent=1 // pred_fallthru
      _
    %v86 = vld [vmem:[#allocation2] sm:$0xff]
    %v87 = vld [vmem:[#allocation2 + $0x8] sm:$0xff]
    %v88 = vld [vmem:[#allocation2 + $0x10] sm:$0xff]
    %v89 = vld [vmem:[#allocation2 + $0x18] sm:$0xff]
    %v90 = vld [vmem:[#allocation2 + $0x20] sm:$0xff]
    %v91 = vld [vmem:[#allocation2 + $0x28] sm:$0xff]
    %v92 = vld [vmem:[#allocation2 + $0x30] sm:$0xff]
    %v93 = vld [vmem:[#allocation2 + $0x38] sm:$0xff]
    %v94 = vld [vmem:[#allocation5] sm:$0xff]
    %v95 = vld [vmem:[#allocation5 + $0x8] sm:$0xff]
    %v96 = vld [vmem:[#allocation5 + $0x10] sm:$0xff]
    %v97 = vld [vmem:[#allocation5 + $0x18] sm:$0xff]
    %v98 = vld [vmem:[#allocation5 + $0x20] sm:$0xff]
    %v99 = vld [vmem:[#allocation5 + $0x28] sm:$0xff]
    %v100 = vld [vmem:[#allocation5 + $0x30] sm:$0xff]
    %v101 = vld [vmem:[#allocation5 + $0x38] sm:$0xff]
    %v102 = vld [vmem:[#allocation5 + $0x40] sm:$0xff]
    %v103 = vld [vmem:[#allocation5 + $0x48] sm:$0xff]
    %v104 = vld [vmem:[#allocation5 + $0x50] sm:$0xff]
    %v105 = vld [vmem:[#allocation5 + $0x58] sm:$0xff]
    %v106 = vld [vmem:[#allocation5 + $0x60] sm:$0xff]
    %v107 = vld [vmem:[#allocation5 + $0x68] sm:$0xff]
    %v108 = vld [vmem:[#allocation5 + $0x70] sm:$0xff]
    %v109 = vld [vmem:[#allocation5 + $0x78] sm:$0xff]
    %v110 = vld [vmem:[#allocation5 + $0x80] sm:$0xff]
    %v111 = vld [vmem:[#allocation5 + $0x88] sm:$0xff]
    %v112 = vld [vmem:[#allocation5 + $0x90] sm:$0xff]
    %v113 = vld [vmem:[#allocation5 + $0x98] sm:$0xff]
    %v114 = vld [vmem:[#allocation5 + $0xa0] sm:$0xff]
    %v115 = vld [vmem:[#allocation5 + $0xa8] sm:$0xff]
    %v116 = vld [vmem:[#allocation5 + $0xb0] sm:$0xff]
    %v117 = vld [vmem:[#allocation5 + $0xb8] sm:$0xff]
    %v118 = vld [vmem:[#allocation5 + $0xc0] sm:$0xff]
    %v119 = vld [vmem:[#allocation5 + $0xc8] sm:$0xff]
    %v120 = vld [vmem:[#allocation5 + $0xd0] sm:$0xff]
    %v121 = vld [vmem:[#allocation5 + $0xd8] sm:$0xff]
    %v122 = vld [vmem:[#allocation5 + $0xe0] sm:$0xff]
    %v123 = vld [vmem:[#allocation5 + $0xe8] sm:$0xff]
    %v124 = vld [vmem:[#allocation5 + $0xf0] sm:$0xff]
    %v125 = vld [vmem:[#allocation5 + $0xf8] sm:$0xff]
    %v126 = vand.u32 %v124, 4294901760
    %127 = vmatpush.msra.mxu0 %v126
    %v128 = vand.u32 %v122, 4294901760
    %129 = vmatpush.msra.mxu0 %v128
    %v130 = vand.u32 %v120, 4294901760
    %131 = vmatpush.msra.mxu0 %v130
    %v132 = vand.u32 %v118, 4294901760
    %133 = vmatpush.msra.mxu0 %v132
    %v134 = vand.u32 %v116, 4294901760
    %135 = vmatpush.msra.mxu0 %v134
    %v136 = vand.u32 %v114, 4294901760
    %137 = vmatpush.msra.mxu0 %v136
    %v138 = vand.u32 %v112, 4294901760
    %139 = vmatpush.msra.mxu0 %v138
    %v140 = vand.u32 %v110, 4294901760
    %141 = vmatpush.msra.mxu0 %v140
    %v142 = vand.u32 %v108, 4294901760
    %143 = vmatpush.msra.mxu0 %v142
    %v144 = vand.u32 %v106, 4294901760
    %145 = vmatpush.msra.mxu0 %v144
    %v146 = vand.u32 %v104, 4294901760
    %147 = vmatpush.msra.mxu0 %v146
    %v148 = vand.u32 %v102, 4294901760
    %149 = vmatpush.msra.mxu0 %v148
    %v150 = vand.u32 %v100, 4294901760
    %151 = vmatpush.msra.mxu0 %v150
    %v152 = vand.u32 %v98, 4294901760
    %153 = vmatpush.msra.mxu0 %v152
    %v154 = vand.u32 %v96, 4294901760
    %155 = vmatpush.msra.mxu0 %v154
    %v156 = vand.u32 %v94, 4294901760
    %157 = vmatpush.msra.mxu0 %v156
    %v158 = vand.u32 %v86, 4294901760
    %v159 = vsub.f32 %v86, %v158
    %v160 = vand.u32 %v159, 4294901760
    %v161 = vsub.f32 %v159, %v160
    %v162 = vand.u32 %v161, 4294901760
    %163 = vmatmul.f32.gmra.mxu0 %v162
    %v164 = vpop.f32.mrf.mxu0
    %v165 = vadd.f32 0.0, %v164
    %v166 = vand.u32 %v87, 4294901760
    %v167 = vsub.f32 %v87, %v166
    %v168 = vand.u32 %v167, 4294901760
    %v169 = vsub.f32 %v167, %v168
    %v170 = vand.u32 %v169, 4294901760
    %171 = vmatmul.f32.gmra.mxu0 %v170
    %v172 = vpop.f32.mrf.mxu0
    %v173 = vadd.f32 0.0, %v172
    %v174 = vand.u32 %v88, 4294901760
    %v175 = vsub.f32 %v88, %v174
    %v176 = vand.u32 %v175, 4294901760
    %v177 = vsub.f32 %v175, %v176
    %v178 = vand.u32 %v177, 4294901760
    %179 = vmatmul.f32.gmra.mxu0 %v178
    %v180 = vpop.f32.mrf.mxu0
    %v181 = vadd.f32 0.0, %v180
    %v182 = vand.u32 %v89, 4294901760
    %v183 = vsub.f32 %v89, %v182
    %v184 = vand.u32 %v183, 4294901760
    %v185 = vsub.f32 %v183, %v184
    %v186 = vand.u32 %v185, 4294901760
    %187 = vmatmul.f32.gmra.mxu0 %v186
    %v188 = vpop.f32.mrf.mxu0
    %v189 = vadd.f32 0.0, %v188
    %v190 = vand.u32 %v90, 4294901760
    %v191 = vsub.f32 %v90, %v190
    %v192 = vand.u32 %v191, 4294901760
    %v193 = vsub.f32 %v191, %v192
    %v194 = vand.u32 %v193, 4294901760
    %195 = vmatmul.f32.gmra.mxu0 %v194
    %v196 = vpop.f32.mrf.mxu0
    %v197 = vadd.f32 0.0, %v196
    %v198 = vand.u32 %v91, 4294901760
    %v199 = vsub.f32 %v91, %v198
    %v200 = vand.u32 %v199, 4294901760
    %v201 = vsub.f32 %v199, %v200
    %v202 = vand.u32 %v201, 4294901760
    %203 = vmatmul.f32.gmra.mxu0 %v202
    %v204 = vpop.f32.mrf.mxu0
    %v205 = vadd.f32 0.0, %v204
    %v206 = vand.u32 %v92, 4294901760
    %v207 = vsub.f32 %v92, %v206
    %v208 = vand.u32 %v207, 4294901760
    %v209 = vsub.f32 %v207, %v208
    %v210 = vand.u32 %v209, 4294901760
    %211 = vmatmul.f32.gmra.mxu0 %v210
    %v212 = vpop.f32.mrf.mxu0
    %v213 = vadd.f32 0.0, %v212
    %v214 = vand.u32 %v93, 4294901760
    %v215 = vsub.f32 %v93, %v214
    %v216 = vand.u32 %v215, 4294901760
    %v217 = vsub.f32 %v215, %v216
    %v218 = vand.u32 %v217, 4294901760
    %219 = vmatmul.f32.gmra.mxu0 %v218
    %v220 = vpop.f32.mrf.mxu0
    %v221 = vadd.f32 0.0, %v220
    %222 = vdwg.mxu0
    %v223 = vand.u32 %v124, 4294901760
    %v224 = vsub.f32 %v124, %v223
    %v225 = vand.u32 %v224, 4294901760
    %v226 = vsub.f32 %v224, %v225
    %v227 = vand.u32 %v226, 4294901760
    %228 = vmatpush.msra.mxu0 %v227
    %v229 = vand.u32 %v122, 4294901760
    %v230 = vsub.f32 %v122, %v229
    %v231 = vand.u32 %v230, 4294901760
    %v232 = vsub.f32 %v230, %v231
    %v233 = vand.u32 %v232, 4294901760
    %234 = vmatpush.msra.mxu0 %v233
    %v235 = vand.u32 %v120, 4294901760
    %v236 = vsub.f32 %v120, %v235
    %v237 = vand.u32 %v236, 4294901760
    %v238 = vsub.f32 %v236, %v237
    %v239 = vand.u32 %v238, 4294901760
    %240 = vmatpush.msra.mxu0 %v239
    %v241 = vand.u32 %v118, 4294901760
    %v242 = vsub.f32 %v118, %v241
    %v243 = vand.u32 %v242, 4294901760
    %v244 = vsub.f32 %v242, %v243
    %v245 = vand.u32 %v244, 4294901760
    %246 = vmatpush.msra.mxu0 %v245
    %v247 = vand.u32 %v116, 4294901760
    %v248 = vsub.f32 %v116, %v247
    %v249 = vand.u32 %v248, 4294901760
    %v250 = vsub.f32 %v248, %v249
    %v251 = vand.u32 %v250, 4294901760
    %252 = vmatpush.msra.mxu0 %v251
    %v253 = vand.u32 %v114, 4294901760
    %v254 = vsub.f32 %v114, %v253
    %v255 = vand.u32 %v254, 4294901760
    %v256 = vsub.f32 %v254, %v255
    %v257 = vand.u32 %v256, 4294901760
    %258 = vmatpush.msra.mxu0 %v257
    %v259 = vand.u32 %v112, 4294901760
    %v260 = vsub.f32 %v112, %v259
    %v261 = vand.u32 %v260, 4294901760
    %v262 = vsub.f32 %v260, %v261
    %v263 = vand.u32 %v262, 4294901760
    %264 = vmatpush.msra.mxu0 %v263
    %v265 = vand.u32 %v110, 4294901760
    %v266 = vsub.f32 %v110, %v265
    %v267 = vand.u32 %v266, 4294901760
    %v268 = vsub.f32 %v266, %v267
    %v269 = vand.u32 %v268, 4294901760
    %270 = vmatpush.msra.mxu0 %v269
    %v271 = vand.u32 %v108, 4294901760
    %v272 = vsub.f32 %v108, %v271
    %v273 = vand.u32 %v272, 4294901760
    %v274 = vsub.f32 %v272, %v273
    %v275 = vand.u32 %v274, 4294901760
    %276 = vmatpush.msra.mxu0 %v275
    %v277 = vand.u32 %v106, 4294901760
    %v278 = vsub.f32 %v106, %v277
    %v279 = vand.u32 %v278, 4294901760
    %v280 = vsub.f32 %v278, %v279
    %v281 = vand.u32 %v280, 4294901760
    %282 = vmatpush.msra.mxu0 %v281
    %v283 = vand.u32 %v104, 4294901760
    %v284 = vsub.f32 %v104, %v283
    %v285 = vand.u32 %v284, 4294901760
    %v286 = vsub.f32 %v284, %v285
    %v287 = vand.u32 %v286, 4294901760
    %288 = vmatpush.msra.mxu0 %v287
    %v289 = vand.u32 %v102, 4294901760
    %v290 = vsub.f32 %v102, %v289
    %v291 = vand.u32 %v290, 4294901760
    %v292 = vsub.f32 %v290, %v291
    %v293 = vand.u32 %v292, 4294901760
    %294 = vmatpush.msra.mxu0 %v293
    %v295 = vand.u32 %v100, 4294901760
    %v296 = vsub.f32 %v100, %v295
    %v297 = vand.u32 %v296, 4294901760
    %v298 = vsub.f32 %v296, %v297
    %v299 = vand.u32 %v298, 4294901760
    %300 = vmatpush.msra.mxu0 %v299
    %v301 = vand.u32 %v98, 4294901760
    %v302 = vsub.f32 %v98, %v301
    %v303 = vand.u32 %v302, 4294901760
    %v304 = vsub.f32 %v302, %v303
    %v305 = vand.u32 %v304, 4294901760
    %306 = vmatpush.msra.mxu0 %v305
    %v307 = vand.u32 %v96, 4294901760
    %v308 = vsub.f32 %v96, %v307
    %v309 = vand.u32 %v308, 4294901760
    %v310 = vsub.f32 %v308, %v309
    %v311 = vand.u32 %v310, 4294901760
    %312 = vmatpush.msra.mxu0 %v311
    %v313 = vand.u32 %v94, 4294901760
    %v314 = vsub.f32 %v94, %v313
    %v315 = vand.u32 %v314, 4294901760
    %v316 = vsub.f32 %v314, %v315
    %v317 = vand.u32 %v316, 4294901760
    %318 = vmatpush.msra.mxu0 %v317
    %v319 = vand.u32 %v86, 4294901760
    %320 = vmatmul.f32.gmra.mxu0 %v319
    %v321 = vpop.f32.mrf.mxu0
    %v322 = vadd.f32 %v165, %v321
    %v323 = vand.u32 %v87, 4294901760
    %324 = vmatmul.f32.gmra.mxu0 %v323
    %v325 = vpop.f32.mrf.mxu0
    %v326 = vadd.f32 %v173, %v325
    %v327 = vand.u32 %v88, 4294901760
    %328 = vmatmul.f32.gmra.mxu0 %v327
    %v329 = vpop.f32.mrf.mxu0
    %v330 = vadd.f32 %v181, %v329
    %v331 = vand.u32 %v89, 4294901760
    %332 = vmatmul.f32.gmra.mxu0 %v331
    %v333 = vpop.f32.mrf.mxu0
    %v334 = vadd.f32 %v189, %v333
    %v335 = vand.u32 %v90, 4294901760
    %336 = vmatmul.f32.gmra.mxu0 %v335
    %v337 = vpop.f32.mrf.mxu0
    %v338 = vadd.f32 %v197, %v337
    %v339 = vand.u32 %v91, 4294901760
    %340 = vmatmul.f32.gmra.mxu0 %v339
    %v341 = vpop.f32.mrf.mxu0
    %v342 = vadd.f32 %v205, %v341
    %v343 = vand.u32 %v92, 4294901760
    %344 = vmatmul.f32.gmra.mxu0 %v343
    %v345 = vpop.f32.mrf.mxu0
    %v346 = vadd.f32 %v213, %v345
    %v347 = vand.u32 %v93, 4294901760
    %348 = vmatmul.f32.gmra.mxu0 %v347
    %v349 = vpop.f32.mrf.mxu0
    %v350 = vadd.f32 %v221, %v349
    %351 = vdwg.mxu0
    %v352 = vand.u32 %v124, 4294901760
    %v353 = vsub.f32 %v124, %v352
    %354 = vmatpush.msra.mxu0 %v353
    %v355 = vand.u32 %v122, 4294901760
    %v356 = vsub.f32 %v122, %v355
    %357 = vmatpush.msra.mxu0 %v356
    %v358 = vand.u32 %v120, 4294901760
    %v359 = vsub.f32 %v120, %v358
    %360 = vmatpush.msra.mxu0 %v359
    %v361 = vand.u32 %v118, 4294901760
    %v362 = vsub.f32 %v118, %v361
    %363 = vmatpush.msra.mxu0 %v362
    %v364 = vand.u32 %v116, 4294901760
    %v365 = vsub.f32 %v116, %v364
    %366 = vmatpush.msra.mxu0 %v365
    %v367 = vand.u32 %v114, 4294901760
    %v368 = vsub.f32 %v114, %v367
    %369 = vmatpush.msra.mxu0 %v368
    %v370 = vand.u32 %v112, 4294901760
    %v371 = vsub.f32 %v112, %v370
    %372 = vmatpush.msra.mxu0 %v371
    %v373 = vand.u32 %v110, 4294901760
    %v374 = vsub.f32 %v110, %v373
    %375 = vmatpush.msra.mxu0 %v374
    %v376 = vand.u32 %v108, 4294901760
    %v377 = vsub.f32 %v108, %v376
    %378 = vmatpush.msra.mxu0 %v377
    %v379 = vand.u32 %v106, 4294901760
    %v380 = vsub.f32 %v106, %v379
    %381 = vmatpush.msra.mxu0 %v380
    %v382 = vand.u32 %v104, 4294901760
    %v383 = vsub.f32 %v104, %v382
    %384 = vmatpush.msra.mxu0 %v383
    %v385 = vand.u32 %v102, 4294901760
    %v386 = vsub.f32 %v102, %v385
    %387 = vmatpush.msra.mxu0 %v386
    %v388 = vand.u32 %v100, 4294901760
    %v389 = vsub.f32 %v100, %v388
    %390 = vmatpush.msra.mxu0 %v389
    %v391 = vand.u32 %v98, 4294901760
    %v392 = vsub.f32 %v98, %v391
    %393 = vmatpush.msra.mxu0 %v392
    %v394 = vand.u32 %v96, 4294901760
    %v395 = vsub.f32 %v96, %v394
    %396 = vmatpush.msra.mxu0 %v395
    %v397 = vand.u32 %v94, 4294901760
    %v398 = vsub.f32 %v94, %v397
    %399 = vmatpush.msra.mxu0 %v398
    %v400 = vand.u32 %v86, 4294901760
    %v401 = vsub.f32 %v86, %v400
    %402 = vmatmul.f32.gmra.mxu0 %v401
    %v403 = vpop.f32.mrf.mxu0
    %v404 = vadd.f32 %v322, %v403
    %v405 = vand.u32 %v87, 4294901760
    %v406 = vsub.f32 %v87, %v405
    %407 = vmatmul.f32.gmra.mxu0 %v406
    %v408 = vpop.f32.mrf.mxu0
    %v409 = vadd.f32 %v326, %v408
    %v410 = vand.u32 %v88, 4294901760
    %v411 = vsub.f32 %v88, %v410
    %412 = vmatmul.f32.gmra.mxu0 %v411
    %v413 = vpop.f32.mrf.mxu0
    %v414 = vadd.f32 %v330, %v413
    %v415 = vand.u32 %v89, 4294901760
    %v416 = vsub.f32 %v89, %v415
    %417 = vmatmul.f32.gmra.mxu0 %v416
    %v418 = vpop.f32.mrf.mxu0
    %v419 = vadd.f32 %v334, %v418
    %v420 = vand.u32 %v90, 4294901760
    %v421 = vsub.f32 %v90, %v420
    %422 = vmatmul.f32.gmra.mxu0 %v421
    %v423 = vpop.f32.mrf.mxu0
    %v424 = vadd.f32 %v338, %v423
    %v425 = vand.u32 %v91, 4294901760
    %v426 = vsub.f32 %v91, %v425
    %427 = vmatmul.f32.gmra.mxu0 %v426
    %v428 = vpop.f32.mrf.mxu0
    %v429 = vadd.f32 %v342, %v428
    %v430 = vand.u32 %v92, 4294901760
    %v431 = vsub.f32 %v92, %v430
    %432 = vmatmul.f32.gmra.mxu0 %v431
    %v433 = vpop.f32.mrf.mxu0
    %v434 = vadd.f32 %v346, %v433
    %v435 = vand.u32 %v93, 4294901760
    %v436 = vsub.f32 %v93, %v435
    %437 = vmatmul.f32.gmra.mxu0 %v436
    %v438 = vpop.f32.mrf.mxu0
    %v439 = vadd.f32 %v350, %v438
    %440 = vdwg.mxu0
    %v441 = vand.u32 %v124, 4294901760
    %442 = vmatpush.msra.mxu0 %v441
    %v443 = vand.u32 %v122, 4294901760
    %444 = vmatpush.msra.mxu0 %v443
    %v445 = vand.u32 %v120, 4294901760
    %446 = vmatpush.msra.mxu0 %v445
    %v447 = vand.u32 %v118, 4294901760
    %448 = vmatpush.msra.mxu0 %v447
    %v449 = vand.u32 %v116, 4294901760
    %450 = vmatpush.msra.mxu0 %v449
    %v451 = vand.u32 %v114, 4294901760
    %452 = vmatpush.msra.mxu0 %v451
    %v453 = vand.u32 %v112, 4294901760
    %454 = vmatpush.msra.mxu0 %v453
    %v455 = vand.u32 %v110, 4294901760
    %456 = vmatpush.msra.mxu0 %v455
    %v457 = vand.u32 %v108, 4294901760
    %458 = vmatpush.msra.mxu0 %v457
    %v459 = vand.u32 %v106, 4294901760
    %460 = vmatpush.msra.mxu0 %v459
    %v461 = vand.u32 %v104, 4294901760
    %462 = vmatpush.msra.mxu0 %v461
    %v463 = vand.u32 %v102, 4294901760
    %464 = vmatpush.msra.mxu0 %v463
    %v465 = vand.u32 %v100, 4294901760
    %466 = vmatpush.msra.mxu0 %v465
    %v467 = vand.u32 %v98, 4294901760
    %468 = vmatpush.msra.mxu0 %v467
    %v469 = vand.u32 %v96, 4294901760
    %470 = vmatpush.msra.mxu0 %v469
    %v471 = vand.u32 %v94, 4294901760
    %472 = vmatpush.msra.mxu0 %v471
    %v473 = vand.u32 %v86, 4294901760
    %v474 = vsub.f32 %v86, %v473
    %v475 = vand.u32 %v474, 4294901760
    %476 = vmatmul.f32.gmra.mxu0 %v475
    %v477 = vpop.f32.mrf.mxu0
    %v478 = vadd.f32 %v404, %v477
    %v479 = vand.u32 %v87, 4294901760
    %v480 = vsub.f32 %v87, %v479
    %v481 = vand.u32 %v480, 4294901760
    %482 = vmatmul.f32.gmra.mxu0 %v481
    %v483 = vpop.f32.mrf.mxu0
    %v484 = vadd.f32 %v409, %v483
    %v485 = vand.u32 %v88, 4294901760
    %v486 = vsub.f32 %v88, %v485
    %v487 = vand.u32 %v486, 4294901760
    %488 = vmatmul.f32.gmra.mxu0 %v487
    %v489 = vpop.f32.mrf.mxu0
    %v490 = vadd.f32 %v414, %v489
    %v491 = vand.u32 %v89, 4294901760
    %v492 = vsub.f32 %v89, %v491
    %v493 = vand.u32 %v492, 4294901760
    %494 = vmatmul.f32.gmra.mxu0 %v493
    %v495 = vpop.f32.mrf.mxu0
    %v496 = vadd.f32 %v419, %v495
    %v497 = vand.u32 %v90, 4294901760
    %v498 = vsub.f32 %v90, %v497
    %v499 = vand.u32 %v498, 4294901760
    %500 = vmatmul.f32.gmra.mxu0 %v499
    %v501 = vpop.f32.mrf.mxu0
    %v502 = vadd.f32 %v424, %v501
    %v503 = vand.u32 %v91, 4294901760
    %v504 = vsub.f32 %v91, %v503
    %v505 = vand.u32 %v504, 4294901760
    %506 = vmatmul.f32.gmra.mxu0 %v505
    %v507 = vpop.f32.mrf.mxu0
    %v508 = vadd.f32 %v429, %v507
    %v509 = vand.u32 %v92, 4294901760
    %v510 = vsub.f32 %v92, %v509
    %v511 = vand.u32 %v510, 4294901760
    %512 = vmatmul.f32.gmra.mxu0 %v511
    %v513 = vpop.f32.mrf.mxu0
    %v514 = vadd.f32 %v434, %v513
    %v515 = vand.u32 %v93, 4294901760
    %v516 = vsub.f32 %v93, %v515
    %v517 = vand.u32 %v516, 4294901760
    %518 = vmatmul.f32.gmra.mxu0 %v517
    %v519 = vpop.f32.mrf.mxu0
    %v520 = vadd.f32 %v439, %v519
    %521 = vdwg.mxu0
    %v522 = vand.u32 %v124, 4294901760
    %v523 = vsub.f32 %v124, %v522
    %v524 = vand.u32 %v523, 4294901760
    %525 = vmatpush.msra.mxu0 %v524
    %v526 = vand.u32 %v122, 4294901760
    %v527 = vsub.f32 %v122, %v526
    %v528 = vand.u32 %v527, 4294901760
    %529 = vmatpush.msra.mxu0 %v528
    %v530 = vand.u32 %v120, 4294901760
    %v531 = vsub.f32 %v120, %v530
    %v532 = vand.u32 %v531, 4294901760
    %533 = vmatpush.msra.mxu0 %v532
    %v534 = vand.u32 %v118, 4294901760
    %v535 = vsub.f32 %v118, %v534
    %v536 = vand.u32 %v535, 4294901760
    %537 = vmatpush.msra.mxu0 %v536
    %v538 = vand.u32 %v116, 4294901760
    %v539 = vsub.f32 %v116, %v538
    %v540 = vand.u32 %v539, 4294901760
    %541 = vmatpush.msra.mxu0 %v540
    %v542 = vand.u32 %v114, 4294901760
    %v543 = vsub.f32 %v114, %v542
    %v544 = vand.u32 %v543, 4294901760
    %545 = vmatpush.msra.mxu0 %v544
    %v546 = vand.u32 %v112, 4294901760
    %v547 = vsub.f32 %v112, %v546
    %v548 = vand.u32 %v547, 4294901760
    %549 = vmatpush.msra.mxu0 %v548
    %v550 = vand.u32 %v110, 4294901760
    %v551 = vsub.f32 %v110, %v550
    %v552 = vand.u32 %v551, 4294901760
    %553 = vmatpush.msra.mxu0 %v552
    %v554 = vand.u32 %v108, 4294901760
    %v555 = vsub.f32 %v108, %v554
    %v556 = vand.u32 %v555, 4294901760
    %557 = vmatpush.msra.mxu0 %v556
    %v558 = vand.u32 %v106, 4294901760
    %v559 = vsub.f32 %v106, %v558
    %v560 = vand.u32 %v559, 4294901760
    %561 = vmatpush.msra.mxu0 %v560
    %v562 = vand.u32 %v104, 4294901760
    %v563 = vsub.f32 %v104, %v562
    %v564 = vand.u32 %v563, 4294901760
    %565 = vmatpush.msra.mxu0 %v564
    %v566 = vand.u32 %v102, 4294901760
    %v567 = vsub.f32 %v102, %v566
    %v568 = vand.u32 %v567, 4294901760
    %569 = vmatpush.msra.mxu0 %v568
    %v570 = vand.u32 %v100, 4294901760
    %v571 = vsub.f32 %v100, %v570
    %v572 = vand.u32 %v571, 4294901760
    %573 = vmatpush.msra.mxu0 %v572
    %v574 = vand.u32 %v98, 4294901760
    %v575 = vsub.f32 %v98, %v574
    %v576 = vand.u32 %v575, 4294901760
    %577 = vmatpush.msra.mxu0 %v576
    %v578 = vand.u32 %v96, 4294901760
    %v579 = vsub.f32 %v96, %v578
    %v580 = vand.u32 %v579, 4294901760
    %581 = vmatpush.msra.mxu0 %v580
    %v582 = vand.u32 %v94, 4294901760
    %v583 = vsub.f32 %v94, %v582
    %v584 = vand.u32 %v583, 4294901760
    %585 = vmatpush.msra.mxu0 %v584
    %v586 = vand.u32 %v86, 4294901760
    %587 = vmatmul.f32.gmra.mxu0 %v586
    %v588 = vpop.f32.mrf.mxu0
    %v589 = vadd.f32 %v478, %v588
    %v590 = vand.u32 %v87, 4294901760
    %591 = vmatmul.f32.gmra.mxu0 %v590
    %v592 = vpop.f32.mrf.mxu0
    %v593 = vadd.f32 %v484, %v592
    %v594 = vand.u32 %v88, 4294901760
    %595 = vmatmul.f32.gmra.mxu0 %v594
    %v596 = vpop.f32.mrf.mxu0
    %v597 = vadd.f32 %v490, %v596
    %v598 = vand.u32 %v89, 4294901760
    %599 = vmatmul.f32.gmra.mxu0 %v598
    %v600 = vpop.f32.mrf.mxu0
    %v601 = vadd.f32 %v496, %v600
    %v602 = vand.u32 %v90, 4294901760
    %603 = vmatmul.f32.gmra.mxu0 %v602
    %v604 = vpop.f32.mrf.mxu0
    %v605 = vadd.f32 %v502, %v604
    %v606 = vand.u32 %v91, 4294901760
    %607 = vmatmul.f32.gmra.mxu0 %v606
    %v608 = vpop.f32.mrf.mxu0
    %v609 = vadd.f32 %v508, %v608
    %v610 = vand.u32 %v92, 4294901760
    %611 = vmatmul.f32.gmra.mxu0 %v610
    %v612 = vpop.f32.mrf.mxu0
    %v613 = vadd.f32 %v514, %v612
    %v614 = vand.u32 %v93, 4294901760
    %615 = vmatmul.f32.gmra.mxu0 %v614
    %v616 = vpop.f32.mrf.mxu0
    %v617 = vadd.f32 %v520, %v616
    %618 = vdwg.mxu0
    %v619 = vand.u32 %v124, 4294901760
    %620 = vmatpush.msra.mxu0 %v619
    %v621 = vand.u32 %v122, 4294901760
    %622 = vmatpush.msra.mxu0 %v621
    %v623 = vand.u32 %v120, 4294901760
    %624 = vmatpush.msra.mxu0 %v623
    %v625 = vand.u32 %v118, 4294901760
    %626 = vmatpush.msra.mxu0 %v625
    %v627 = vand.u32 %v116, 4294901760
    %628 = vmatpush.msra.mxu0 %v627
    %v629 = vand.u32 %v114, 4294901760
    %630 = vmatpush.msra.mxu0 %v629
    %v631 = vand.u32 %v112, 4294901760
    %632 = vmatpush.msra.mxu0 %v631
    %v633 = vand.u32 %v110, 4294901760
    %634 = vmatpush.msra.mxu0 %v633
    %v635 = vand.u32 %v108, 4294901760
    %636 = vmatpush.msra.mxu0 %v635
    %v637 = vand.u32 %v106, 4294901760
    %638 = vmatpush.msra.mxu0 %v637
    %v639 = vand.u32 %v104, 4294901760
    %640 = vmatpush.msra.mxu0 %v639
    %v641 = vand.u32 %v102, 4294901760
    %642 = vmatpush.msra.mxu0 %v641
    %v643 = vand.u32 %v100, 4294901760
    %644 = vmatpush.msra.mxu0 %v643
    %v645 = vand.u32 %v98, 4294901760
    %646 = vmatpush.msra.mxu0 %v645
    %v647 = vand.u32 %v96, 4294901760
    %648 = vmatpush.msra.mxu0 %v647
    %v649 = vand.u32 %v94, 4294901760
    %650 = vmatpush.msra.mxu0 %v649
    %v651 = vand.u32 %v86, 4294901760
    %652 = vmatmul.f32.gmra.mxu0 %v651
    %v653 = vpop.f32.mrf.mxu0
    %v654 = vadd.f32 %v589, %v653
    %v655 = vand.u32 %v87, 4294901760
    %656 = vmatmul.f32.gmra.mxu0 %v655
    %v657 = vpop.f32.mrf.mxu0
    %v658 = vadd.f32 %v593, %v657
    %v659 = vand.u32 %v88, 4294901760
    %660 = vmatmul.f32.gmra.mxu0 %v659
    %v661 = vpop.f32.mrf.mxu0
    %v662 = vadd.f32 %v597, %v661
    %v663 = vand.u32 %v89, 4294901760
    %664 = vmatmul.f32.gmra.mxu0 %v663
    %v665 = vpop.f32.mrf.mxu0
    %v666 = vadd.f32 %v601, %v665
    %v667 = vand.u32 %v90, 4294901760
    %668 = vmatmul.f32.gmra.mxu0 %v667
    %v669 = vpop.f32.mrf.mxu0
    %v670 = vadd.f32 %v605, %v669
    %v671 = vand.u32 %v91, 4294901760
    %672 = vmatmul.f32.gmra.mxu0 %v671
    %v673 = vpop.f32.mrf.mxu0
    %v674 = vadd.f32 %v609, %v673
    %v675 = vand.u32 %v92, 4294901760
    %676 = vmatmul.f32.gmra.mxu0 %v675
    %v677 = vpop.f32.mrf.mxu0
    %v678 = vadd.f32 %v613, %v677
    %v679 = vand.u32 %v93, 4294901760
    %680 = vmatmul.f32.gmra.mxu0 %v679
    %v681 = vpop.f32.mrf.mxu0
    %v682 = vadd.f32 %v617, %v681
    %683 = vdwg.mxu0
    %v684 = vand.u32 %v125, 4294901760
    %685 = vmatpush.msra.mxu0 %v684
    %v686 = vand.u32 %v123, 4294901760
    %687 = vmatpush.msra.mxu0 %v686
    %v688 = vand.u32 %v121, 4294901760
    %689 = vmatpush.msra.mxu0 %v688
    %v690 = vand.u32 %v119, 4294901760
    %691 = vmatpush.msra.mxu0 %v690
    %v692 = vand.u32 %v117, 4294901760
    %693 = vmatpush.msra.mxu0 %v692
    %v694 = vand.u32 %v115, 4294901760
    %695 = vmatpush.msra.mxu0 %v694
    %v696 = vand.u32 %v113, 4294901760
    %697 = vmatpush.msra.mxu0 %v696
    %v698 = vand.u32 %v111, 4294901760
    %699 = vmatpush.msra.mxu0 %v698
    %v700 = vand.u32 %v109, 4294901760
    %701 = vmatpush.msra.mxu0 %v700
    %v702 = vand.u32 %v107, 4294901760
    %703 = vmatpush.msra.mxu0 %v702
    %v704 = vand.u32 %v105, 4294901760
    %705 = vmatpush.msra.mxu0 %v704
    %v706 = vand.u32 %v103, 4294901760
    %707 = vmatpush.msra.mxu0 %v706
    %v708 = vand.u32 %v101, 4294901760
    %709 = vmatpush.msra.mxu0 %v708
    %v710 = vand.u32 %v99, 4294901760
    %711 = vmatpush.msra.mxu0 %v710
    %v712 = vand.u32 %v97, 4294901760
    %713 = vmatpush.msra.mxu0 %v712
    %v714 = vand.u32 %v95, 4294901760
    %715 = vmatpush.msra.mxu0 %v714
    %v716 = vand.u32 %v86, 4294901760
    %v717 = vsub.f32 %v86, %v716
    %v718 = vand.u32 %v717, 4294901760
    %v719 = vsub.f32 %v717, %v718
    %v720 = vand.u32 %v719, 4294901760
    %721 = vmatmul.f32.gmra.mxu0 %v720
    %v722 = vpop.f32.mrf.mxu0
    %v723 = vadd.f32 0.0, %v722
    %v724 = vand.u32 %v87, 4294901760
    %v725 = vsub.f32 %v87, %v724
    %v726 = vand.u32 %v725, 4294901760
    %v727 = vsub.f32 %v725, %v726
    %v728 = vand.u32 %v727, 4294901760
    %729 = vmatmul.f32.gmra.mxu0 %v728
    %v730 = vpop.f32.mrf.mxu0
    %v731 = vadd.f32 0.0, %v730
    %v732 = vand.u32 %v88, 4294901760
    %v733 = vsub.f32 %v88, %v732
    %v734 = vand.u32 %v733, 4294901760
    %v735 = vsub.f32 %v733, %v734
    %v736 = vand.u32 %v735, 4294901760
    %737 = vmatmul.f32.gmra.mxu0 %v736
    %v738 = vpop.f32.mrf.mxu0
    %v739 = vadd.f32 0.0, %v738
    %v740 = vand.u32 %v89, 4294901760
    %v741 = vsub.f32 %v89, %v740
    %v742 = vand.u32 %v741, 4294901760
    %v743 = vsub.f32 %v741, %v742
    %v744 = vand.u32 %v743, 4294901760
    %745 = vmatmul.f32.gmra.mxu0 %v744
    %v746 = vpop.f32.mrf.mxu0
    %v747 = vadd.f32 0.0, %v746
    %v748 = vand.u32 %v90, 4294901760
    %v749 = vsub.f32 %v90, %v748
    %v750 = vand.u32 %v749, 4294901760
    %v751 = vsub.f32 %v749, %v750
    %v752 = vand.u32 %v751, 4294901760
    %753 = vmatmul.f32.gmra.mxu0 %v752
    %v754 = vpop.f32.mrf.mxu0
    %v755 = vadd.f32 0.0, %v754
    %v756 = vand.u32 %v91, 4294901760
    %v757 = vsub.f32 %v91, %v756
    %v758 = vand.u32 %v757, 4294901760
    %v759 = vsub.f32 %v757, %v758
    %v760 = vand.u32 %v759, 4294901760
    %761 = vmatmul.f32.gmra.mxu0 %v760
    %v762 = vpop.f32.mrf.mxu0
    %v763 = vadd.f32 0.0, %v762
    %v764 = vand.u32 %v92, 4294901760
    %v765 = vsub.f32 %v92, %v764
    %v766 = vand.u32 %v765, 4294901760
    %v767 = vsub.f32 %v765, %v766
    %v768 = vand.u32 %v767, 4294901760
    %769 = vmatmul.f32.gmra.mxu0 %v768
    %v770 = vpop.f32.mrf.mxu0
    %v771 = vadd.f32 0.0, %v770
    %v772 = vand.u32 %v93, 4294901760
    %v773 = vsub.f32 %v93, %v772
    %v774 = vand.u32 %v773, 4294901760
    %v775 = vsub.f32 %v773, %v774
    %v776 = vand.u32 %v775, 4294901760
    %777 = vmatmul.f32.gmra.mxu0 %v776
    %v778 = vpop.f32.mrf.mxu0
    %v779 = vadd.f32 0.0, %v778
    %780 = vdwg.mxu0
    %v781 = vand.u32 %v125, 4294901760
    %v782 = vsub.f32 %v125, %v781
    %v783 = vand.u32 %v782, 4294901760
    %v784 = vsub.f32 %v782, %v783
    %v785 = vand.u32 %v784, 4294901760
    %786 = vmatpush.msra.mxu0 %v785
    %v787 = vand.u32 %v123, 4294901760
    %v788 = vsub.f32 %v123, %v787
    %v789 = vand.u32 %v788, 4294901760
    %v790 = vsub.f32 %v788, %v789
    %v791 = vand.u32 %v790, 4294901760
    %792 = vmatpush.msra.mxu0 %v791
    %v793 = vand.u32 %v121, 4294901760
    %v794 = vsub.f32 %v121, %v793
    %v795 = vand.u32 %v794, 4294901760
    %v796 = vsub.f32 %v794, %v795
    %v797 = vand.u32 %v796, 4294901760
    %798 = vmatpush.msra.mxu0 %v797
    %v799 = vand.u32 %v119, 4294901760
    %v800 = vsub.f32 %v119, %v799
    %v801 = vand.u32 %v800, 4294901760
    %v802 = vsub.f32 %v800, %v801
    %v803 = vand.u32 %v802, 4294901760
    %804 = vmatpush.msra.mxu0 %v803
    %v805 = vand.u32 %v117, 4294901760
    %v806 = vsub.f32 %v117, %v805
    %v807 = vand.u32 %v806, 4294901760
    %v808 = vsub.f32 %v806, %v807
    %v809 = vand.u32 %v808, 4294901760
    %810 = vmatpush.msra.mxu0 %v809
    %v811 = vand.u32 %v115, 4294901760
    %v812 = vsub.f32 %v115, %v811
    %v813 = vand.u32 %v812, 4294901760
    %v814 = vsub.f32 %v812, %v813
    %v815 = vand.u32 %v814, 4294901760
    %816 = vmatpush.msra.mxu0 %v815
    %v817 = vand.u32 %v113, 4294901760
    %v818 = vsub.f32 %v113, %v817
    %v819 = vand.u32 %v818, 4294901760
    %v820 = vsub.f32 %v818, %v819
    %v821 = vand.u32 %v820, 4294901760
    %822 = vmatpush.msra.mxu0 %v821
    %v823 = vand.u32 %v111, 4294901760
    %v824 = vsub.f32 %v111, %v823
    %v825 = vand.u32 %v824, 4294901760
    %v826 = vsub.f32 %v824, %v825
    %v827 = vand.u32 %v826, 4294901760
    %828 = vmatpush.msra.mxu0 %v827
    %v829 = vand.u32 %v109, 4294901760
    %v830 = vsub.f32 %v109, %v829
    %v831 = vand.u32 %v830, 4294901760
    %v832 = vsub.f32 %v830, %v831
    %v833 = vand.u32 %v832, 4294901760
    %834 = vmatpush.msra.mxu0 %v833
    %v835 = vand.u32 %v107, 4294901760
    %v836 = vsub.f32 %v107, %v835
    %v837 = vand.u32 %v836, 4294901760
    %v838 = vsub.f32 %v836, %v837
    %v839 = vand.u32 %v838, 4294901760
    %840 = vmatpush.msra.mxu0 %v839
    %v841 = vand.u32 %v105, 4294901760
    %v842 = vsub.f32 %v105, %v841
    %v843 = vand.u32 %v842, 4294901760
    %v844 = vsub.f32 %v842, %v843
    %v845 = vand.u32 %v844, 4294901760
    %846 = vmatpush.msra.mxu0 %v845
    %v847 = vand.u32 %v103, 4294901760
    %v848 = vsub.f32 %v103, %v847
    %v849 = vand.u32 %v848, 4294901760
    %v850 = vsub.f32 %v848, %v849
    %v851 = vand.u32 %v850, 4294901760
    %852 = vmatpush.msra.mxu0 %v851
    %v853 = vand.u32 %v101, 4294901760
    %v854 = vsub.f32 %v101, %v853
    %v855 = vand.u32 %v854, 4294901760
    %v856 = vsub.f32 %v854, %v855
    %v857 = vand.u32 %v856, 4294901760
    %858 = vmatpush.msra.mxu0 %v857
    %v859 = vand.u32 %v99, 4294901760
    %v860 = vsub.f32 %v99, %v859
    %v861 = vand.u32 %v860, 4294901760
    %v862 = vsub.f32 %v860, %v861
    %v863 = vand.u32 %v862, 4294901760
    %864 = vmatpush.msra.mxu0 %v863
    %v865 = vand.u32 %v97, 4294901760
    %v866 = vsub.f32 %v97, %v865
    %v867 = vand.u32 %v866, 4294901760
    %v868 = vsub.f32 %v866, %v867
    %v869 = vand.u32 %v868, 4294901760
    %870 = vmatpush.msra.mxu0 %v869
    %v871 = vand.u32 %v95, 4294901760
    %v872 = vsub.f32 %v95, %v871
    %v873 = vand.u32 %v872, 4294901760
    %v874 = vsub.f32 %v872, %v873
    %v875 = vand.u32 %v874, 4294901760
    %876 = vmatpush.msra.mxu0 %v875
    %v877 = vand.u32 %v86, 4294901760
    %878 = vmatmul.f32.gmra.mxu0 %v877
    %v879 = vpop.f32.mrf.mxu0
    %v880 = vadd.f32 %v723, %v879
    %v881 = vand.u32 %v87, 4294901760
    %882 = vmatmul.f32.gmra.mxu0 %v881
    %v883 = vpop.f32.mrf.mxu0
    %v884 = vadd.f32 %v731, %v883
    %v885 = vand.u32 %v88, 4294901760
    %886 = vmatmul.f32.gmra.mxu0 %v885
    %v887 = vpop.f32.mrf.mxu0
    %v888 = vadd.f32 %v739, %v887
    %v889 = vand.u32 %v89, 4294901760
    %890 = vmatmul.f32.gmra.mxu0 %v889
    %v891 = vpop.f32.mrf.mxu0
    %v892 = vadd.f32 %v747, %v891
    %v893 = vand.u32 %v90, 4294901760
    %894 = vmatmul.f32.gmra.mxu0 %v893
    %v895 = vpop.f32.mrf.mxu0
    %v896 = vadd.f32 %v755, %v895
    %v897 = vand.u32 %v91, 4294901760
    %898 = vmatmul.f32.gmra.mxu0 %v897
    %v899 = vpop.f32.mrf.mxu0
    %v900 = vadd.f32 %v763, %v899
    %v901 = vand.u32 %v92, 4294901760
    %902 = vmatmul.f32.gmra.mxu0 %v901
    %v903 = vpop.f32.mrf.mxu0
    %v904 = vadd.f32 %v771, %v903
    %v905 = vand.u32 %v93, 4294901760
    %906 = vmatmul.f32.gmra.mxu0 %v905
    %v907 = vpop.f32.mrf.mxu0
    %v908 = vadd.f32 %v779, %v907
    %909 = vdwg.mxu0
    %v910 = vand.u32 %v125, 4294901760
    %v911 = vsub.f32 %v125, %v910
    %912 = vmatpush.msra.mxu0 %v911
    %v913 = vand.u32 %v123, 4294901760
    %v914 = vsub.f32 %v123, %v913
    %915 = vmatpush.msra.mxu0 %v914
    %v916 = vand.u32 %v121, 4294901760
    %v917 = vsub.f32 %v121, %v916
    %918 = vmatpush.msra.mxu0 %v917
    %v919 = vand.u32 %v119, 4294901760
    %v920 = vsub.f32 %v119, %v919
    %921 = vmatpush.msra.mxu0 %v920
    %v922 = vand.u32 %v117, 4294901760
    %v923 = vsub.f32 %v117, %v922
    %924 = vmatpush.msra.mxu0 %v923
    %v925 = vand.u32 %v115, 4294901760
    %v926 = vsub.f32 %v115, %v925
    %927 = vmatpush.msra.mxu0 %v926
    %v928 = vand.u32 %v113, 4294901760
    %v929 = vsub.f32 %v113, %v928
    %930 = vmatpush.msra.mxu0 %v929
    %v931 = vand.u32 %v111, 4294901760
    %v932 = vsub.f32 %v111, %v931
    %933 = vmatpush.msra.mxu0 %v932
    %v934 = vand.u32 %v109, 4294901760
    %v935 = vsub.f32 %v109, %v934
    %936 = vmatpush.msra.mxu0 %v935
    %v937 = vand.u32 %v107, 4294901760
    %v938 = vsub.f32 %v107, %v937
    %939 = vmatpush.msra.mxu0 %v938
    %v940 = vand.u32 %v105, 4294901760
    %v941 = vsub.f32 %v105, %v940
    %942 = vmatpush.msra.mxu0 %v941
    %v943 = vand.u32 %v103, 4294901760
    %v944 = vsub.f32 %v103, %v943
    %945 = vmatpush.msra.mxu0 %v944
    %v946 = vand.u32 %v101, 4294901760
    %v947 = vsub.f32 %v101, %v946
    %948 = vmatpush.msra.mxu0 %v947
    %v949 = vand.u32 %v99, 4294901760
    %v950 = vsub.f32 %v99, %v949
    %951 = vmatpush.msra.mxu0 %v950
    %v952 = vand.u32 %v97, 4294901760
    %v953 = vsub.f32 %v97, %v952
    %954 = vmatpush.msra.mxu0 %v953
    %v955 = vand.u32 %v95, 4294901760
    %v956 = vsub.f32 %v95, %v955
    %957 = vmatpush.msra.mxu0 %v956
    %v958 = vand.u32 %v86, 4294901760
    %v959 = vsub.f32 %v86, %v958
    %960 = vmatmul.f32.gmra.mxu0 %v959
    %v961 = vpop.f32.mrf.mxu0
    %v962 = vadd.f32 %v880, %v961
    %v963 = vand.u32 %v87, 4294901760
    %v964 = vsub.f32 %v87, %v963
    %965 = vmatmul.f32.gmra.mxu0 %v964
    %v966 = vpop.f32.mrf.mxu0
    %v967 = vadd.f32 %v884, %v966
    %v968 = vand.u32 %v88, 4294901760
    %v969 = vsub.f32 %v88, %v968
    %970 = vmatmul.f32.gmra.mxu0 %v969
    %v971 = vpop.f32.mrf.mxu0
    %v972 = vadd.f32 %v888, %v971
    %v973 = vand.u32 %v89, 4294901760
    %v974 = vsub.f32 %v89, %v973
    %975 = vmatmul.f32.gmra.mxu0 %v974
    %v976 = vpop.f32.mrf.mxu0
    %v977 = vadd.f32 %v892, %v976
    %v978 = vand.u32 %v90, 4294901760
    %v979 = vsub.f32 %v90, %v978
    %980 = vmatmul.f32.gmra.mxu0 %v979
    %v981 = vpop.f32.mrf.mxu0
    %v982 = vadd.f32 %v896, %v981
    %v983 = vand.u32 %v91, 4294901760
    %v984 = vsub.f32 %v91, %v983
    %985 = vmatmul.f32.gmra.mxu0 %v984
    %v986 = vpop.f32.mrf.mxu0
    %v987 = vadd.f32 %v900, %v986
    %v988 = vand.u32 %v92, 4294901760
    %v989 = vsub.f32 %v92, %v988
    %990 = vmatmul.f32.gmra.mxu0 %v989
    %v991 = vpop.f32.mrf.mxu0
    %v992 = vadd.f32 %v904, %v991
    %v993 = vand.u32 %v93, 4294901760
    %v994 = vsub.f32 %v93, %v993
    %995 = vmatmul.f32.gmra.mxu0 %v994
    %v996 = vpop.f32.mrf.mxu0
    %v997 = vadd.f32 %v908, %v996
    %998 = vdwg.mxu0
    %v999 = vand.u32 %v125, 4294901760
    %1000 = vmatpush.msra.mxu0 %v999
    %v1001 = vand.u32 %v123, 4294901760
    %1002 = vmatpush.msra.mxu0 %v1001
    %v1003 = vand.u32 %v121, 4294901760
    %1004 = vmatpush.msra.mxu0 %v1003
    %v1005 = vand.u32 %v119, 4294901760
    %1006 = vmatpush.msra.mxu0 %v1005
    %v1007 = vand.u32 %v117, 4294901760
    %1008 = vmatpush.msra.mxu0 %v1007
    %v1009 = vand.u32 %v115, 4294901760
    %1010 = vmatpush.msra.mxu0 %v1009
    %v1011 = vand.u32 %v113, 4294901760
    %1012 = vmatpush.msra.mxu0 %v1011
    %v1013 = vand.u32 %v111, 4294901760
    %1014 = vmatpush.msra.mxu0 %v1013
    %v1015 = vand.u32 %v109, 4294901760
    %1016 = vmatpush.msra.mxu0 %v1015
    %v1017 = vand.u32 %v107, 4294901760
    %1018 = vmatpush.msra.mxu0 %v1017
    %v1019 = vand.u32 %v105, 4294901760
    %1020 = vmatpush.msra.mxu0 %v1019
    %v1021 = vand.u32 %v103, 4294901760
    %1022 = vmatpush.msra.mxu0 %v1021
    %v1023 = vand.u32 %v101, 4294901760
    %1024 = vmatpush.msra.mxu0 %v1023
    %v1025 = vand.u32 %v99, 4294901760
    %1026 = vmatpush.msra.mxu0 %v1025
    %v1027 = vand.u32 %v97, 4294901760
    %1028 = vmatpush.msra.mxu0 %v1027
    %v1029 = vand.u32 %v95, 4294901760
    %1030 = vmatpush.msra.mxu0 %v1029
    %v1031 = vand.u32 %v86, 4294901760
    %v1032 = vsub.f32 %v86, %v1031
    %v1033 = vand.u32 %v1032, 4294901760
    %1034 = vmatmul.f32.gmra.mxu0 %v1033
    %v1035 = vpop.f32.mrf.mxu0
    %v1036 = vadd.f32 %v962, %v1035
    %v1037 = vand.u32 %v87, 4294901760
    %v1038 = vsub.f32 %v87, %v1037
    %v1039 = vand.u32 %v1038, 4294901760
    %1040 = vmatmul.f32.gmra.mxu0 %v1039
    %v1041 = vpop.f32.mrf.mxu0
    %v1042 = vadd.f32 %v967, %v1041
    %v1043 = vand.u32 %v88, 4294901760
    %v1044 = vsub.f32 %v88, %v1043
    %v1045 = vand.u32 %v1044, 4294901760
    %1046 = vmatmul.f32.gmra.mxu0 %v1045
    %v1047 = vpop.f32.mrf.mxu0
    %v1048 = vadd.f32 %v972, %v1047
    %v1049 = vand.u32 %v89, 4294901760
    %v1050 = vsub.f32 %v89, %v1049
    %v1051 = vand.u32 %v1050, 4294901760
    %1052 = vmatmul.f32.gmra.mxu0 %v1051
    %v1053 = vpop.f32.mrf.mxu0
    %v1054 = vadd.f32 %v977, %v1053
    %v1055 = vand.u32 %v90, 4294901760
    %v1056 = vsub.f32 %v90, %v1055
    %v1057 = vand.u32 %v1056, 4294901760
    %1058 = vmatmul.f32.gmra.mxu0 %v1057
    %v1059 = vpop.f32.mrf.mxu0
    %v1060 = vadd.f32 %v982, %v1059
    %v1061 = vand.u32 %v91, 4294901760
    %v1062 = vsub.f32 %v91, %v1061
    %v1063 = vand.u32 %v1062, 4294901760
    %1064 = vmatmul.f32.gmra.mxu0 %v1063
    %v1065 = vpop.f32.mrf.mxu0
    %v1066 = vadd.f32 %v987, %v1065
    %v1067 = vand.u32 %v92, 4294901760
    %v1068 = vsub.f32 %v92, %v1067
    %v1069 = vand.u32 %v1068, 4294901760
    %1070 = vmatmul.f32.gmra.mxu0 %v1069
    %v1071 = vpop.f32.mrf.mxu0
    %v1072 = vadd.f32 %v992, %v1071
    %v1073 = vand.u32 %v93, 4294901760
    %v1074 = vsub.f32 %v93, %v1073
    %v1075 = vand.u32 %v1074, 4294901760
    %1076 = vmatmul.f32.gmra.mxu0 %v1075
    %v1077 = vpop.f32.mrf.mxu0
    %v1078 = vadd.f32 %v997, %v1077
    %1079 = vdwg.mxu0
    %v1080 = vand.u32 %v125, 4294901760
    %v1081 = vsub.f32 %v125, %v1080
    %v1082 = vand.u32 %v1081, 4294901760
    %1083 = vmatpush.msra.mxu0 %v1082
    %v1084 = vand.u32 %v123, 4294901760
    %v1085 = vsub.f32 %v123, %v1084
    %v1086 = vand.u32 %v1085, 4294901760
    %1087 = vmatpush.msra.mxu0 %v1086
    %v1088 = vand.u32 %v121, 4294901760
    %v1089 = vsub.f32 %v121, %v1088
    %v1090 = vand.u32 %v1089, 4294901760
    %1091 = vmatpush.msra.mxu0 %v1090
    %v1092 = vand.u32 %v119, 4294901760
    %v1093 = vsub.f32 %v119, %v1092
    %v1094 = vand.u32 %v1093, 4294901760
    %1095 = vmatpush.msra.mxu0 %v1094
    %v1096 = vand.u32 %v117, 4294901760
    %v1097 = vsub.f32 %v117, %v1096
    %v1098 = vand.u32 %v1097, 4294901760
    %1099 = vmatpush.msra.mxu0 %v1098
    %v1100 = vand.u32 %v115, 4294901760
    %v1101 = vsub.f32 %v115, %v1100
    %v1102 = vand.u32 %v1101, 4294901760
    %1103 = vmatpush.msra.mxu0 %v1102
    %v1104 = vand.u32 %v113, 4294901760
    %v1105 = vsub.f32 %v113, %v1104
    %v1106 = vand.u32 %v1105, 4294901760
    %1107 = vmatpush.msra.mxu0 %v1106
    %v1108 = vand.u32 %v111, 4294901760
    %v1109 = vsub.f32 %v111, %v1108
    %v1110 = vand.u32 %v1109, 4294901760
    %1111 = vmatpush.msra.mxu0 %v1110
    %v1112 = vand.u32 %v109, 4294901760
    %v1113 = vsub.f32 %v109, %v1112
    %v1114 = vand.u32 %v1113, 4294901760
    %1115 = vmatpush.msra.mxu0 %v1114
    %v1116 = vand.u32 %v107, 4294901760
    %v1117 = vsub.f32 %v107, %v1116
    %v1118 = vand.u32 %v1117, 4294901760
    %1119 = vmatpush.msra.mxu0 %v1118
    %v1120 = vand.u32 %v105, 4294901760
    %v1121 = vsub.f32 %v105, %v1120
    %v1122 = vand.u32 %v1121, 4294901760
    %1123 = vmatpush.msra.mxu0 %v1122
    %v1124 = vand.u32 %v103, 4294901760
    %v1125 = vsub.f32 %v103, %v1124
    %v1126 = vand.u32 %v1125, 4294901760
    %1127 = vmatpush.msra.mxu0 %v1126
    %v1128 = vand.u32 %v101, 4294901760
    %v1129 = vsub.f32 %v101, %v1128
    %v1130 = vand.u32 %v1129, 4294901760
    %1131 = vmatpush.msra.mxu0 %v1130
    %v1132 = vand.u32 %v99, 4294901760
    %v1133 = vsub.f32 %v99, %v1132
    %v1134 = vand.u32 %v1133, 4294901760
    %1135 = vmatpush.msra.mxu0 %v1134
    %v1136 = vand.u32 %v97, 4294901760
    %v1137 = vsub.f32 %v97, %v1136
    %v1138 = vand.u32 %v1137, 4294901760
    %1139 = vmatpush.msra.mxu0 %v1138
    %v1140 = vand.u32 %v95, 4294901760
    %v1141 = vsub.f32 %v95, %v1140
    %v1142 = vand.u32 %v1141, 4294901760
    %1143 = vmatpush.msra.mxu0 %v1142
    %v1144 = vand.u32 %v86, 4294901760
    %1145 = vmatmul.f32.gmra.mxu0 %v1144
    %v1146 = vpop.f32.mrf.mxu0
    %v1147 = vadd.f32 %v1036, %v1146
    %v1148 = vand.u32 %v87, 4294901760
    %1149 = vmatmul.f32.gmra.mxu0 %v1148
    %v1150 = vpop.f32.mrf.mxu0
    %v1151 = vadd.f32 %v1042, %v1150
    %v1152 = vand.u32 %v88, 4294901760
    %1153 = vmatmul.f32.gmra.mxu0 %v1152
    %v1154 = vpop.f32.mrf.mxu0
    %v1155 = vadd.f32 %v1048, %v1154
    %v1156 = vand.u32 %v89, 4294901760
    %1157 = vmatmul.f32.gmra.mxu0 %v1156
    %v1158 = vpop.f32.mrf.mxu0
    %v1159 = vadd.f32 %v1054, %v1158
    %v1160 = vand.u32 %v90, 4294901760
    %1161 = vmatmul.f32.gmra.mxu0 %v1160
    %v1162 = vpop.f32.mrf.mxu0
    %v1163 = vadd.f32 %v1060, %v1162
    %v1164 = vand.u32 %v91, 4294901760
    %1165 = vmatmul.f32.gmra.mxu0 %v1164
    %v1166 = vpop.f32.mrf.mxu0
    %v1167 = vadd.f32 %v1066, %v1166
    %v1168 = vand.u32 %v92, 4294901760
    %1169 = vmatmul.f32.gmra.mxu0 %v1168
    %v1170 = vpop.f32.mrf.mxu0
    %v1171 = vadd.f32 %v1072, %v1170
    %v1172 = vand.u32 %v93, 4294901760
    %1173 = vmatmul.f32.gmra.mxu0 %v1172
    %v1174 = vpop.f32.mrf.mxu0
    %v1175 = vadd.f32 %v1078, %v1174
    %1176 = vdwg.mxu0
    %v1177 = vand.u32 %v125, 4294901760
    %1178 = vmatpush.msra.mxu0 %v1177
    %v1179 = vand.u32 %v123, 4294901760
    %1180 = vmatpush.msra.mxu0 %v1179
    %v1181 = vand.u32 %v121, 4294901760
    %1182 = vmatpush.msra.mxu0 %v1181
    %v1183 = vand.u32 %v119, 4294901760
    %1184 = vmatpush.msra.mxu0 %v1183
    %v1185 = vand.u32 %v117, 4294901760
    %1186 = vmatpush.msra.mxu0 %v1185
    %v1187 = vand.u32 %v115, 4294901760
    %1188 = vmatpush.msra.mxu0 %v1187
    %v1189 = vand.u32 %v113, 4294901760
    %1190 = vmatpush.msra.mxu0 %v1189
    %v1191 = vand.u32 %v111, 4294901760
    %1192 = vmatpush.msra.mxu0 %v1191
    %v1193 = vand.u32 %v109, 4294901760
    %1194 = vmatpush.msra.mxu0 %v1193
    %v1195 = vand.u32 %v107, 4294901760
    %1196 = vmatpush.msra.mxu0 %v1195
    %v1197 = vand.u32 %v105, 4294901760
    %1198 = vmatpush.msra.mxu0 %v1197
    %v1199 = vand.u32 %v103, 4294901760
    %1200 = vmatpush.msra.mxu0 %v1199
    %v1201 = vand.u32 %v101, 4294901760
    %1202 = vmatpush.msra.mxu0 %v1201
    %v1203 = vand.u32 %v99, 4294901760
    %1204 = vmatpush.msra.mxu0 %v1203
    %v1205 = vand.u32 %v97, 4294901760
    %1206 = vmatpush.msra.mxu0 %v1205
    %v1207 = vand.u32 %v95, 4294901760
    %1208 = vmatpush.msra.mxu0 %v1207
    %v1209 = vand.u32 %v86, 4294901760
    %1210 = vmatmul.f32.gmra.mxu0 %v1209
    %v1211 = vpop.f32.mrf.mxu0
    %v1212 = vadd.f32 %v1147, %v1211
    %v1213 = vand.u32 %v87, 4294901760
    %1214 = vmatmul.f32.gmra.mxu0 %v1213
    %v1215 = vpop.f32.mrf.mxu0
    %v1216 = vadd.f32 %v1151, %v1215
    %v1217 = vand.u32 %v88, 4294901760
    %1218 = vmatmul.f32.gmra.mxu0 %v1217
    %v1219 = vpop.f32.mrf.mxu0
    %v1220 = vadd.f32 %v1155, %v1219
    %v1221 = vand.u32 %v89, 4294901760
    %1222 = vmatmul.f32.gmra.mxu0 %v1221
    %v1223 = vpop.f32.mrf.mxu0
    %v1224 = vadd.f32 %v1159, %v1223
    %v1225 = vand.u32 %v90, 4294901760
    %1226 = vmatmul.f32.gmra.mxu0 %v1225
    %v1227 = vpop.f32.mrf.mxu0
    %v1228 = vadd.f32 %v1163, %v1227
    %v1229 = vand.u32 %v91, 4294901760
    %1230 = vmatmul.f32.gmra.mxu0 %v1229
    %v1231 = vpop.f32.mrf.mxu0
    %v1232 = vadd.f32 %v1167, %v1231
    %v1233 = vand.u32 %v92, 4294901760
    %1234 = vmatmul.f32.gmra.mxu0 %v1233
    %v1235 = vpop.f32.mrf.mxu0
    %v1236 = vadd.f32 %v1171, %v1235
    %v1237 = vand.u32 %v93, 4294901760
    %1238 = vmatmul.f32.gmra.mxu0 %v1237
    %v1239 = vpop.f32.mrf.mxu0
    %v1240 = vadd.f32 %v1175, %v1239
    %1241 = vdwg.mxu0
    %v1242 = vld [vmem:[%s3] sm:$0x3]
    %v1244 = vperm.slane %v1242, 0
    %v1245 = vperm.slane %v1242, 1
    %v1248 = vsub.f32 %v1244, %v654
    %v1249 = vsub.f32 %v1245, %v1212
    %v1250 = vsub.f32 %v1244, %v658
    %v1251 = vsub.f32 %v1245, %v1216
    %v1252 = vsub.f32 %v1244, %v662
    %v1253 = vsub.f32 %v1245, %v1220
    %v1254 = vsub.f32 %v1244, %v666
    %v1255 = vsub.f32 %v1245, %v1224
    %v1256 = vsub.f32 %v1244, %v670
    %v1257 = vsub.f32 %v1245, %v1228
    %v1258 = vsub.f32 %v1244, %v674
    %v1259 = vsub.f32 %v1245, %v1232
    %v1260 = vsub.f32 %v1244, %v678
    %v1261 = vsub.f32 %v1245, %v1236
    %v1262 = vsub.f32 %v1244, %v682
    %v1263 = vsub.f32 %v1245, %v1240
    %1264 = vrot.lane.b32.xlu0 %v1248, 4
    %v1265 = vpop.permute.xlu0 %1264
    %1266 = vrot.lane.b32.xlu0 %v1250, 4
    %v1267 = vpop.permute.xlu0 %1266
    %1268 = vrot.lane.b32.xlu0 %v1252, 4
    %v1269 = vpop.permute.xlu0 %1268
    %1270 = vrot.lane.b32.xlu0 %v1254, 4
    %v1271 = vpop.permute.xlu0 %1270
    %1272 = vrot.lane.b32.xlu0 %v1256, 4
    %v1273 = vpop.permute.xlu0 %1272
    %1274 = vrot.lane.b32.xlu0 %v1258, 4
    %v1275 = vpop.permute.xlu0 %1274
    %1276 = vrot.lane.b32.xlu0 %v1260, 4
    %v1277 = vpop.permute.xlu0 %1276
    %1278 = vrot.lane.b32.xlu0 %v1262, 4
    %v1279 = vpop.permute.xlu0 %1278
    %1280 = vrot.lane.b32.xlu0 %v1249, 4
    %v1281 = vpop.permute.xlu0 %1280
    %1282 = vrot.lane.b32.xlu0 %v1251, 4
    %v1283 = vpop.permute.xlu0 %1282
    %1284 = vrot.lane.b32.xlu0 %v1253, 4
    %v1285 = vpop.permute.xlu0 %1284
    %1286 = vrot.lane.b32.xlu0 %v1255, 4
    %v1287 = vpop.permute.xlu0 %1286
    %1288 = vrot.lane.b32.xlu0 %v1257, 4
    %v1289 = vpop.permute.xlu0 %1288
    %1290 = vrot.lane.b32.xlu0 %v1259, 4
    %v1291 = vpop.permute.xlu0 %1290
    %1292 = vrot.lane.b32.xlu0 %v1261, 4
    %v1293 = vpop.permute.xlu0 %1292
    %1294 = vrot.lane.b32.xlu0 %v1263, 4
    %v1295 = vpop.permute.xlu0 %1294
    %v1296 = vlaneseq
    %v1297 = vand.u32 %v1296, 127
    %vm1298 = vcmp.lt.s32.totalorder %v1297, 4
    %v1299 = vsel %vm1298, %v1265, %v1281
    %v1300 = vsel %vm1298, %v1267, %v1283
    %v1301 = vsel %vm1298, %v1269, %v1285
    %v1302 = vsel %vm1298, %v1271, %v1287
    %v1303 = vsel %vm1298, %v1273, %v1289
    %v1304 = vsel %vm1298, %v1275, %v1291
    %v1305 = vsel %vm1298, %v1277, %v1293
    %v1306 = vsel %vm1298, %v1279, %v1295
    %v1307 = vsel %vm1298, %v1281, %v1265
    %v1308 = vsel %vm1298, %v1283, %v1267
    %v1309 = vsel %vm1298, %v1285, %v1269
    %v1310 = vsel %vm1298, %v1287, %v1271
    %v1311 = vsel %vm1298, %v1289, %v1273
    %v1312 = vsel %vm1298, %v1291, %v1275
    %v1313 = vsel %vm1298, %v1293, %v1277
    %v1314 = vsel %vm1298, %v1295, %v1279
    %v1315 = vmin.f32 %v1248, %v1307
    %v1316 = vmin.f32 %v1249, %v1299
    %v1317 = vmin.f32 %v1250, %v1308
    %v1318 = vmin.f32 %v1251, %v1300
    %v1319 = vmin.f32 %v1252, %v1309
    %v1320 = vmin.f32 %v1253, %v1301
    %v1321 = vmin.f32 %v1254, %v1310
    %v1322 = vmin.f32 %v1255, %v1302
    %v1323 = vmin.f32 %v1256, %v1311
    %v1324 = vmin.f32 %v1257, %v1303
    %v1325 = vmin.f32 %v1258, %v1312
    %v1326 = vmin.f32 %v1259, %v1304
    %v1327 = vmin.f32 %v1260, %v1313
    %v1328 = vmin.f32 %v1261, %v1305
    %v1329 = vmin.f32 %v1262, %v1314
    %v1330 = vmin.f32 %v1263, %v1306
    %1331 = vrot.lane.b32.xlu0 %v1315, 8
    %v1332 = vpop.permute.xlu0 %1331
    %1333 = vrot.lane.b32.xlu0 %v1317, 8
    %v1334 = vpop.permute.xlu0 %1333
    %1335 = vrot.lane.b32.xlu0 %v1319, 8
    %v1336 = vpop.permute.xlu0 %1335
    %1337 = vrot.lane.b32.xlu0 %v1321, 8
    %v1338 = vpop.permute.xlu0 %1337
    %1339 = vrot.lane.b32.xlu0 %v1323, 8
    %v1340 = vpop.permute.xlu0 %1339
    %1341 = vrot.lane.b32.xlu0 %v1325, 8
    %v1342 = vpop.permute.xlu0 %1341
    %1343 = vrot.lane.b32.xlu0 %v1327, 8
    %v1344 = vpop.permute.xlu0 %1343
    %1345 = vrot.lane.b32.xlu0 %v1329, 8
    %v1346 = vpop.permute.xlu0 %1345
    %1347 = vrot.lane.b32.xlu0 %v1316, 8
    %v1348 = vpop.permute.xlu0 %1347
    %1349 = vrot.lane.b32.xlu0 %v1318, 8
    %v1350 = vpop.permute.xlu0 %1349
    %1351 = vrot.lane.b32.xlu0 %v1320, 8
    %v1352 = vpop.permute.xlu0 %1351
    %1353 = vrot.lane.b32.xlu0 %v1322, 8
    %v1354 = vpop.permute.xlu0 %1353
    %1355 = vrot.lane.b32.xlu0 %v1324, 8
    %v1356 = vpop.permute.xlu0 %1355
    %1357 = vrot.lane.b32.xlu0 %v1326, 8
    %v1358 = vpop.permute.xlu0 %1357
    %1359 = vrot.lane.b32.xlu0 %v1328, 8
    %v1360 = vpop.permute.xlu0 %1359
    %1361 = vrot.lane.b32.xlu0 %v1330, 8
    %v1362 = vpop.permute.xlu0 %1361
    %vm1363 = vcmp.lt.s32.totalorder %v1297, 8
    %v1364 = vsel %vm1363, %v1332, %v1348
    %v1365 = vsel %vm1363, %v1334, %v1350
    %v1366 = vsel %vm1363, %v1336, %v1352
    %v1367 = vsel %vm1363, %v1338, %v1354
    %v1368 = vsel %vm1363, %v1340, %v1356
    %v1369 = vsel %vm1363, %v1342, %v1358
    %v1370 = vsel %vm1363, %v1344, %v1360
    %v1371 = vsel %vm1363, %v1346, %v1362
    %v1372 = vsel %vm1363, %v1348, %v1332
    %v1373 = vsel %vm1363, %v1350, %v1334
    %v1374 = vsel %vm1363, %v1352, %v1336
    %v1375 = vsel %vm1363, %v1354, %v1338
    %v1376 = vsel %vm1363, %v1356, %v1340
    %v1377 = vsel %vm1363, %v1358, %v1342
    %v1378 = vsel %vm1363, %v1360, %v1344
    %v1379 = vsel %vm1363, %v1362, %v1346
    %v1380 = vmin.f32 %v1315, %v1372
    %v1381 = vmin.f32 %v1316, %v1364
    %v1382 = vmin.f32 %v1317, %v1373
    %v1383 = vmin.f32 %v1318, %v1365
    %v1384 = vmin.f32 %v1319, %v1374
    %v1385 = vmin.f32 %v1320, %v1366
    %v1386 = vmin.f32 %v1321, %v1375
    %v1387 = vmin.f32 %v1322, %v1367
    %v1388 = vmin.f32 %v1323, %v1376
    %v1389 = vmin.f32 %v1324, %v1368
    %v1390 = vmin.f32 %v1325, %v1377
    %v1391 = vmin.f32 %v1326, %v1369
    %v1392 = vmin.f32 %v1327, %v1378
    %v1393 = vmin.f32 %v1328, %v1370
    %v1394 = vmin.f32 %v1329, %v1379
    %v1395 = vmin.f32 %v1330, %v1371
    %1396 = vrot.lane.b32.xlu0 %v1380, 16
    %v1397 = vpop.permute.xlu0 %1396
    %1398 = vrot.lane.b32.xlu0 %v1382, 16
    %v1399 = vpop.permute.xlu0 %1398
    %1400 = vrot.lane.b32.xlu0 %v1384, 16
    %v1401 = vpop.permute.xlu0 %1400
    %1402 = vrot.lane.b32.xlu0 %v1386, 16
    %v1403 = vpop.permute.xlu0 %1402
    %1404 = vrot.lane.b32.xlu0 %v1388, 16
    %v1405 = vpop.permute.xlu0 %1404
    %1406 = vrot.lane.b32.xlu0 %v1390, 16
    %v1407 = vpop.permute.xlu0 %1406
    %1408 = vrot.lane.b32.xlu0 %v1392, 16
    %v1409 = vpop.permute.xlu0 %1408
    %1410 = vrot.lane.b32.xlu0 %v1394, 16
    %v1411 = vpop.permute.xlu0 %1410
    %1412 = vrot.lane.b32.xlu0 %v1381, 16
    %v1413 = vpop.permute.xlu0 %1412
    %1414 = vrot.lane.b32.xlu0 %v1383, 16
    %v1415 = vpop.permute.xlu0 %1414
    %1416 = vrot.lane.b32.xlu0 %v1385, 16
    %v1417 = vpop.permute.xlu0 %1416
    %1418 = vrot.lane.b32.xlu0 %v1387, 16
    %v1419 = vpop.permute.xlu0 %1418
    %1420 = vrot.lane.b32.xlu0 %v1389, 16
    %v1421 = vpop.permute.xlu0 %1420
    %1422 = vrot.lane.b32.xlu0 %v1391, 16
    %v1423 = vpop.permute.xlu0 %1422
    %1424 = vrot.lane.b32.xlu0 %v1393, 16
    %v1425 = vpop.permute.xlu0 %1424
    %1426 = vrot.lane.b32.xlu0 %v1395, 16
    %v1427 = vpop.permute.xlu0 %1426
    %vm1428 = vcmp.lt.s32.totalorder %v1297, 16
    %v1429 = vsel %vm1428, %v1397, %v1413
    %v1430 = vsel %vm1428, %v1399, %v1415
    %v1431 = vsel %vm1428, %v1401, %v1417
    %v1432 = vsel %vm1428, %v1403, %v1419
    %v1433 = vsel %vm1428, %v1405, %v1421
    %v1434 = vsel %vm1428, %v1407, %v1423
    %v1435 = vsel %vm1428, %v1409, %v1425
    %v1436 = vsel %vm1428, %v1411, %v1427
    %v1437 = vsel %vm1428, %v1413, %v1397
    %v1438 = vsel %vm1428, %v1415, %v1399
    %v1439 = vsel %vm1428, %v1417, %v1401
    %v1440 = vsel %vm1428, %v1419, %v1403
    %v1441 = vsel %vm1428, %v1421, %v1405
    %v1442 = vsel %vm1428, %v1423, %v1407
    %v1443 = vsel %vm1428, %v1425, %v1409
    %v1444 = vsel %vm1428, %v1427, %v1411
    %v1445 = vmin.f32 %v1380, %v1437
    %v1446 = vmin.f32 %v1381, %v1429
    %v1447 = vmin.f32 %v1382, %v1438
    %v1448 = vmin.f32 %v1383, %v1430
    %v1449 = vmin.f32 %v1384, %v1439
    %v1450 = vmin.f32 %v1385, %v1431
    %v1451 = vmin.f32 %v1386, %v1440
    %v1452 = vmin.f32 %v1387, %v1432
    %v1453 = vmin.f32 %v1388, %v1441
    %v1454 = vmin.f32 %v1389, %v1433
    %v1455 = vmin.f32 %v1390, %v1442
    %v1456 = vmin.f32 %v1391, %v1434
    %v1457 = vmin.f32 %v1392, %v1443
    %v1458 = vmin.f32 %v1393, %v1435
    %v1459 = vmin.f32 %v1394, %v1444
    %v1460 = vmin.f32 %v1395, %v1436
    %1461 = vrot.lane.b32.xlu0 %v1445, 32
    %v1462 = vpop.permute.xlu0 %1461
    %1463 = vrot.lane.b32.xlu0 %v1447, 32
    %v1464 = vpop.permute.xlu0 %1463
    %1465 = vrot.lane.b32.xlu0 %v1449, 32
    %v1466 = vpop.permute.xlu0 %1465
    %1467 = vrot.lane.b32.xlu0 %v1451, 32
    %v1468 = vpop.permute.xlu0 %1467
    %1469 = vrot.lane.b32.xlu0 %v1453, 32
    %v1470 = vpop.permute.xlu0 %1469
    %1471 = vrot.lane.b32.xlu0 %v1455, 32
    %v1472 = vpop.permute.xlu0 %1471
    %1473 = vrot.lane.b32.xlu0 %v1457, 32
    %v1474 = vpop.permute.xlu0 %1473
    %1475 = vrot.lane.b32.xlu0 %v1459, 32
    %v1476 = vpop.permute.xlu0 %1475
    %1477 = vrot.lane.b32.xlu0 %v1446, 32
    %v1478 = vpop.permute.xlu0 %1477
    %1479 = vrot.lane.b32.xlu0 %v1448, 32
    %v1480 = vpop.permute.xlu0 %1479
    %1481 = vrot.lane.b32.xlu0 %v1450, 32
    %v1482 = vpop.permute.xlu0 %1481
    %1483 = vrot.lane.b32.xlu0 %v1452, 32
    %v1484 = vpop.permute.xlu0 %1483
    %1485 = vrot.lane.b32.xlu0 %v1454, 32
    %v1486 = vpop.permute.xlu0 %1485
    %1487 = vrot.lane.b32.xlu0 %v1456, 32
    %v1488 = vpop.permute.xlu0 %1487
    %1489 = vrot.lane.b32.xlu0 %v1458, 32
    %v1490 = vpop.permute.xlu0 %1489
    %1491 = vrot.lane.b32.xlu0 %v1460, 32
    %v1492 = vpop.permute.xlu0 %1491
    %vm1493 = vcmp.lt.s32.totalorder %v1297, 32
    %v1494 = vsel %vm1493, %v1462, %v1478
    %v1495 = vsel %vm1493, %v1464, %v1480
    %v1496 = vsel %vm1493, %v1466, %v1482
    %v1497 = vsel %vm1493, %v1468, %v1484
    %v1498 = vsel %vm1493, %v1470, %v1486
    %v1499 = vsel %vm1493, %v1472, %v1488
    %v1500 = vsel %vm1493, %v1474, %v1490
    %v1501 = vsel %vm1493, %v1476, %v1492
    %v1502 = vsel %vm1493, %v1478, %v1462
    %v1503 = vsel %vm1493, %v1480, %v1464
    %v1504 = vsel %vm1493, %v1482, %v1466
    %v1505 = vsel %vm1493, %v1484, %v1468
    %v1506 = vsel %vm1493, %v1486, %v1470
    %v1507 = vsel %vm1493, %v1488, %v1472
    %v1508 = vsel %vm1493, %v1490, %v1474
    %v1509 = vsel %vm1493, %v1492, %v1476
    %v1510 = vmin.f32 %v1445, %v1502
    %v1511 = vmin.f32 %v1446, %v1494
    %v1512 = vmin.f32 %v1447, %v1503
    %v1513 = vmin.f32 %v1448, %v1495
    %v1514 = vmin.f32 %v1449, %v1504
    %v1515 = vmin.f32 %v1450, %v1496
    %v1516 = vmin.f32 %v1451, %v1505
    %v1517 = vmin.f32 %v1452, %v1497
    %v1518 = vmin.f32 %v1453, %v1506
    %v1519 = vmin.f32 %v1454, %v1498
    %v1520 = vmin.f32 %v1455, %v1507
    %v1521 = vmin.f32 %v1456, %v1499
    %v1522 = vmin.f32 %v1457, %v1508
    %v1523 = vmin.f32 %v1458, %v1500
    %v1524 = vmin.f32 %v1459, %v1509
    %v1525 = vmin.f32 %v1460, %v1501
    %1526 = vrot.lane.b32.xlu0 %v1510, 64
    %v1527 = vpop.permute.xlu0 %1526
    %1528 = vrot.lane.b32.xlu0 %v1512, 64
    %v1529 = vpop.permute.xlu0 %1528
    %1530 = vrot.lane.b32.xlu0 %v1514, 64
    %v1531 = vpop.permute.xlu0 %1530
    %1532 = vrot.lane.b32.xlu0 %v1516, 64
    %v1533 = vpop.permute.xlu0 %1532
    %1534 = vrot.lane.b32.xlu0 %v1518, 64
    %v1535 = vpop.permute.xlu0 %1534
    %1536 = vrot.lane.b32.xlu0 %v1520, 64
    %v1537 = vpop.permute.xlu0 %1536
    %1538 = vrot.lane.b32.xlu0 %v1522, 64
    %v1539 = vpop.permute.xlu0 %1538
    %1540 = vrot.lane.b32.xlu0 %v1524, 64
    %v1541 = vpop.permute.xlu0 %1540
    %1542 = vrot.lane.b32.xlu0 %v1511, 64
    %v1543 = vpop.permute.xlu0 %1542
    %1544 = vrot.lane.b32.xlu0 %v1513, 64
    %v1545 = vpop.permute.xlu0 %1544
    %1546 = vrot.lane.b32.xlu0 %v1515, 64
    %v1547 = vpop.permute.xlu0 %1546
    %1548 = vrot.lane.b32.xlu0 %v1517, 64
    %v1549 = vpop.permute.xlu0 %1548
    %1550 = vrot.lane.b32.xlu0 %v1519, 64
    %v1551 = vpop.permute.xlu0 %1550
    %1552 = vrot.lane.b32.xlu0 %v1521, 64
    %v1553 = vpop.permute.xlu0 %1552
    %1554 = vrot.lane.b32.xlu0 %v1523, 64
    %v1555 = vpop.permute.xlu0 %1554
    %1556 = vrot.lane.b32.xlu0 %v1525, 64
    %v1557 = vpop.permute.xlu0 %1556
    %vm1558 = vcmp.lt.s32.totalorder %v1297, 64
    %v1559 = vsel %vm1558, %v1527, %v1543
    %v1560 = vsel %vm1558, %v1529, %v1545
    %v1561 = vsel %vm1558, %v1531, %v1547
    %v1562 = vsel %vm1558, %v1533, %v1549
    %v1563 = vsel %vm1558, %v1535, %v1551
    %v1564 = vsel %vm1558, %v1537, %v1553
    %v1565 = vsel %vm1558, %v1539, %v1555
    %v1566 = vsel %vm1558, %v1541, %v1557
    %v1567 = vsel %vm1558, %v1543, %v1527
    %v1568 = vsel %vm1558, %v1545, %v1529
    %v1569 = vsel %vm1558, %v1547, %v1531
    %v1570 = vsel %vm1558, %v1549, %v1533
    %v1571 = vsel %vm1558, %v1551, %v1535
    %v1572 = vsel %vm1558, %v1553, %v1537
    %v1573 = vsel %vm1558, %v1555, %v1539
    %v1574 = vsel %vm1558, %v1557, %v1541
    %v1575 = vmin.f32 %v1510, %v1567
    %v1576 = vmin.f32 %v1511, %v1559
    %v1577 = vmin.f32 %v1512, %v1568
    %v1578 = vmin.f32 %v1513, %v1560
    %v1579 = vmin.f32 %v1514, %v1569
    %v1580 = vmin.f32 %v1515, %v1561
    %v1581 = vmin.f32 %v1516, %v1570
    %v1582 = vmin.f32 %v1517, %v1562
    %v1583 = vmin.f32 %v1518, %v1571
    %v1584 = vmin.f32 %v1519, %v1563
    %v1585 = vmin.f32 %v1520, %v1572
    %v1586 = vmin.f32 %v1521, %v1564
    %v1587 = vmin.f32 %v1522, %v1573
    %v1588 = vmin.f32 %v1523, %v1565
    %v1589 = vmin.f32 %v1524, %v1574
    %v1590 = vmin.f32 %v1525, %v1566
    %v1591 = vmin.f32 %v1575, %v1576
    %v1592 = vmin.f32 %v1577, %v1578
    %v1593 = vmin.f32 %v1579, %v1580
    %v1594 = vmin.f32 %v1581, %v1582
    %v1595 = vmin.f32 %v1583, %v1584
    %v1596 = vmin.f32 %v1585, %v1586
    %v1597 = vmin.f32 %v1587, %v1588
    %v1598 = vmin.f32 %v1589, %v1590
    %v1599 = vld [vmem:[#allocation8] sm:$0x3]
    %vm1600 = vcmp.eq.f32.partialorder %v1248, %v1591
    %vm1601 = vcmp.eq.f32.partialorder %v1249, %v1591
    %vm1602 = vcmp.eq.f32.partialorder %v1250, %v1592
    %vm1603 = vcmp.eq.f32.partialorder %v1251, %v1592
    %vm1604 = vcmp.eq.f32.partialorder %v1252, %v1593
    %vm1605 = vcmp.eq.f32.partialorder %v1253, %v1593
    %vm1606 = vcmp.eq.f32.partialorder %v1254, %v1594
    %vm1607 = vcmp.eq.f32.partialorder %v1255, %v1594
    %vm1608 = vcmp.eq.f32.partialorder %v1256, %v1595
    %vm1609 = vcmp.eq.f32.partialorder %v1257, %v1595
    %vm1610 = vcmp.eq.f32.partialorder %v1258, %v1596
    %vm1611 = vcmp.eq.f32.partialorder %v1259, %v1596
    %vm1612 = vcmp.eq.f32.partialorder %v1260, %v1597
    %vm1613 = vcmp.eq.f32.partialorder %v1261, %v1597
    %vm1614 = vcmp.eq.f32.partialorder %v1262, %v1598
    %vm1615 = vcmp.eq.f32.partialorder %v1263, %v1598
    %v1616 = vperm.slane %v1599, 0
    %v1617 = vperm.slane %v1599, 1
    %v1618 = vsel %vm1600, %v1616, 64
    %v1619 = vsel %vm1601, %v1617, 64
    %v1620 = vsel %vm1602, %v1616, 64
    %v1621 = vsel %vm1603, %v1617, 64
    %v1622 = vsel %vm1604, %v1616, 64
    %v1623 = vsel %vm1605, %v1617, 64
    %v1624 = vsel %vm1606, %v1616, 64
    %v1625 = vsel %vm1607, %v1617, 64
    %v1626 = vsel %vm1608, %v1616, 64
    %v1627 = vsel %vm1609, %v1617, 64
    %v1628 = vsel %vm1610, %v1616, 64
    %v1629 = vsel %vm1611, %v1617, 64
    %v1630 = vsel %vm1612, %v1616, 64
    %v1631 = vsel %vm1613, %v1617, 64
    %v1632 = vsel %vm1614, %v1616, 64
    %v1633 = vsel %vm1615, %v1617, 64
    %1634 = vrot.lane.b32.xlu0 %v1618, 4
    %v1635 = vpop.permute.xlu0 %1634
    %1636 = vrot.lane.b32.xlu0 %v1620, 4
    %v1637 = vpop.permute.xlu0 %1636
    %1638 = vrot.lane.b32.xlu0 %v1622, 4
    %v1639 = vpop.permute.xlu0 %1638
    %1640 = vrot.lane.b32.xlu0 %v1624, 4
    %v1641 = vpop.permute.xlu0 %1640
    %1642 = vrot.lane.b32.xlu0 %v1626, 4
    %v1643 = vpop.permute.xlu0 %1642
    %1644 = vrot.lane.b32.xlu0 %v1628, 4
    %v1645 = vpop.permute.xlu0 %1644
    %1646 = vrot.lane.b32.xlu0 %v1630, 4
    %v1647 = vpop.permute.xlu0 %1646
    %1648 = vrot.lane.b32.xlu0 %v1632, 4
    %v1649 = vpop.permute.xlu0 %1648
    %1650 = vrot.lane.b32.xlu0 %v1619, 4
    %v1651 = vpop.permute.xlu0 %1650
    %1652 = vrot.lane.b32.xlu0 %v1621, 4
    %v1653 = vpop.permute.xlu0 %1652
    %1654 = vrot.lane.b32.xlu0 %v1623, 4
    %v1655 = vpop.permute.xlu0 %1654
    %1656 = vrot.lane.b32.xlu0 %v1625, 4
    %v1657 = vpop.permute.xlu0 %1656
    %1658 = vrot.lane.b32.xlu0 %v1627, 4
    %v1659 = vpop.permute.xlu0 %1658
    %1660 = vrot.lane.b32.xlu0 %v1629, 4
    %v1661 = vpop.permute.xlu0 %1660
    %1662 = vrot.lane.b32.xlu0 %v1631, 4
    %v1663 = vpop.permute.xlu0 %1662
    %1664 = vrot.lane.b32.xlu0 %v1633, 4
    %v1665 = vpop.permute.xlu0 %1664
    %v1666 = vsel %vm1298, %v1635, %v1651
    %v1667 = vsel %vm1298, %v1637, %v1653
    %v1668 = vsel %vm1298, %v1639, %v1655
    %v1669 = vsel %vm1298, %v1641, %v1657
    %v1670 = vsel %vm1298, %v1643, %v1659
    %v1671 = vsel %vm1298, %v1645, %v1661
    %v1672 = vsel %vm1298, %v1647, %v1663
    %v1673 = vsel %vm1298, %v1649, %v1665
    %v1674 = vsel %vm1298, %v1651, %v1635
    %v1675 = vsel %vm1298, %v1653, %v1637
    %v1676 = vsel %vm1298, %v1655, %v1639
    %v1677 = vsel %vm1298, %v1657, %v1641
    %v1678 = vsel %vm1298, %v1659, %v1643
    %v1679 = vsel %vm1298, %v1661, %v1645
    %v1680 = vsel %vm1298, %v1663, %v1647
    %v1681 = vsel %vm1298, %v1665, %v1649
    %vm1682 = vcmp.lt.s32.totalorder %v1618, %v1674
    %v1683 = vsel %vm1682, %v1618, %v1674
    %vm1684 = vcmp.lt.s32.totalorder %v1619, %v1666
    %v1685 = vsel %vm1684, %v1619, %v1666
    %vm1686 = vcmp.lt.s32.totalorder %v1620, %v1675
    %v1687 = vsel %vm1686, %v1620, %v1675
    %vm1688 = vcmp.lt.s32.totalorder %v1621, %v1667
    %v1689 = vsel %vm1688, %v1621, %v1667
    %vm1690 = vcmp.lt.s32.totalorder %v1622, %v1676
    %v1691 = vsel %vm1690, %v1622, %v1676
    %vm1692 = vcmp.lt.s32.totalorder %v1623, %v1668
    %v1693 = vsel %vm1692, %v1623, %v1668
    %vm1694 = vcmp.lt.s32.totalorder %v1624, %v1677
    %v1695 = vsel %vm1694, %v1624, %v1677
    %vm1696 = vcmp.lt.s32.totalorder %v1625, %v1669
    %v1697 = vsel %vm1696, %v1625, %v1669
    %vm1698 = vcmp.lt.s32.totalorder %v1626, %v1678
    %v1699 = vsel %vm1698, %v1626, %v1678
    %vm1700 = vcmp.lt.s32.totalorder %v1627, %v1670
    %v1701 = vsel %vm1700, %v1627, %v1670
    %vm1702 = vcmp.lt.s32.totalorder %v1628, %v1679
    %v1703 = vsel %vm1702, %v1628, %v1679
    %vm1704 = vcmp.lt.s32.totalorder %v1629, %v1671
    %v1705 = vsel %vm1704, %v1629, %v1671
    %vm1706 = vcmp.lt.s32.totalorder %v1630, %v1680
    %v1707 = vsel %vm1706, %v1630, %v1680
    %vm1708 = vcmp.lt.s32.totalorder %v1631, %v1672
    %v1709 = vsel %vm1708, %v1631, %v1672
    %vm1710 = vcmp.lt.s32.totalorder %v1632, %v1681
    %v1711 = vsel %vm1710, %v1632, %v1681
    %vm1712 = vcmp.lt.s32.totalorder %v1633, %v1673
    %v1713 = vsel %vm1712, %v1633, %v1673
    %1714 = vrot.lane.b32.xlu0 %v1683, 8
    %v1715 = vpop.permute.xlu0 %1714
    %1716 = vrot.lane.b32.xlu0 %v1687, 8
    %v1717 = vpop.permute.xlu0 %1716
    %1718 = vrot.lane.b32.xlu0 %v1691, 8
    %v1719 = vpop.permute.xlu0 %1718
    %1720 = vrot.lane.b32.xlu0 %v1695, 8
    %v1721 = vpop.permute.xlu0 %1720
    %1722 = vrot.lane.b32.xlu0 %v1699, 8
    %v1723 = vpop.permute.xlu0 %1722
    %1724 = vrot.lane.b32.xlu0 %v1703, 8
    %v1725 = vpop.permute.xlu0 %1724
    %1726 = vrot.lane.b32.xlu0 %v1707, 8
    %v1727 = vpop.permute.xlu0 %1726
    %1728 = vrot.lane.b32.xlu0 %v1711, 8
    %v1729 = vpop.permute.xlu0 %1728
    %1730 = vrot.lane.b32.xlu0 %v1685, 8
    %v1731 = vpop.permute.xlu0 %1730
    %1732 = vrot.lane.b32.xlu0 %v1689, 8
    %v1733 = vpop.permute.xlu0 %1732
    %1734 = vrot.lane.b32.xlu0 %v1693, 8
    %v1735 = vpop.permute.xlu0 %1734
    %1736 = vrot.lane.b32.xlu0 %v1697, 8
    %v1737 = vpop.permute.xlu0 %1736
    %1738 = vrot.lane.b32.xlu0 %v1701, 8
    %v1739 = vpop.permute.xlu0 %1738
    %1740 = vrot.lane.b32.xlu0 %v1705, 8
    %v1741 = vpop.permute.xlu0 %1740
    %1742 = vrot.lane.b32.xlu0 %v1709, 8
    %v1743 = vpop.permute.xlu0 %1742
    %1744 = vrot.lane.b32.xlu0 %v1713, 8
    %v1745 = vpop.permute.xlu0 %1744
    %v1746 = vsel %vm1363, %v1715, %v1731
    %v1747 = vsel %vm1363, %v1717, %v1733
    %v1748 = vsel %vm1363, %v1719, %v1735
    %v1749 = vsel %vm1363, %v1721, %v1737
    %v1750 = vsel %vm1363, %v1723, %v1739
    %v1751 = vsel %vm1363, %v1725, %v1741
    %v1752 = vsel %vm1363, %v1727, %v1743
    %v1753 = vsel %vm1363, %v1729, %v1745
    %v1754 = vsel %vm1363, %v1731, %v1715
    %v1755 = vsel %vm1363, %v1733, %v1717
    %v1756 = vsel %vm1363, %v1735, %v1719
    %v1757 = vsel %vm1363, %v1737, %v1721
    %v1758 = vsel %vm1363, %v1739, %v1723
    %v1759 = vsel %vm1363, %v1741, %v1725
    %v1760 = vsel %vm1363, %v1743, %v1727
    %v1761 = vsel %vm1363, %v1745, %v1729
    %vm1762 = vcmp.lt.s32.totalorder %v1683, %v1754
    %v1763 = vsel %vm1762, %v1683, %v1754
    %vm1764 = vcmp.lt.s32.totalorder %v1685, %v1746
    %v1765 = vsel %vm1764, %v1685, %v1746
    %vm1766 = vcmp.lt.s32.totalorder %v1687, %v1755
    %v1767 = vsel %vm1766, %v1687, %v1755
    %vm1768 = vcmp.lt.s32.totalorder %v1689, %v1747
    %v1769 = vsel %vm1768, %v1689, %v1747
    %vm1770 = vcmp.lt.s32.totalorder %v1691, %v1756
    %v1771 = vsel %vm1770, %v1691, %v1756
    %vm1772 = vcmp.lt.s32.totalorder %v1693, %v1748
    %v1773 = vsel %vm1772, %v1693, %v1748
    %vm1774 = vcmp.lt.s32.totalorder %v1695, %v1757
    %v1775 = vsel %vm1774, %v1695, %v1757
    %vm1776 = vcmp.lt.s32.totalorder %v1697, %v1749
    %v1777 = vsel %vm1776, %v1697, %v1749
    %vm1778 = vcmp.lt.s32.totalorder %v1699, %v1758
    %v1779 = vsel %vm1778, %v1699, %v1758
    %vm1780 = vcmp.lt.s32.totalorder %v1701, %v1750
    %v1781 = vsel %vm1780, %v1701, %v1750
    %vm1782 = vcmp.lt.s32.totalorder %v1703, %v1759
    %v1783 = vsel %vm1782, %v1703, %v1759
    %vm1784 = vcmp.lt.s32.totalorder %v1705, %v1751
    %v1785 = vsel %vm1784, %v1705, %v1751
    %vm1786 = vcmp.lt.s32.totalorder %v1707, %v1760
    %v1787 = vsel %vm1786, %v1707, %v1760
    %vm1788 = vcmp.lt.s32.totalorder %v1709, %v1752
    %v1789 = vsel %vm1788, %v1709, %v1752
    %vm1790 = vcmp.lt.s32.totalorder %v1711, %v1761
    %v1791 = vsel %vm1790, %v1711, %v1761
    %vm1792 = vcmp.lt.s32.totalorder %v1713, %v1753
    %v1793 = vsel %vm1792, %v1713, %v1753
    %1794 = vrot.lane.b32.xlu0 %v1763, 16
    %v1795 = vpop.permute.xlu0 %1794
    %1796 = vrot.lane.b32.xlu0 %v1767, 16
    %v1797 = vpop.permute.xlu0 %1796
    %1798 = vrot.lane.b32.xlu0 %v1771, 16
    %v1799 = vpop.permute.xlu0 %1798
    %1800 = vrot.lane.b32.xlu0 %v1775, 16
    %v1801 = vpop.permute.xlu0 %1800
    %1802 = vrot.lane.b32.xlu0 %v1779, 16
    %v1803 = vpop.permute.xlu0 %1802
    %1804 = vrot.lane.b32.xlu0 %v1783, 16
    %v1805 = vpop.permute.xlu0 %1804
    %1806 = vrot.lane.b32.xlu0 %v1787, 16
    %v1807 = vpop.permute.xlu0 %1806
    %1808 = vrot.lane.b32.xlu0 %v1791, 16
    %v1809 = vpop.permute.xlu0 %1808
    %1810 = vrot.lane.b32.xlu0 %v1765, 16
    %v1811 = vpop.permute.xlu0 %1810
    %1812 = vrot.lane.b32.xlu0 %v1769, 16
    %v1813 = vpop.permute.xlu0 %1812
    %1814 = vrot.lane.b32.xlu0 %v1773, 16
    %v1815 = vpop.permute.xlu0 %1814
    %1816 = vrot.lane.b32.xlu0 %v1777, 16
    %v1817 = vpop.permute.xlu0 %1816
    %1818 = vrot.lane.b32.xlu0 %v1781, 16
    %v1819 = vpop.permute.xlu0 %1818
    %1820 = vrot.lane.b32.xlu0 %v1785, 16
    %v1821 = vpop.permute.xlu0 %1820
    %1822 = vrot.lane.b32.xlu0 %v1789, 16
    %v1823 = vpop.permute.xlu0 %1822
    %1824 = vrot.lane.b32.xlu0 %v1793, 16
    %v1825 = vpop.permute.xlu0 %1824
    %v1826 = vsel %vm1428, %v1795, %v1811
    %v1827 = vsel %vm1428, %v1797, %v1813
    %v1828 = vsel %vm1428, %v1799, %v1815
    %v1829 = vsel %vm1428, %v1801, %v1817
    %v1830 = vsel %vm1428, %v1803, %v1819
    %v1831 = vsel %vm1428, %v1805, %v1821
    %v1832 = vsel %vm1428, %v1807, %v1823
    %v1833 = vsel %vm1428, %v1809, %v1825
    %v1834 = vsel %vm1428, %v1811, %v1795
    %v1835 = vsel %vm1428, %v1813, %v1797
    %v1836 = vsel %vm1428, %v1815, %v1799
    %v1837 = vsel %vm1428, %v1817, %v1801
    %v1838 = vsel %vm1428, %v1819, %v1803
    %v1839 = vsel %vm1428, %v1821, %v1805
    %v1840 = vsel %vm1428, %v1823, %v1807
    %v1841 = vsel %vm1428, %v1825, %v1809
    %vm1842 = vcmp.lt.s32.totalorder %v1763, %v1834
    %v1843 = vsel %vm1842, %v1763, %v1834
    %vm1844 = vcmp.lt.s32.totalorder %v1765, %v1826
    %v1845 = vsel %vm1844, %v1765, %v1826
    %vm1846 = vcmp.lt.s32.totalorder %v1767, %v1835
    %v1847 = vsel %vm1846, %v1767, %v1835
    %vm1848 = vcmp.lt.s32.totalorder %v1769, %v1827
    %v1849 = vsel %vm1848, %v1769, %v1827
    %vm1850 = vcmp.lt.s32.totalorder %v1771, %v1836
    %v1851 = vsel %vm1850, %v1771, %v1836
    %vm1852 = vcmp.lt.s32.totalorder %v1773, %v1828
    %v1853 = vsel %vm1852, %v1773, %v1828
    %vm1854 = vcmp.lt.s32.totalorder %v1775, %v1837
    %v1855 = vsel %vm1854, %v1775, %v1837
    %vm1856 = vcmp.lt.s32.totalorder %v1777, %v1829
    %v1857 = vsel %vm1856, %v1777, %v1829
    %vm1858 = vcmp.lt.s32.totalorder %v1779, %v1838
    %v1859 = vsel %vm1858, %v1779, %v1838
    %vm1860 = vcmp.lt.s32.totalorder %v1781, %v1830
    %v1861 = vsel %vm1860, %v1781, %v1830
    %vm1862 = vcmp.lt.s32.totalorder %v1783, %v1839
    %v1863 = vsel %vm1862, %v1783, %v1839
    %vm1864 = vcmp.lt.s32.totalorder %v1785, %v1831
    %v1865 = vsel %vm1864, %v1785, %v1831
    %vm1866 = vcmp.lt.s32.totalorder %v1787, %v1840
    %v1867 = vsel %vm1866, %v1787, %v1840
    %vm1868 = vcmp.lt.s32.totalorder %v1789, %v1832
    %v1869 = vsel %vm1868, %v1789, %v1832
    %vm1870 = vcmp.lt.s32.totalorder %v1791, %v1841
    %v1871 = vsel %vm1870, %v1791, %v1841
    %vm1872 = vcmp.lt.s32.totalorder %v1793, %v1833
    %v1873 = vsel %vm1872, %v1793, %v1833
    %1874 = vrot.lane.b32.xlu0 %v1843, 32
    %v1875 = vpop.permute.xlu0 %1874
    %1876 = vrot.lane.b32.xlu0 %v1847, 32
    %v1877 = vpop.permute.xlu0 %1876
    %1878 = vrot.lane.b32.xlu0 %v1851, 32
    %v1879 = vpop.permute.xlu0 %1878
    %1880 = vrot.lane.b32.xlu0 %v1855, 32
    %v1881 = vpop.permute.xlu0 %1880
    %1882 = vrot.lane.b32.xlu0 %v1859, 32
    %v1883 = vpop.permute.xlu0 %1882
    %1884 = vrot.lane.b32.xlu0 %v1863, 32
    %v1885 = vpop.permute.xlu0 %1884
    %1886 = vrot.lane.b32.xlu0 %v1867, 32
    %v1887 = vpop.permute.xlu0 %1886
    %1888 = vrot.lane.b32.xlu0 %v1871, 32
    %v1889 = vpop.permute.xlu0 %1888
    %1890 = vrot.lane.b32.xlu0 %v1845, 32
    %v1891 = vpop.permute.xlu0 %1890
    %1892 = vrot.lane.b32.xlu0 %v1849, 32
    %v1893 = vpop.permute.xlu0 %1892
    %1894 = vrot.lane.b32.xlu0 %v1853, 32
    %v1895 = vpop.permute.xlu0 %1894
    %1896 = vrot.lane.b32.xlu0 %v1857, 32
    %v1897 = vpop.permute.xlu0 %1896
    %1898 = vrot.lane.b32.xlu0 %v1861, 32
    %v1899 = vpop.permute.xlu0 %1898
    %1900 = vrot.lane.b32.xlu0 %v1865, 32
    %v1901 = vpop.permute.xlu0 %1900
    %1902 = vrot.lane.b32.xlu0 %v1869, 32
    %v1903 = vpop.permute.xlu0 %1902
    %1904 = vrot.lane.b32.xlu0 %v1873, 32
    %v1905 = vpop.permute.xlu0 %1904
    %v1906 = vsel %vm1493, %v1875, %v1891
    %v1907 = vsel %vm1493, %v1877, %v1893
    %v1908 = vsel %vm1493, %v1879, %v1895
    %v1909 = vsel %vm1493, %v1881, %v1897
    %v1910 = vsel %vm1493, %v1883, %v1899
    %v1911 = vsel %vm1493, %v1885, %v1901
    %v1912 = vsel %vm1493, %v1887, %v1903
    %v1913 = vsel %vm1493, %v1889, %v1905
    %v1914 = vsel %vm1493, %v1891, %v1875
    %v1915 = vsel %vm1493, %v1893, %v1877
    %v1916 = vsel %vm1493, %v1895, %v1879
    %v1917 = vsel %vm1493, %v1897, %v1881
    %v1918 = vsel %vm1493, %v1899, %v1883
    %v1919 = vsel %vm1493, %v1901, %v1885
    %v1920 = vsel %vm1493, %v1903, %v1887
    %v1921 = vsel %vm1493, %v1905, %v1889
    %vm1922 = vcmp.lt.s32.totalorder %v1843, %v1914
    %v1923 = vsel %vm1922, %v1843, %v1914
    %vm1924 = vcmp.lt.s32.totalorder %v1845, %v1906
    %v1925 = vsel %vm1924, %v1845, %v1906
    %vm1926 = vcmp.lt.s32.totalorder %v1847, %v1915
    %v1927 = vsel %vm1926, %v1847, %v1915
    %vm1928 = vcmp.lt.s32.totalorder %v1849, %v1907
    %v1929 = vsel %vm1928, %v1849, %v1907
    %vm1930 = vcmp.lt.s32.totalorder %v1851, %v1916
    %v1931 = vsel %vm1930, %v1851, %v1916
    %vm1932 = vcmp.lt.s32.totalorder %v1853, %v1908
    %v1933 = vsel %vm1932, %v1853, %v1908
    %vm1934 = vcmp.lt.s32.totalorder %v1855, %v1917
    %v1935 = vsel %vm1934, %v1855, %v1917
    %vm1936 = vcmp.lt.s32.totalorder %v1857, %v1909
    %v1937 = vsel %vm1936, %v1857, %v1909
    %vm1938 = vcmp.lt.s32.totalorder %v1859, %v1918
    %v1939 = vsel %vm1938, %v1859, %v1918
    %vm1940 = vcmp.lt.s32.totalorder %v1861, %v1910
    %v1941 = vsel %vm1940, %v1861, %v1910
    %vm1942 = vcmp.lt.s32.totalorder %v1863, %v1919
    %v1943 = vsel %vm1942, %v1863, %v1919
    %vm1944 = vcmp.lt.s32.totalorder %v1865, %v1911
    %v1945 = vsel %vm1944, %v1865, %v1911
    %vm1946 = vcmp.lt.s32.totalorder %v1867, %v1920
    %v1947 = vsel %vm1946, %v1867, %v1920
    %vm1948 = vcmp.lt.s32.totalorder %v1869, %v1912
    %v1949 = vsel %vm1948, %v1869, %v1912
    %vm1950 = vcmp.lt.s32.totalorder %v1871, %v1921
    %v1951 = vsel %vm1950, %v1871, %v1921
    %vm1952 = vcmp.lt.s32.totalorder %v1873, %v1913
    %v1953 = vsel %vm1952, %v1873, %v1913
    %1954 = vrot.lane.b32.xlu0 %v1923, 64
    %v1955 = vpop.permute.xlu0 %1954
    %1956 = vrot.lane.b32.xlu0 %v1927, 64
    %v1957 = vpop.permute.xlu0 %1956
    %1958 = vrot.lane.b32.xlu0 %v1931, 64
    %v1959 = vpop.permute.xlu0 %1958
    %1960 = vrot.lane.b32.xlu0 %v1935, 64
    %v1961 = vpop.permute.xlu0 %1960
    %1962 = vrot.lane.b32.xlu0 %v1939, 64
    %v1963 = vpop.permute.xlu0 %1962
    %1964 = vrot.lane.b32.xlu0 %v1943, 64
    %v1965 = vpop.permute.xlu0 %1964
    %1966 = vrot.lane.b32.xlu0 %v1947, 64
    %v1967 = vpop.permute.xlu0 %1966
    %1968 = vrot.lane.b32.xlu0 %v1951, 64
    %v1969 = vpop.permute.xlu0 %1968
    %1970 = vrot.lane.b32.xlu0 %v1925, 64
    %v1971 = vpop.permute.xlu0 %1970
    %1972 = vrot.lane.b32.xlu0 %v1929, 64
    %v1973 = vpop.permute.xlu0 %1972
    %1974 = vrot.lane.b32.xlu0 %v1933, 64
    %v1975 = vpop.permute.xlu0 %1974
    %1976 = vrot.lane.b32.xlu0 %v1937, 64
    %v1977 = vpop.permute.xlu0 %1976
    %1978 = vrot.lane.b32.xlu0 %v1941, 64
    %v1979 = vpop.permute.xlu0 %1978
    %1980 = vrot.lane.b32.xlu0 %v1945, 64
    %v1981 = vpop.permute.xlu0 %1980
    %1982 = vrot.lane.b32.xlu0 %v1949, 64
    %v1983 = vpop.permute.xlu0 %1982
    %1984 = vrot.lane.b32.xlu0 %v1953, 64
    %v1985 = vpop.permute.xlu0 %1984
    %v1986 = vsel %vm1558, %v1955, %v1971
    %v1987 = vsel %vm1558, %v1957, %v1973
    %v1988 = vsel %vm1558, %v1959, %v1975
    %v1989 = vsel %vm1558, %v1961, %v1977
    %v1990 = vsel %vm1558, %v1963, %v1979
    %v1991 = vsel %vm1558, %v1965, %v1981
    %v1992 = vsel %vm1558, %v1967, %v1983
    %v1993 = vsel %vm1558, %v1969, %v1985
    %v1994 = vsel %vm1558, %v1971, %v1955
    %v1995 = vsel %vm1558, %v1973, %v1957
    %v1996 = vsel %vm1558, %v1975, %v1959
    %v1997 = vsel %vm1558, %v1977, %v1961
    %v1998 = vsel %vm1558, %v1979, %v1963
    %v1999 = vsel %vm1558, %v1981, %v1965
    %v2000 = vsel %vm1558, %v1983, %v1967
    %v2001 = vsel %vm1558, %v1985, %v1969
    %vm2002 = vcmp.lt.s32.totalorder %v1923, %v1994
    %v2003 = vsel %vm2002, %v1923, %v1994
    %vm2004 = vcmp.lt.s32.totalorder %v1925, %v1986
    %v2005 = vsel %vm2004, %v1925, %v1986
    %vm2006 = vcmp.lt.s32.totalorder %v1927, %v1995
    %v2007 = vsel %vm2006, %v1927, %v1995
    %vm2008 = vcmp.lt.s32.totalorder %v1929, %v1987
    %v2009 = vsel %vm2008, %v1929, %v1987
    %vm2010 = vcmp.lt.s32.totalorder %v1931, %v1996
    %v2011 = vsel %vm2010, %v1931, %v1996
    %vm2012 = vcmp.lt.s32.totalorder %v1933, %v1988
    %v2013 = vsel %vm2012, %v1933, %v1988
    %vm2014 = vcmp.lt.s32.totalorder %v1935, %v1997
    %v2015 = vsel %vm2014, %v1935, %v1997
    %vm2016 = vcmp.lt.s32.totalorder %v1937, %v1989
    %v2017 = vsel %vm2016, %v1937, %v1989
    %vm2018 = vcmp.lt.s32.totalorder %v1939, %v1998
    %v2019 = vsel %vm2018, %v1939, %v1998
    %vm2020 = vcmp.lt.s32.totalorder %v1941, %v1990
    %v2021 = vsel %vm2020, %v1941, %v1990
    %vm2022 = vcmp.lt.s32.totalorder %v1943, %v1999
    %v2023 = vsel %vm2022, %v1943, %v1999
    %vm2024 = vcmp.lt.s32.totalorder %v1945, %v1991
    %v2025 = vsel %vm2024, %v1945, %v1991
    %vm2026 = vcmp.lt.s32.totalorder %v1947, %v2000
    %v2027 = vsel %vm2026, %v1947, %v2000
    %vm2028 = vcmp.lt.s32.totalorder %v1949, %v1992
    %v2029 = vsel %vm2028, %v1949, %v1992
    %vm2030 = vcmp.lt.s32.totalorder %v1951, %v2001
    %v2031 = vsel %vm2030, %v1951, %v2001
    %vm2032 = vcmp.lt.s32.totalorder %v1953, %v1993
    %v2033 = vsel %vm2032, %v1953, %v1993
    %vm2034 = vcmp.lt.s32.totalorder %v2003, %v2005
    %v2035 = vsel %vm2034, %v2003, %v2005
    %vm2036 = vcmp.lt.s32.totalorder %v2007, %v2009
    %v2037 = vsel %vm2036, %v2007, %v2009
    %vm2038 = vcmp.lt.s32.totalorder %v2011, %v2013
    %v2039 = vsel %vm2038, %v2011, %v2013
    %vm2040 = vcmp.lt.s32.totalorder %v2015, %v2017
    %v2041 = vsel %vm2040, %v2015, %v2017
    %vm2042 = vcmp.lt.s32.totalorder %v2019, %v2021
    %v2043 = vsel %vm2042, %v2019, %v2021
    %vm2044 = vcmp.lt.s32.totalorder %v2023, %v2025
    %v2045 = vsel %vm2044, %v2023, %v2025
    %vm2046 = vcmp.lt.s32.totalorder %v2027, %v2029
    %v2047 = vsel %vm2046, %v2027, %v2029
    %vm2048 = vcmp.lt.s32.totalorder %v2031, %v2033
    %v2049 = vsel %vm2048, %v2031, %v2033
    %vm2050 = vcmp.eq.s32.totalorder %v1616, %v2035
    %vm2051 = vcmp.eq.s32.totalorder %v1617, %v2035
    %vm2052 = vcmp.eq.s32.totalorder %v1616, %v2037
    %vm2053 = vcmp.eq.s32.totalorder %v1617, %v2037
    %vm2054 = vcmp.eq.s32.totalorder %v1616, %v2039
    %vm2055 = vcmp.eq.s32.totalorder %v1617, %v2039
    %vm2056 = vcmp.eq.s32.totalorder %v1616, %v2041
    %vm2057 = vcmp.eq.s32.totalorder %v1617, %v2041
    %vm2058 = vcmp.eq.s32.totalorder %v1616, %v2043
    %vm2059 = vcmp.eq.s32.totalorder %v1617, %v2043
    %vm2060 = vcmp.eq.s32.totalorder %v1616, %v2045
    %vm2061 = vcmp.eq.s32.totalorder %v1617, %v2045
    %vm2062 = vcmp.eq.s32.totalorder %v1616, %v2047
    %vm2063 = vcmp.eq.s32.totalorder %v1617, %v2047
    %vm2064 = vcmp.eq.s32.totalorder %v1616, %v2049
    %vm2065 = vcmp.eq.s32.totalorder %v1617, %v2049
    %v2066 = vsel %vm2050, 1, 0
    %v2067 = vsel %vm2051, 1, 0
    %v2068 = vsel %vm2052, 1, 0
    %v2069 = vsel %vm2053, 1, 0
    %v2070 = vsel %vm2054, 1, 0
    %v2071 = vsel %vm2055, 1, 0
    %v2072 = vsel %vm2056, 1, 0
    %v2073 = vsel %vm2057, 1, 0
    %v2074 = vsel %vm2058, 1, 0
    %v2075 = vsel %vm2059, 1, 0
    %v2076 = vsel %vm2060, 1, 0
    %v2077 = vsel %vm2061, 1, 0
    %v2078 = vsel %vm2062, 1, 0
    %v2079 = vsel %vm2063, 1, 0
    %v2080 = vsel %vm2064, 1, 0
    %v2081 = vsel %vm2065, 1, 0
    %v2082 = vcvt.s32.f32 %v2066
    %v2083 = vcvt.s32.f32 %v2067
    %v2084 = vcvt.s32.f32 %v2068
    %v2085 = vcvt.s32.f32 %v2069
    %v2086 = vcvt.s32.f32 %v2070
    %v2087 = vcvt.s32.f32 %v2071
    %v2088 = vcvt.s32.f32 %v2072
    %v2089 = vcvt.s32.f32 %v2073
    %v2090 = vcvt.s32.f32 %v2074
    %v2091 = vcvt.s32.f32 %v2075
    %v2092 = vcvt.s32.f32 %v2076
    %v2093 = vcvt.s32.f32 %v2077
    %v2094 = vcvt.s32.f32 %v2078
    %v2095 = vcvt.s32.f32 %v2079
    %v2096 = vcvt.s32.f32 %v2080
    %v2097 = vcvt.s32.f32 %v2081
    %v2098 = vld [vmem:[#allocation7] sm:$0xff]
    %v2099 = vld [vmem:[#allocation7 + $0x8] sm:$0xff]
    %v2100 = vld [vmem:[#allocation7 + $0x10] sm:$0xff]
    %v2101 = vld [vmem:[#allocation7 + $0x18] sm:$0xff]
    %v2102 = vld [vmem:[#allocation7 + $0x20] sm:$0xff]
    %v2103 = vld [vmem:[#allocation7 + $0x28] sm:$0xff]
    %v2104 = vld [vmem:[#allocation7 + $0x30] sm:$0xff]
    %v2105 = vld [vmem:[#allocation7 + $0x38] sm:$0xff]
    %v2106 = vld [vmem:[#allocation7 + $0x40] sm:$0xff]
    %v2107 = vld [vmem:[#allocation7 + $0x48] sm:$0xff]
    %v2108 = vld [vmem:[#allocation7 + $0x50] sm:$0xff]
    %v2109 = vld [vmem:[#allocation7 + $0x58] sm:$0xff]
    %v2110 = vld [vmem:[#allocation7 + $0x60] sm:$0xff]
    %v2111 = vld [vmem:[#allocation7 + $0x68] sm:$0xff]
    %v2112 = vld [vmem:[#allocation7 + $0x70] sm:$0xff]
    %v2113 = vld [vmem:[#allocation7 + $0x78] sm:$0xff]
    %v2114 = vld [vmem:[#allocation7 + $0x80] sm:$0xff]
    %v2115 = vld [vmem:[#allocation7 + $0x88] sm:$0xff]
    %v2116 = vld [vmem:[#allocation7 + $0x90] sm:$0xff]
    %v2117 = vld [vmem:[#allocation7 + $0x98] sm:$0xff]
    %v2118 = vld [vmem:[#allocation7 + $0xa0] sm:$0xff]
    %v2119 = vld [vmem:[#allocation7 + $0xa8] sm:$0xff]
    %v2120 = vld [vmem:[#allocation7 + $0xb0] sm:$0xff]
    %v2121 = vld [vmem:[#allocation7 + $0xb8] sm:$0xff]
    %v2122 = vld [vmem:[#allocation7 + $0xc0] sm:$0xff]
    %v2123 = vld [vmem:[#allocation7 + $0xc8] sm:$0xff]
    %v2124 = vld [vmem:[#allocation7 + $0xd0] sm:$0xff]
    %v2125 = vld [vmem:[#allocation7 + $0xd8] sm:$0xff]
    %v2126 = vld [vmem:[#allocation7 + $0xe0] sm:$0xff]
    %v2127 = vld [vmem:[#allocation7 + $0xe8] sm:$0xff]
    %v2128 = vld [vmem:[#allocation7 + $0xf0] sm:$0xff]
    %v2129 = vld [vmem:[#allocation7 + $0xf8] sm:$0xff]
    %v2130 = vand.u32 %v2113, 4294901760
    %2131 = vmatpush.msra.mxu0 %v2130
    %v2132 = vand.u32 %v2112, 4294901760
    %2133 = vmatpush.msra.mxu0 %v2132
    %v2134 = vand.u32 %v2111, 4294901760
    %2135 = vmatpush.msra.mxu0 %v2134
    %v2136 = vand.u32 %v2110, 4294901760
    %2137 = vmatpush.msra.mxu0 %v2136
    %v2138 = vand.u32 %v2109, 4294901760
    %2139 = vmatpush.msra.mxu0 %v2138
    %v2140 = vand.u32 %v2108, 4294901760
    %2141 = vmatpush.msra.mxu0 %v2140
    %v2142 = vand.u32 %v2107, 4294901760
    %2143 = vmatpush.msra.mxu0 %v2142
    %v2144 = vand.u32 %v2106, 4294901760
    %2145 = vmatpush.msra.mxu0 %v2144
    %v2146 = vand.u32 %v2105, 4294901760
    %2147 = vmatpush.msra.mxu0 %v2146
    %v2148 = vand.u32 %v2104, 4294901760
    %2149 = vmatpush.msra.mxu0 %v2148
    %v2150 = vand.u32 %v2103, 4294901760
    %2151 = vmatpush.msra.mxu0 %v2150
    %v2152 = vand.u32 %v2102, 4294901760
    %2153 = vmatpush.msra.mxu0 %v2152
    %v2154 = vand.u32 %v2101, 4294901760
    %2155 = vmatpush.msra.mxu0 %v2154
    %v2156 = vand.u32 %v2100, 4294901760
    %2157 = vmatpush.msra.mxu0 %v2156
    %v2158 = vand.u32 %v2099, 4294901760
    %2159 = vmatpush.msra.mxu0 %v2158
    %v2160 = vand.u32 %v2098, 4294901760
    %2161 = vmatpush.msra.mxu0 %v2160
    %v2162 = vand.u32 %v2082, 4294901760
    %v2163 = vsub.f32 %v2082, %v2162
    %v2164 = vand.u32 %v2163, 4294901760
    %v2165 = vsub.f32 %v2163, %v2164
    %v2166 = vand.u32 %v2165, 4294901760
    %2167 = vmatmul.f32.gmra.mxu0 %v2166
    %v2168 = vpop.f32.mrf.mxu0
    %v2169 = vadd.f32 0.0, %v2168
    %v2170 = vand.u32 %v2084, 4294901760
    %v2171 = vsub.f32 %v2084, %v2170
    %v2172 = vand.u32 %v2171, 4294901760
    %v2173 = vsub.f32 %v2171, %v2172
    %v2174 = vand.u32 %v2173, 4294901760
    %2175 = vmatmul.f32.gmra.mxu0 %v2174
    %v2176 = vpop.f32.mrf.mxu0
    %v2177 = vadd.f32 0.0, %v2176
    %v2178 = vand.u32 %v2086, 4294901760
    %v2179 = vsub.f32 %v2086, %v2178
    %v2180 = vand.u32 %v2179, 4294901760
    %v2181 = vsub.f32 %v2179, %v2180
    %v2182 = vand.u32 %v2181, 4294901760
    %2183 = vmatmul.f32.gmra.mxu0 %v2182
    %v2184 = vpop.f32.mrf.mxu0
    %v2185 = vadd.f32 0.0, %v2184
    %v2186 = vand.u32 %v2088, 4294901760
    %v2187 = vsub.f32 %v2088, %v2186
    %v2188 = vand.u32 %v2187, 4294901760
    %v2189 = vsub.f32 %v2187, %v2188
    %v2190 = vand.u32 %v2189, 4294901760
    %2191 = vmatmul.f32.gmra.mxu0 %v2190
    %v2192 = vpop.f32.mrf.mxu0
    %v2193 = vadd.f32 0.0, %v2192
    %v2194 = vand.u32 %v2090, 4294901760
    %v2195 = vsub.f32 %v2090, %v2194
    %v2196 = vand.u32 %v2195, 4294901760
    %v2197 = vsub.f32 %v2195, %v2196
    %v2198 = vand.u32 %v2197, 4294901760
    %2199 = vmatmul.f32.gmra.mxu0 %v2198
    %v2200 = vpop.f32.mrf.mxu0
    %v2201 = vadd.f32 0.0, %v2200
    %v2202 = vand.u32 %v2092, 4294901760
    %v2203 = vsub.f32 %v2092, %v2202
    %v2204 = vand.u32 %v2203, 4294901760
    %v2205 = vsub.f32 %v2203, %v2204
    %v2206 = vand.u32 %v2205, 4294901760
    %2207 = vmatmul.f32.gmra.mxu0 %v2206
    %v2208 = vpop.f32.mrf.mxu0
    %v2209 = vadd.f32 0.0, %v2208
    %v2210 = vand.u32 %v2094, 4294901760
    %v2211 = vsub.f32 %v2094, %v2210
    %v2212 = vand.u32 %v2211, 4294901760
    %v2213 = vsub.f32 %v2211, %v2212
    %v2214 = vand.u32 %v2213, 4294901760
    %2215 = vmatmul.f32.gmra.mxu0 %v2214
    %v2216 = vpop.f32.mrf.mxu0
    %v2217 = vadd.f32 0.0, %v2216
    %v2218 = vand.u32 %v2096, 4294901760
    %v2219 = vsub.f32 %v2096, %v2218
    %v2220 = vand.u32 %v2219, 4294901760
    %v2221 = vsub.f32 %v2219, %v2220
    %v2222 = vand.u32 %v2221, 4294901760
    %2223 = vmatmul.f32.gmra.mxu0 %v2222
    %v2224 = vpop.f32.mrf.mxu0
    %v2225 = vadd.f32 0.0, %v2224
    %2226 = vdwg.mxu0
    %v2227 = vand.u32 %v2113, 4294901760
    %v2228 = vsub.f32 %v2113, %v2227
    %v2229 = vand.u32 %v2228, 4294901760
    %v2230 = vsub.f32 %v2228, %v2229
    %v2231 = vand.u32 %v2230, 4294901760
    %2232 = vmatpush.msra.mxu0 %v2231
    %v2233 = vand.u32 %v2112, 4294901760
    %v2234 = vsub.f32 %v2112, %v2233
    %v2235 = vand.u32 %v2234, 4294901760
    %v2236 = vsub.f32 %v2234, %v2235
    %v2237 = vand.u32 %v2236, 4294901760
    %2238 = vmatpush.msra.mxu0 %v2237
    %v2239 = vand.u32 %v2111, 4294901760
    %v2240 = vsub.f32 %v2111, %v2239
    %v2241 = vand.u32 %v2240, 4294901760
    %v2242 = vsub.f32 %v2240, %v2241
    %v2243 = vand.u32 %v2242, 4294901760
    %2244 = vmatpush.msra.mxu0 %v2243
    %v2245 = vand.u32 %v2110, 4294901760
    %v2246 = vsub.f32 %v2110, %v2245
    %v2247 = vand.u32 %v2246, 4294901760
    %v2248 = vsub.f32 %v2246, %v2247
    %v2249 = vand.u32 %v2248, 4294901760
    %2250 = vmatpush.msra.mxu0 %v2249
    %v2251 = vand.u32 %v2109, 4294901760
    %v2252 = vsub.f32 %v2109, %v2251
    %v2253 = vand.u32 %v2252, 4294901760
    %v2254 = vsub.f32 %v2252, %v2253
    %v2255 = vand.u32 %v2254, 4294901760
    %2256 = vmatpush.msra.mxu0 %v2255
    %v2257 = vand.u32 %v2108, 4294901760
    %v2258 = vsub.f32 %v2108, %v2257
    %v2259 = vand.u32 %v2258, 4294901760
    %v2260 = vsub.f32 %v2258, %v2259
    %v2261 = vand.u32 %v2260, 4294901760
    %2262 = vmatpush.msra.mxu0 %v2261
    %v2263 = vand.u32 %v2107, 4294901760
    %v2264 = vsub.f32 %v2107, %v2263
    %v2265 = vand.u32 %v2264, 4294901760
    %v2266 = vsub.f32 %v2264, %v2265
    %v2267 = vand.u32 %v2266, 4294901760
    %2268 = vmatpush.msra.mxu0 %v2267
    %v2269 = vand.u32 %v2106, 4294901760
    %v2270 = vsub.f32 %v2106, %v2269
    %v2271 = vand.u32 %v2270, 4294901760
    %v2272 = vsub.f32 %v2270, %v2271
    %v2273 = vand.u32 %v2272, 4294901760
    %2274 = vmatpush.msra.mxu0 %v2273
    %v2275 = vand.u32 %v2105, 4294901760
    %v2276 = vsub.f32 %v2105, %v2275
    %v2277 = vand.u32 %v2276, 4294901760
    %v2278 = vsub.f32 %v2276, %v2277
    %v2279 = vand.u32 %v2278, 4294901760
    %2280 = vmatpush.msra.mxu0 %v2279
    %v2281 = vand.u32 %v2104, 4294901760
    %v2282 = vsub.f32 %v2104, %v2281
    %v2283 = vand.u32 %v2282, 4294901760
    %v2284 = vsub.f32 %v2282, %v2283
    %v2285 = vand.u32 %v2284, 4294901760
    %2286 = vmatpush.msra.mxu0 %v2285
    %v2287 = vand.u32 %v2103, 4294901760
    %v2288 = vsub.f32 %v2103, %v2287
    %v2289 = vand.u32 %v2288, 4294901760
    %v2290 = vsub.f32 %v2288, %v2289
    %v2291 = vand.u32 %v2290, 4294901760
    %2292 = vmatpush.msra.mxu0 %v2291
    %v2293 = vand.u32 %v2102, 4294901760
    %v2294 = vsub.f32 %v2102, %v2293
    %v2295 = vand.u32 %v2294, 4294901760
    %v2296 = vsub.f32 %v2294, %v2295
    %v2297 = vand.u32 %v2296, 4294901760
    %2298 = vmatpush.msra.mxu0 %v2297
    %v2299 = vand.u32 %v2101, 4294901760
    %v2300 = vsub.f32 %v2101, %v2299
    %v2301 = vand.u32 %v2300, 4294901760
    %v2302 = vsub.f32 %v2300, %v2301
    %v2303 = vand.u32 %v2302, 4294901760
    %2304 = vmatpush.msra.mxu0 %v2303
    %v2305 = vand.u32 %v2100, 4294901760
    %v2306 = vsub.f32 %v2100, %v2305
    %v2307 = vand.u32 %v2306, 4294901760
    %v2308 = vsub.f32 %v2306, %v2307
    %v2309 = vand.u32 %v2308, 4294901760
    %2310 = vmatpush.msra.mxu0 %v2309
    %v2311 = vand.u32 %v2099, 4294901760
    %v2312 = vsub.f32 %v2099, %v2311
    %v2313 = vand.u32 %v2312, 4294901760
    %v2314 = vsub.f32 %v2312, %v2313
    %v2315 = vand.u32 %v2314, 4294901760
    %2316 = vmatpush.msra.mxu0 %v2315
    %v2317 = vand.u32 %v2098, 4294901760
    %v2318 = vsub.f32 %v2098, %v2317
    %v2319 = vand.u32 %v2318, 4294901760
    %v2320 = vsub.f32 %v2318, %v2319
    %v2321 = vand.u32 %v2320, 4294901760
    %2322 = vmatpush.msra.mxu0 %v2321
    %v2323 = vand.u32 %v2082, 4294901760
    %2324 = vmatmul.f32.gmra.mxu0 %v2323
    %v2325 = vpop.f32.mrf.mxu0
    %v2326 = vadd.f32 %v2169, %v2325
    %v2327 = vand.u32 %v2084, 4294901760
    %2328 = vmatmul.f32.gmra.mxu0 %v2327
    %v2329 = vpop.f32.mrf.mxu0
    %v2330 = vadd.f32 %v2177, %v2329
    %v2331 = vand.u32 %v2086, 4294901760
    %2332 = vmatmul.f32.gmra.mxu0 %v2331
    %v2333 = vpop.f32.mrf.mxu0
    %v2334 = vadd.f32 %v2185, %v2333
    %v2335 = vand.u32 %v2088, 4294901760
    %2336 = vmatmul.f32.gmra.mxu0 %v2335
    %v2337 = vpop.f32.mrf.mxu0
    %v2338 = vadd.f32 %v2193, %v2337
    %v2339 = vand.u32 %v2090, 4294901760
    %2340 = vmatmul.f32.gmra.mxu0 %v2339
    %v2341 = vpop.f32.mrf.mxu0
    %v2342 = vadd.f32 %v2201, %v2341
    %v2343 = vand.u32 %v2092, 4294901760
    %2344 = vmatmul.f32.gmra.mxu0 %v2343
    %v2345 = vpop.f32.mrf.mxu0
    %v2346 = vadd.f32 %v2209, %v2345
    %v2347 = vand.u32 %v2094, 4294901760
    %2348 = vmatmul.f32.gmra.mxu0 %v2347
    %v2349 = vpop.f32.mrf.mxu0
    %v2350 = vadd.f32 %v2217, %v2349
    %v2351 = vand.u32 %v2096, 4294901760
    %2352 = vmatmul.f32.gmra.mxu0 %v2351
    %v2353 = vpop.f32.mrf.mxu0
    %v2354 = vadd.f32 %v2225, %v2353
    %2355 = vdwg.mxu0
    %v2356 = vand.u32 %v2113, 4294901760
    %v2357 = vsub.f32 %v2113, %v2356
    %2358 = vmatpush.msra.mxu0 %v2357
    %v2359 = vand.u32 %v2112, 4294901760
    %v2360 = vsub.f32 %v2112, %v2359
    %2361 = vmatpush.msra.mxu0 %v2360
    %v2362 = vand.u32 %v2111, 4294901760
    %v2363 = vsub.f32 %v2111, %v2362
    %2364 = vmatpush.msra.mxu0 %v2363
    %v2365 = vand.u32 %v2110, 4294901760
    %v2366 = vsub.f32 %v2110, %v2365
    %2367 = vmatpush.msra.mxu0 %v2366
    %v2368 = vand.u32 %v2109, 4294901760
    %v2369 = vsub.f32 %v2109, %v2368
    %2370 = vmatpush.msra.mxu0 %v2369
    %v2371 = vand.u32 %v2108, 4294901760
    %v2372 = vsub.f32 %v2108, %v2371
    %2373 = vmatpush.msra.mxu0 %v2372
    %v2374 = vand.u32 %v2107, 4294901760
    %v2375 = vsub.f32 %v2107, %v2374
    %2376 = vmatpush.msra.mxu0 %v2375
    %v2377 = vand.u32 %v2106, 4294901760
    %v2378 = vsub.f32 %v2106, %v2377
    %2379 = vmatpush.msra.mxu0 %v2378
    %v2380 = vand.u32 %v2105, 4294901760
    %v2381 = vsub.f32 %v2105, %v2380
    %2382 = vmatpush.msra.mxu0 %v2381
    %v2383 = vand.u32 %v2104, 4294901760
    %v2384 = vsub.f32 %v2104, %v2383
    %2385 = vmatpush.msra.mxu0 %v2384
    %v2386 = vand.u32 %v2103, 4294901760
    %v2387 = vsub.f32 %v2103, %v2386
    %2388 = vmatpush.msra.mxu0 %v2387
    %v2389 = vand.u32 %v2102, 4294901760
    %v2390 = vsub.f32 %v2102, %v2389
    %2391 = vmatpush.msra.mxu0 %v2390
    %v2392 = vand.u32 %v2101, 4294901760
    %v2393 = vsub.f32 %v2101, %v2392
    %2394 = vmatpush.msra.mxu0 %v2393
    %v2395 = vand.u32 %v2100, 4294901760
    %v2396 = vsub.f32 %v2100, %v2395
    %2397 = vmatpush.msra.mxu0 %v2396
    %v2398 = vand.u32 %v2099, 4294901760
    %v2399 = vsub.f32 %v2099, %v2398
    %2400 = vmatpush.msra.mxu0 %v2399
    %v2401 = vand.u32 %v2098, 4294901760
    %v2402 = vsub.f32 %v2098, %v2401
    %2403 = vmatpush.msra.mxu0 %v2402
    %v2404 = vand.u32 %v2082, 4294901760
    %v2405 = vsub.f32 %v2082, %v2404
    %2406 = vmatmul.f32.gmra.mxu0 %v2405
    %v2407 = vpop.f32.mrf.mxu0
    %v2408 = vadd.f32 %v2326, %v2407
    %v2409 = vand.u32 %v2084, 4294901760
    %v2410 = vsub.f32 %v2084, %v2409
    %2411 = vmatmul.f32.gmra.mxu0 %v2410
    %v2412 = vpop.f32.mrf.mxu0
    %v2413 = vadd.f32 %v2330, %v2412
    %v2414 = vand.u32 %v2086, 4294901760
    %v2415 = vsub.f32 %v2086, %v2414
    %2416 = vmatmul.f32.gmra.mxu0 %v2415
    %v2417 = vpop.f32.mrf.mxu0
    %v2418 = vadd.f32 %v2334, %v2417
    %v2419 = vand.u32 %v2088, 4294901760
    %v2420 = vsub.f32 %v2088, %v2419
    %2421 = vmatmul.f32.gmra.mxu0 %v2420
    %v2422 = vpop.f32.mrf.mxu0
    %v2423 = vadd.f32 %v2338, %v2422
    %v2424 = vand.u32 %v2090, 4294901760
    %v2425 = vsub.f32 %v2090, %v2424
    %2426 = vmatmul.f32.gmra.mxu0 %v2425
    %v2427 = vpop.f32.mrf.mxu0
    %v2428 = vadd.f32 %v2342, %v2427
    %v2429 = vand.u32 %v2092, 4294901760
    %v2430 = vsub.f32 %v2092, %v2429
    %2431 = vmatmul.f32.gmra.mxu0 %v2430
    %v2432 = vpop.f32.mrf.mxu0
    %v2433 = vadd.f32 %v2346, %v2432
    %v2434 = vand.u32 %v2094, 4294901760
    %v2435 = vsub.f32 %v2094, %v2434
    %2436 = vmatmul.f32.gmra.mxu0 %v2435
    %v2437 = vpop.f32.mrf.mxu0
    %v2438 = vadd.f32 %v2350, %v2437
    %v2439 = vand.u32 %v2096, 4294901760
    %v2440 = vsub.f32 %v2096, %v2439
    %2441 = vmatmul.f32.gmra.mxu0 %v2440
    %v2442 = vpop.f32.mrf.mxu0
    %v2443 = vadd.f32 %v2354, %v2442
    %2444 = vdwg.mxu0
    %v2445 = vand.u32 %v2113, 4294901760
    %2446 = vmatpush.msra.mxu0 %v2445
    %v2447 = vand.u32 %v2112, 4294901760
    %2448 = vmatpush.msra.mxu0 %v2447
    %v2449 = vand.u32 %v2111, 4294901760
    %2450 = vmatpush.msra.mxu0 %v2449
    %v2451 = vand.u32 %v2110, 4294901760
    %2452 = vmatpush.msra.mxu0 %v2451
    %v2453 = vand.u32 %v2109, 4294901760
    %2454 = vmatpush.msra.mxu0 %v2453
    %v2455 = vand.u32 %v2108, 4294901760
    %2456 = vmatpush.msra.mxu0 %v2455
    %v2457 = vand.u32 %v2107, 4294901760
    %2458 = vmatpush.msra.mxu0 %v2457
    %v2459 = vand.u32 %v2106, 4294901760
    %2460 = vmatpush.msra.mxu0 %v2459
    %v2461 = vand.u32 %v2105, 4294901760
    %2462 = vmatpush.msra.mxu0 %v2461
    %v2463 = vand.u32 %v2104, 4294901760
    %2464 = vmatpush.msra.mxu0 %v2463
    %v2465 = vand.u32 %v2103, 4294901760
    %2466 = vmatpush.msra.mxu0 %v2465
    %v2467 = vand.u32 %v2102, 4294901760
    %2468 = vmatpush.msra.mxu0 %v2467
    %v2469 = vand.u32 %v2101, 4294901760
    %2470 = vmatpush.msra.mxu0 %v2469
    %v2471 = vand.u32 %v2100, 4294901760
    %2472 = vmatpush.msra.mxu0 %v2471
    %v2473 = vand.u32 %v2099, 4294901760
    %2474 = vmatpush.msra.mxu0 %v2473
    %v2475 = vand.u32 %v2098, 4294901760
    %2476 = vmatpush.msra.mxu0 %v2475
    %v2477 = vand.u32 %v2082, 4294901760
    %v2478 = vsub.f32 %v2082, %v2477
    %v2479 = vand.u32 %v2478, 4294901760
    %2480 = vmatmul.f32.gmra.mxu0 %v2479
    %v2481 = vpop.f32.mrf.mxu0
    %v2482 = vadd.f32 %v2408, %v2481
    %v2483 = vand.u32 %v2084, 4294901760
    %v2484 = vsub.f32 %v2084, %v2483
    %v2485 = vand.u32 %v2484, 4294901760
    %2486 = vmatmul.f32.gmra.mxu0 %v2485
    %v2487 = vpop.f32.mrf.mxu0
    %v2488 = vadd.f32 %v2413, %v2487
    %v2489 = vand.u32 %v2086, 4294901760
    %v2490 = vsub.f32 %v2086, %v2489
    %v2491 = vand.u32 %v2490, 4294901760
    %2492 = vmatmul.f32.gmra.mxu0 %v2491
    %v2493 = vpop.f32.mrf.mxu0
    %v2494 = vadd.f32 %v2418, %v2493
    %v2495 = vand.u32 %v2088, 4294901760
    %v2496 = vsub.f32 %v2088, %v2495
    %v2497 = vand.u32 %v2496, 4294901760
    %2498 = vmatmul.f32.gmra.mxu0 %v2497
    %v2499 = vpop.f32.mrf.mxu0
    %v2500 = vadd.f32 %v2423, %v2499
    %v2501 = vand.u32 %v2090, 4294901760
    %v2502 = vsub.f32 %v2090, %v2501
    %v2503 = vand.u32 %v2502, 4294901760
    %2504 = vmatmul.f32.gmra.mxu0 %v2503
    %v2505 = vpop.f32.mrf.mxu0
    %v2506 = vadd.f32 %v2428, %v2505
    %v2507 = vand.u32 %v2092, 4294901760
    %v2508 = vsub.f32 %v2092, %v2507
    %v2509 = vand.u32 %v2508, 4294901760
    %2510 = vmatmul.f32.gmra.mxu0 %v2509
    %v2511 = vpop.f32.mrf.mxu0
    %v2512 = vadd.f32 %v2433, %v2511
    %v2513 = vand.u32 %v2094, 4294901760
    %v2514 = vsub.f32 %v2094, %v2513
    %v2515 = vand.u32 %v2514, 4294901760
    %2516 = vmatmul.f32.gmra.mxu0 %v2515
    %v2517 = vpop.f32.mrf.mxu0
    %v2518 = vadd.f32 %v2438, %v2517
    %v2519 = vand.u32 %v2096, 4294901760
    %v2520 = vsub.f32 %v2096, %v2519
    %v2521 = vand.u32 %v2520, 4294901760
    %2522 = vmatmul.f32.gmra.mxu0 %v2521
    %v2523 = vpop.f32.mrf.mxu0
    %v2524 = vadd.f32 %v2443, %v2523
    %2525 = vdwg.mxu0
    %v2526 = vand.u32 %v2113, 4294901760
    %v2527 = vsub.f32 %v2113, %v2526
    %v2528 = vand.u32 %v2527, 4294901760
    %2529 = vmatpush.msra.mxu0 %v2528
    %v2530 = vand.u32 %v2112, 4294901760
    %v2531 = vsub.f32 %v2112, %v2530
    %v2532 = vand.u32 %v2531, 4294901760
    %2533 = vmatpush.msra.mxu0 %v2532
    %v2534 = vand.u32 %v2111, 4294901760
    %v2535 = vsub.f32 %v2111, %v2534
    %v2536 = vand.u32 %v2535, 4294901760
    %2537 = vmatpush.msra.mxu0 %v2536
    %v2538 = vand.u32 %v2110, 4294901760
    %v2539 = vsub.f32 %v2110, %v2538
    %v2540 = vand.u32 %v2539, 4294901760
    %2541 = vmatpush.msra.mxu0 %v2540
    %v2542 = vand.u32 %v2109, 4294901760
    %v2543 = vsub.f32 %v2109, %v2542
    %v2544 = vand.u32 %v2543, 4294901760
    %2545 = vmatpush.msra.mxu0 %v2544
    %v2546 = vand.u32 %v2108, 4294901760
    %v2547 = vsub.f32 %v2108, %v2546
    %v2548 = vand.u32 %v2547, 4294901760
    %2549 = vmatpush.msra.mxu0 %v2548
    %v2550 = vand.u32 %v2107, 4294901760
    %v2551 = vsub.f32 %v2107, %v2550
    %v2552 = vand.u32 %v2551, 4294901760
    %2553 = vmatpush.msra.mxu0 %v2552
    %v2554 = vand.u32 %v2106, 4294901760
    %v2555 = vsub.f32 %v2106, %v2554
    %v2556 = vand.u32 %v2555, 4294901760
    %2557 = vmatpush.msra.mxu0 %v2556
    %v2558 = vand.u32 %v2105, 4294901760
    %v2559 = vsub.f32 %v2105, %v2558
    %v2560 = vand.u32 %v2559, 4294901760
    %2561 = vmatpush.msra.mxu0 %v2560
    %v2562 = vand.u32 %v2104, 4294901760
    %v2563 = vsub.f32 %v2104, %v2562
    %v2564 = vand.u32 %v2563, 4294901760
    %2565 = vmatpush.msra.mxu0 %v2564
    %v2566 = vand.u32 %v2103, 4294901760
    %v2567 = vsub.f32 %v2103, %v2566
    %v2568 = vand.u32 %v2567, 4294901760
    %2569 = vmatpush.msra.mxu0 %v2568
    %v2570 = vand.u32 %v2102, 4294901760
    %v2571 = vsub.f32 %v2102, %v2570
    %v2572 = vand.u32 %v2571, 4294901760
    %2573 = vmatpush.msra.mxu0 %v2572
    %v2574 = vand.u32 %v2101, 4294901760
    %v2575 = vsub.f32 %v2101, %v2574
    %v2576 = vand.u32 %v2575, 4294901760
    %2577 = vmatpush.msra.mxu0 %v2576
    %v2578 = vand.u32 %v2100, 4294901760
    %v2579 = vsub.f32 %v2100, %v2578
    %v2580 = vand.u32 %v2579, 4294901760
    %2581 = vmatpush.msra.mxu0 %v2580
    %v2582 = vand.u32 %v2099, 4294901760
    %v2583 = vsub.f32 %v2099, %v2582
    %v2584 = vand.u32 %v2583, 4294901760
    %2585 = vmatpush.msra.mxu0 %v2584
    %v2586 = vand.u32 %v2098, 4294901760
    %v2587 = vsub.f32 %v2098, %v2586
    %v2588 = vand.u32 %v2587, 4294901760
    %2589 = vmatpush.msra.mxu0 %v2588
    %v2590 = vand.u32 %v2082, 4294901760
    %2591 = vmatmul.f32.gmra.mxu0 %v2590
    %v2592 = vpop.f32.mrf.mxu0
    %v2593 = vadd.f32 %v2482, %v2592
    %v2594 = vand.u32 %v2084, 4294901760
    %2595 = vmatmul.f32.gmra.mxu0 %v2594
    %v2596 = vpop.f32.mrf.mxu0
    %v2597 = vadd.f32 %v2488, %v2596
    %v2598 = vand.u32 %v2086, 4294901760
    %2599 = vmatmul.f32.gmra.mxu0 %v2598
    %v2600 = vpop.f32.mrf.mxu0
    %v2601 = vadd.f32 %v2494, %v2600
    %v2602 = vand.u32 %v2088, 4294901760
    %2603 = vmatmul.f32.gmra.mxu0 %v2602
    %v2604 = vpop.f32.mrf.mxu0
    %v2605 = vadd.f32 %v2500, %v2604
    %v2606 = vand.u32 %v2090, 4294901760
    %2607 = vmatmul.f32.gmra.mxu0 %v2606
    %v2608 = vpop.f32.mrf.mxu0
    %v2609 = vadd.f32 %v2506, %v2608
    %v2610 = vand.u32 %v2092, 4294901760
    %2611 = vmatmul.f32.gmra.mxu0 %v2610
    %v2612 = vpop.f32.mrf.mxu0
    %v2613 = vadd.f32 %v2512, %v2612
    %v2614 = vand.u32 %v2094, 4294901760
    %2615 = vmatmul.f32.gmra.mxu0 %v2614
    %v2616 = vpop.f32.mrf.mxu0
    %v2617 = vadd.f32 %v2518, %v2616
    %v2618 = vand.u32 %v2096, 4294901760
    %2619 = vmatmul.f32.gmra.mxu0 %v2618
    %v2620 = vpop.f32.mrf.mxu0
    %v2621 = vadd.f32 %v2524, %v2620
    %2622 = vdwg.mxu0
    %v2623 = vand.u32 %v2113, 4294901760
    %2624 = vmatpush.msra.mxu0 %v2623
    %v2625 = vand.u32 %v2112, 4294901760
    %2626 = vmatpush.msra.mxu0 %v2625
    %v2627 = vand.u32 %v2111, 4294901760
    %2628 = vmatpush.msra.mxu0 %v2627
    %v2629 = vand.u32 %v2110, 4294901760
    %2630 = vmatpush.msra.mxu0 %v2629
    %v2631 = vand.u32 %v2109, 4294901760
    %2632 = vmatpush.msra.mxu0 %v2631
    %v2633 = vand.u32 %v2108, 4294901760
    %2634 = vmatpush.msra.mxu0 %v2633
    %v2635 = vand.u32 %v2107, 4294901760
    %2636 = vmatpush.msra.mxu0 %v2635
    %v2637 = vand.u32 %v2106, 4294901760
    %2638 = vmatpush.msra.mxu0 %v2637
    %v2639 = vand.u32 %v2105, 4294901760
    %2640 = vmatpush.msra.mxu0 %v2639
    %v2641 = vand.u32 %v2104, 4294901760
    %2642 = vmatpush.msra.mxu0 %v2641
    %v2643 = vand.u32 %v2103, 4294901760
    %2644 = vmatpush.msra.mxu0 %v2643
    %v2645 = vand.u32 %v2102, 4294901760
    %2646 = vmatpush.msra.mxu0 %v2645
    %v2647 = vand.u32 %v2101, 4294901760
    %2648 = vmatpush.msra.mxu0 %v2647
    %v2649 = vand.u32 %v2100, 4294901760
    %2650 = vmatpush.msra.mxu0 %v2649
    %v2651 = vand.u32 %v2099, 4294901760
    %2652 = vmatpush.msra.mxu0 %v2651
    %v2653 = vand.u32 %v2098, 4294901760
    %2654 = vmatpush.msra.mxu0 %v2653
    %v2655 = vand.u32 %v2082, 4294901760
    %2656 = vmatmul.f32.gmra.mxu0 %v2655
    %v2657 = vpop.f32.mrf.mxu0
    %v2658 = vadd.f32 %v2593, %v2657
    %v2659 = vand.u32 %v2084, 4294901760
    %2660 = vmatmul.f32.gmra.mxu0 %v2659
    %v2661 = vpop.f32.mrf.mxu0
    %v2662 = vadd.f32 %v2597, %v2661
    %v2663 = vand.u32 %v2086, 4294901760
    %2664 = vmatmul.f32.gmra.mxu0 %v2663
    %v2665 = vpop.f32.mrf.mxu0
    %v2666 = vadd.f32 %v2601, %v2665
    %v2667 = vand.u32 %v2088, 4294901760
    %2668 = vmatmul.f32.gmra.mxu0 %v2667
    %v2669 = vpop.f32.mrf.mxu0
    %v2670 = vadd.f32 %v2605, %v2669
    %v2671 = vand.u32 %v2090, 4294901760
    %2672 = vmatmul.f32.gmra.mxu0 %v2671
    %v2673 = vpop.f32.mrf.mxu0
    %v2674 = vadd.f32 %v2609, %v2673
    %v2675 = vand.u32 %v2092, 4294901760
    %2676 = vmatmul.f32.gmra.mxu0 %v2675
    %v2677 = vpop.f32.mrf.mxu0
    %v2678 = vadd.f32 %v2613, %v2677
    %v2679 = vand.u32 %v2094, 4294901760
    %2680 = vmatmul.f32.gmra.mxu0 %v2679
    %v2681 = vpop.f32.mrf.mxu0
    %v2682 = vadd.f32 %v2617, %v2681
    %v2683 = vand.u32 %v2096, 4294901760
    %2684 = vmatmul.f32.gmra.mxu0 %v2683
    %v2685 = vpop.f32.mrf.mxu0
    %v2686 = vadd.f32 %v2621, %v2685
    %2687 = vdwg.mxu0
    %v2688 = vand.u32 %v2129, 4294901760
    %2689 = vmatpush.msra.mxu0 %v2688
    %v2690 = vand.u32 %v2128, 4294901760
    %2691 = vmatpush.msra.mxu0 %v2690
    %v2692 = vand.u32 %v2127, 4294901760
    %2693 = vmatpush.msra.mxu0 %v2692
    %v2694 = vand.u32 %v2126, 4294901760
    %2695 = vmatpush.msra.mxu0 %v2694
    %v2696 = vand.u32 %v2125, 4294901760
    %2697 = vmatpush.msra.mxu0 %v2696
    %v2698 = vand.u32 %v2124, 4294901760
    %2699 = vmatpush.msra.mxu0 %v2698
    %v2700 = vand.u32 %v2123, 4294901760
    %2701 = vmatpush.msra.mxu0 %v2700
    %v2702 = vand.u32 %v2122, 4294901760
    %2703 = vmatpush.msra.mxu0 %v2702
    %v2704 = vand.u32 %v2121, 4294901760
    %2705 = vmatpush.msra.mxu0 %v2704
    %v2706 = vand.u32 %v2120, 4294901760
    %2707 = vmatpush.msra.mxu0 %v2706
    %v2708 = vand.u32 %v2119, 4294901760
    %2709 = vmatpush.msra.mxu0 %v2708
    %v2710 = vand.u32 %v2118, 4294901760
    %2711 = vmatpush.msra.mxu0 %v2710
    %v2712 = vand.u32 %v2117, 4294901760
    %2713 = vmatpush.msra.mxu0 %v2712
    %v2714 = vand.u32 %v2116, 4294901760
    %2715 = vmatpush.msra.mxu0 %v2714
    %v2716 = vand.u32 %v2115, 4294901760
    %2717 = vmatpush.msra.mxu0 %v2716
    %v2718 = vand.u32 %v2114, 4294901760
    %2719 = vmatpush.msra.mxu0 %v2718
    %v2720 = vand.u32 %v2083, 4294901760
    %v2721 = vsub.f32 %v2083, %v2720
    %v2722 = vand.u32 %v2721, 4294901760
    %v2723 = vsub.f32 %v2721, %v2722
    %v2724 = vand.u32 %v2723, 4294901760
    %2725 = vmatmul.f32.gmra.mxu0 %v2724
    %v2726 = vpop.f32.mrf.mxu0
    %v2727 = vadd.f32 %v2658, %v2726
    %v2728 = vand.u32 %v2085, 4294901760
    %v2729 = vsub.f32 %v2085, %v2728
    %v2730 = vand.u32 %v2729, 4294901760
    %v2731 = vsub.f32 %v2729, %v2730
    %v2732 = vand.u32 %v2731, 4294901760
    %2733 = vmatmul.f32.gmra.mxu0 %v2732
    %v2734 = vpop.f32.mrf.mxu0
    %v2735 = vadd.f32 %v2662, %v2734
    %v2736 = vand.u32 %v2087, 4294901760
    %v2737 = vsub.f32 %v2087, %v2736
    %v2738 = vand.u32 %v2737, 4294901760
    %v2739 = vsub.f32 %v2737, %v2738
    %v2740 = vand.u32 %v2739, 4294901760
    %2741 = vmatmul.f32.gmra.mxu0 %v2740
    %v2742 = vpop.f32.mrf.mxu0
    %v2743 = vadd.f32 %v2666, %v2742
    %v2744 = vand.u32 %v2089, 4294901760
    %v2745 = vsub.f32 %v2089, %v2744
    %v2746 = vand.u32 %v2745, 4294901760
    %v2747 = vsub.f32 %v2745, %v2746
    %v2748 = vand.u32 %v2747, 4294901760
    %2749 = vmatmul.f32.gmra.mxu0 %v2748
    %v2750 = vpop.f32.mrf.mxu0
    %v2751 = vadd.f32 %v2670, %v2750
    %v2752 = vand.u32 %v2091, 4294901760
    %v2753 = vsub.f32 %v2091, %v2752
    %v2754 = vand.u32 %v2753, 4294901760
    %v2755 = vsub.f32 %v2753, %v2754
    %v2756 = vand.u32 %v2755, 4294901760
    %2757 = vmatmul.f32.gmra.mxu0 %v2756
    %v2758 = vpop.f32.mrf.mxu0
    %v2759 = vadd.f32 %v2674, %v2758
    %v2760 = vand.u32 %v2093, 4294901760
    %v2761 = vsub.f32 %v2093, %v2760
    %v2762 = vand.u32 %v2761, 4294901760
    %v2763 = vsub.f32 %v2761, %v2762
    %v2764 = vand.u32 %v2763, 4294901760
    %2765 = vmatmul.f32.gmra.mxu0 %v2764
    %v2766 = vpop.f32.mrf.mxu0
    %v2767 = vadd.f32 %v2678, %v2766
    %v2768 = vand.u32 %v2095, 4294901760
    %v2769 = vsub.f32 %v2095, %v2768
    %v2770 = vand.u32 %v2769, 4294901760
    %v2771 = vsub.f32 %v2769, %v2770
    %v2772 = vand.u32 %v2771, 4294901760
    %2773 = vmatmul.f32.gmra.mxu0 %v2772
    %v2774 = vpop.f32.mrf.mxu0
    %v2775 = vadd.f32 %v2682, %v2774
    %v2776 = vand.u32 %v2097, 4294901760
    %v2777 = vsub.f32 %v2097, %v2776
    %v2778 = vand.u32 %v2777, 4294901760
    %v2779 = vsub.f32 %v2777, %v2778
    %v2780 = vand.u32 %v2779, 4294901760
    %2781 = vmatmul.f32.gmra.mxu0 %v2780
    %v2782 = vpop.f32.mrf.mxu0
    %v2783 = vadd.f32 %v2686, %v2782
    %2784 = vdwg.mxu0
    %v2785 = vand.u32 %v2129, 4294901760
    %v2786 = vsub.f32 %v2129, %v2785
    %v2787 = vand.u32 %v2786, 4294901760
    %v2788 = vsub.f32 %v2786, %v2787
    %v2789 = vand.u32 %v2788, 4294901760
    %2790 = vmatpush.msra.mxu0 %v2789
    %v2791 = vand.u32 %v2128, 4294901760
    %v2792 = vsub.f32 %v2128, %v2791
    %v2793 = vand.u32 %v2792, 4294901760
    %v2794 = vsub.f32 %v2792, %v2793
    %v2795 = vand.u32 %v2794, 4294901760
    %2796 = vmatpush.msra.mxu0 %v2795
    %v2797 = vand.u32 %v2127, 4294901760
    %v2798 = vsub.f32 %v2127, %v2797
    %v2799 = vand.u32 %v2798, 4294901760
    %v2800 = vsub.f32 %v2798, %v2799
    %v2801 = vand.u32 %v2800, 4294901760
    %2802 = vmatpush.msra.mxu0 %v2801
    %v2803 = vand.u32 %v2126, 4294901760
    %v2804 = vsub.f32 %v2126, %v2803
    %v2805 = vand.u32 %v2804, 4294901760
    %v2806 = vsub.f32 %v2804, %v2805
    %v2807 = vand.u32 %v2806, 4294901760
    %2808 = vmatpush.msra.mxu0 %v2807
    %v2809 = vand.u32 %v2125, 4294901760
    %v2810 = vsub.f32 %v2125, %v2809
    %v2811 = vand.u32 %v2810, 4294901760
    %v2812 = vsub.f32 %v2810, %v2811
    %v2813 = vand.u32 %v2812, 4294901760
    %2814 = vmatpush.msra.mxu0 %v2813
    %v2815 = vand.u32 %v2124, 4294901760
    %v2816 = vsub.f32 %v2124, %v2815
    %v2817 = vand.u32 %v2816, 4294901760
    %v2818 = vsub.f32 %v2816, %v2817
    %v2819 = vand.u32 %v2818, 4294901760
    %2820 = vmatpush.msra.mxu0 %v2819
    %v2821 = vand.u32 %v2123, 4294901760
    %v2822 = vsub.f32 %v2123, %v2821
    %v2823 = vand.u32 %v2822, 4294901760
    %v2824 = vsub.f32 %v2822, %v2823
    %v2825 = vand.u32 %v2824, 4294901760
    %2826 = vmatpush.msra.mxu0 %v2825
    %v2827 = vand.u32 %v2122, 4294901760
    %v2828 = vsub.f32 %v2122, %v2827
    %v2829 = vand.u32 %v2828, 4294901760
    %v2830 = vsub.f32 %v2828, %v2829
    %v2831 = vand.u32 %v2830, 4294901760
    %2832 = vmatpush.msra.mxu0 %v2831
    %v2833 = vand.u32 %v2121, 4294901760
    %v2834 = vsub.f32 %v2121, %v2833
    %v2835 = vand.u32 %v2834, 4294901760
    %v2836 = vsub.f32 %v2834, %v2835
    %v2837 = vand.u32 %v2836, 4294901760
    %2838 = vmatpush.msra.mxu0 %v2837
    %v2839 = vand.u32 %v2120, 4294901760
    %v2840 = vsub.f32 %v2120, %v2839
    %v2841 = vand.u32 %v2840, 4294901760
    %v2842 = vsub.f32 %v2840, %v2841
    %v2843 = vand.u32 %v2842, 4294901760
    %2844 = vmatpush.msra.mxu0 %v2843
    %v2845 = vand.u32 %v2119, 4294901760
    %v2846 = vsub.f32 %v2119, %v2845
    %v2847 = vand.u32 %v2846, 4294901760
    %v2848 = vsub.f32 %v2846, %v2847
    %v2849 = vand.u32 %v2848, 4294901760
    %2850 = vmatpush.msra.mxu0 %v2849
    %v2851 = vand.u32 %v2118, 4294901760
    %v2852 = vsub.f32 %v2118, %v2851
    %v2853 = vand.u32 %v2852, 4294901760
    %v2854 = vsub.f32 %v2852, %v2853
    %v2855 = vand.u32 %v2854, 4294901760
    %2856 = vmatpush.msra.mxu0 %v2855
    %v2857 = vand.u32 %v2117, 4294901760
    %v2858 = vsub.f32 %v2117, %v2857
    %v2859 = vand.u32 %v2858, 4294901760
    %v2860 = vsub.f32 %v2858, %v2859
    %v2861 = vand.u32 %v2860, 4294901760
    %2862 = vmatpush.msra.mxu0 %v2861
    %v2863 = vand.u32 %v2116, 4294901760
    %v2864 = vsub.f32 %v2116, %v2863
    %v2865 = vand.u32 %v2864, 4294901760
    %v2866 = vsub.f32 %v2864, %v2865
    %v2867 = vand.u32 %v2866, 4294901760
    %2868 = vmatpush.msra.mxu0 %v2867
    %v2869 = vand.u32 %v2115, 4294901760
    %v2870 = vsub.f32 %v2115, %v2869
    %v2871 = vand.u32 %v2870, 4294901760
    %v2872 = vsub.f32 %v2870, %v2871
    %v2873 = vand.u32 %v2872, 4294901760
    %2874 = vmatpush.msra.mxu0 %v2873
    %v2875 = vand.u32 %v2114, 4294901760
    %v2876 = vsub.f32 %v2114, %v2875
    %v2877 = vand.u32 %v2876, 4294901760
    %v2878 = vsub.f32 %v2876, %v2877
    %v2879 = vand.u32 %v2878, 4294901760
    %2880 = vmatpush.msra.mxu0 %v2879
    %v2881 = vand.u32 %v2083, 4294901760
    %2882 = vmatmul.f32.gmra.mxu0 %v2881
    %v2883 = vpop.f32.mrf.mxu0
    %v2884 = vadd.f32 %v2727, %v2883
    %v2885 = vand.u32 %v2085, 4294901760
    %2886 = vmatmul.f32.gmra.mxu0 %v2885
    %v2887 = vpop.f32.mrf.mxu0
    %v2888 = vadd.f32 %v2735, %v2887
    %v2889 = vand.u32 %v2087, 4294901760
    %2890 = vmatmul.f32.gmra.mxu0 %v2889
    %v2891 = vpop.f32.mrf.mxu0
    %v2892 = vadd.f32 %v2743, %v2891
    %v2893 = vand.u32 %v2089, 4294901760
    %2894 = vmatmul.f32.gmra.mxu0 %v2893
    %v2895 = vpop.f32.mrf.mxu0
    %v2896 = vadd.f32 %v2751, %v2895
    %v2897 = vand.u32 %v2091, 4294901760
    %2898 = vmatmul.f32.gmra.mxu0 %v2897
    %v2899 = vpop.f32.mrf.mxu0
    %v2900 = vadd.f32 %v2759, %v2899
    %v2901 = vand.u32 %v2093, 4294901760
    %2902 = vmatmul.f32.gmra.mxu0 %v2901
    %v2903 = vpop.f32.mrf.mxu0
    %v2904 = vadd.f32 %v2767, %v2903
    %v2905 = vand.u32 %v2095, 4294901760
    %2906 = vmatmul.f32.gmra.mxu0 %v2905
    %v2907 = vpop.f32.mrf.mxu0
    %v2908 = vadd.f32 %v2775, %v2907
    %v2909 = vand.u32 %v2097, 4294901760
    %2910 = vmatmul.f32.gmra.mxu0 %v2909
    %v2911 = vpop.f32.mrf.mxu0
    %v2912 = vadd.f32 %v2783, %v2911
    %2913 = vdwg.mxu0
    %v2914 = vand.u32 %v2129, 4294901760
    %v2915 = vsub.f32 %v2129, %v2914
    %2916 = vmatpush.msra.mxu0 %v2915
    %v2917 = vand.u32 %v2128, 4294901760
    %v2918 = vsub.f32 %v2128, %v2917
    %2919 = vmatpush.msra.mxu0 %v2918
    %v2920 = vand.u32 %v2127, 4294901760
    %v2921 = vsub.f32 %v2127, %v2920
    %2922 = vmatpush.msra.mxu0 %v2921
    %v2923 = vand.u32 %v2126, 4294901760
    %v2924 = vsub.f32 %v2126, %v2923
    %2925 = vmatpush.msra.mxu0 %v2924
    %v2926 = vand.u32 %v2125, 4294901760
    %v2927 = vsub.f32 %v2125, %v2926
    %2928 = vmatpush.msra.mxu0 %v2927
    %v2929 = vand.u32 %v2124, 4294901760
    %v2930 = vsub.f32 %v2124, %v2929
    %2931 = vmatpush.msra.mxu0 %v2930
    %v2932 = vand.u32 %v2123, 4294901760
    %v2933 = vsub.f32 %v2123, %v2932
    %2934 = vmatpush.msra.mxu0 %v2933
    %v2935 = vand.u32 %v2122, 4294901760
    %v2936 = vsub.f32 %v2122, %v2935
    %2937 = vmatpush.msra.mxu0 %v2936
    %v2938 = vand.u32 %v2121, 4294901760
    %v2939 = vsub.f32 %v2121, %v2938
    %2940 = vmatpush.msra.mxu0 %v2939
    %v2941 = vand.u32 %v2120, 4294901760
    %v2942 = vsub.f32 %v2120, %v2941
    %2943 = vmatpush.msra.mxu0 %v2942
    %v2944 = vand.u32 %v2119, 4294901760
    %v2945 = vsub.f32 %v2119, %v2944
    %2946 = vmatpush.msra.mxu0 %v2945
    %v2947 = vand.u32 %v2118, 4294901760
    %v2948 = vsub.f32 %v2118, %v2947
    %2949 = vmatpush.msra.mxu0 %v2948
    %v2950 = vand.u32 %v2117, 4294901760
    %v2951 = vsub.f32 %v2117, %v2950
    %2952 = vmatpush.msra.mxu0 %v2951
    %v2953 = vand.u32 %v2116, 4294901760
    %v2954 = vsub.f32 %v2116, %v2953
    %2955 = vmatpush.msra.mxu0 %v2954
    %v2956 = vand.u32 %v2115, 4294901760
    %v2957 = vsub.f32 %v2115, %v2956
    %2958 = vmatpush.msra.mxu0 %v2957
    %v2959 = vand.u32 %v2114, 4294901760
    %v2960 = vsub.f32 %v2114, %v2959
    %2961 = vmatpush.msra.mxu0 %v2960
    %v2962 = vand.u32 %v2083, 4294901760
    %v2963 = vsub.f32 %v2083, %v2962
    %2964 = vmatmul.f32.gmra.mxu0 %v2963
    %v2965 = vpop.f32.mrf.mxu0
    %v2966 = vadd.f32 %v2884, %v2965
    %v2967 = vand.u32 %v2085, 4294901760
    %v2968 = vsub.f32 %v2085, %v2967
    %2969 = vmatmul.f32.gmra.mxu0 %v2968
    %v2970 = vpop.f32.mrf.mxu0
    %v2971 = vadd.f32 %v2888, %v2970
    %v2972 = vand.u32 %v2087, 4294901760
    %v2973 = vsub.f32 %v2087, %v2972
    %2974 = vmatmul.f32.gmra.mxu0 %v2973
    %v2975 = vpop.f32.mrf.mxu0
    %v2976 = vadd.f32 %v2892, %v2975
    %v2977 = vand.u32 %v2089, 4294901760
    %v2978 = vsub.f32 %v2089, %v2977
    %2979 = vmatmul.f32.gmra.mxu0 %v2978
    %v2980 = vpop.f32.mrf.mxu0
    %v2981 = vadd.f32 %v2896, %v2980
    %v2982 = vand.u32 %v2091, 4294901760
    %v2983 = vsub.f32 %v2091, %v2982
    %2984 = vmatmul.f32.gmra.mxu0 %v2983
    %v2985 = vpop.f32.mrf.mxu0
    %v2986 = vadd.f32 %v2900, %v2985
    %v2987 = vand.u32 %v2093, 4294901760
    %v2988 = vsub.f32 %v2093, %v2987
    %2989 = vmatmul.f32.gmra.mxu0 %v2988
    %v2990 = vpop.f32.mrf.mxu0
    %v2991 = vadd.f32 %v2904, %v2990
    %v2992 = vand.u32 %v2095, 4294901760
    %v2993 = vsub.f32 %v2095, %v2992
    %2994 = vmatmul.f32.gmra.mxu0 %v2993
    %v2995 = vpop.f32.mrf.mxu0
    %v2996 = vadd.f32 %v2908, %v2995
    %v2997 = vand.u32 %v2097, 4294901760
    %v2998 = vsub.f32 %v2097, %v2997
    %2999 = vmatmul.f32.gmra.mxu0 %v2998
    %v3000 = vpop.f32.mrf.mxu0
    %v3001 = vadd.f32 %v2912, %v3000
    %3002 = vdwg.mxu0
    %v3003 = vand.u32 %v2129, 4294901760
    %3004 = vmatpush.msra.mxu0 %v3003
    %v3005 = vand.u32 %v2128, 4294901760
    %3006 = vmatpush.msra.mxu0 %v3005
    %v3007 = vand.u32 %v2127, 4294901760
    %3008 = vmatpush.msra.mxu0 %v3007
    %v3009 = vand.u32 %v2126, 4294901760
    %3010 = vmatpush.msra.mxu0 %v3009
    %v3011 = vand.u32 %v2125, 4294901760
    %3012 = vmatpush.msra.mxu0 %v3011
    %v3013 = vand.u32 %v2124, 4294901760
    %3014 = vmatpush.msra.mxu0 %v3013
    %v3015 = vand.u32 %v2123, 4294901760
    %3016 = vmatpush.msra.mxu0 %v3015
    %v3017 = vand.u32 %v2122, 4294901760
    %3018 = vmatpush.msra.mxu0 %v3017
    %v3019 = vand.u32 %v2121, 4294901760
    %3020 = vmatpush.msra.mxu0 %v3019
    %v3021 = vand.u32 %v2120, 4294901760
    %3022 = vmatpush.msra.mxu0 %v3021
    %v3023 = vand.u32 %v2119, 4294901760
    %3024 = vmatpush.msra.mxu0 %v3023
    %v3025 = vand.u32 %v2118, 4294901760
    %3026 = vmatpush.msra.mxu0 %v3025
    %v3027 = vand.u32 %v2117, 4294901760
    %3028 = vmatpush.msra.mxu0 %v3027
    %v3029 = vand.u32 %v2116, 4294901760
    %3030 = vmatpush.msra.mxu0 %v3029
    %v3031 = vand.u32 %v2115, 4294901760
    %3032 = vmatpush.msra.mxu0 %v3031
    %v3033 = vand.u32 %v2114, 4294901760
    %3034 = vmatpush.msra.mxu0 %v3033
    %v3035 = vand.u32 %v2083, 4294901760
    %v3036 = vsub.f32 %v2083, %v3035
    %v3037 = vand.u32 %v3036, 4294901760
    %3038 = vmatmul.f32.gmra.mxu0 %v3037
    %v3039 = vpop.f32.mrf.mxu0
    %v3040 = vadd.f32 %v2966, %v3039
    %v3041 = vand.u32 %v2085, 4294901760
    %v3042 = vsub.f32 %v2085, %v3041
    %v3043 = vand.u32 %v3042, 4294901760
    %3044 = vmatmul.f32.gmra.mxu0 %v3043
    %v3045 = vpop.f32.mrf.mxu0
    %v3046 = vadd.f32 %v2971, %v3045
    %v3047 = vand.u32 %v2087, 4294901760
    %v3048 = vsub.f32 %v2087, %v3047
    %v3049 = vand.u32 %v3048, 4294901760
    %3050 = vmatmul.f32.gmra.mxu0 %v3049
    %v3051 = vpop.f32.mrf.mxu0
    %v3052 = vadd.f32 %v2976, %v3051
    %v3053 = vand.u32 %v2089, 4294901760
    %v3054 = vsub.f32 %v2089, %v3053
    %v3055 = vand.u32 %v3054, 4294901760
    %3056 = vmatmul.f32.gmra.mxu0 %v3055
    %v3057 = vpop.f32.mrf.mxu0
    %v3058 = vadd.f32 %v2981, %v3057
    %v3059 = vand.u32 %v2091, 4294901760
    %v3060 = vsub.f32 %v2091, %v3059
    %v3061 = vand.u32 %v3060, 4294901760
    %3062 = vmatmul.f32.gmra.mxu0 %v3061
    %v3063 = vpop.f32.mrf.mxu0
    %v3064 = vadd.f32 %v2986, %v3063
    %v3065 = vand.u32 %v2093, 4294901760
    %v3066 = vsub.f32 %v2093, %v3065
    %v3067 = vand.u32 %v3066, 4294901760
    %3068 = vmatmul.f32.gmra.mxu0 %v3067
    %v3069 = vpop.f32.mrf.mxu0
    %v3070 = vadd.f32 %v2991, %v3069
    %v3071 = vand.u32 %v2095, 4294901760
    %v3072 = vsub.f32 %v2095, %v3071
    %v3073 = vand.u32 %v3072, 4294901760
    %3074 = vmatmul.f32.gmra.mxu0 %v3073
    %v3075 = vpop.f32.mrf.mxu0
    %v3076 = vadd.f32 %v2996, %v3075
    %v3077 = vand.u32 %v2097, 4294901760
    %v3078 = vsub.f32 %v2097, %v3077
    %v3079 = vand.u32 %v3078, 4294901760
    %3080 = vmatmul.f32.gmra.mxu0 %v3079
    %v3081 = vpop.f32.mrf.mxu0
    %v3082 = vadd.f32 %v3001, %v3081
    %3083 = vdwg.mxu0
    %v3084 = vand.u32 %v2129, 4294901760
    %v3085 = vsub.f32 %v2129, %v3084
    %v3086 = vand.u32 %v3085, 4294901760
    %3087 = vmatpush.msra.mxu0 %v3086
    %v3088 = vand.u32 %v2128, 4294901760
    %v3089 = vsub.f32 %v2128, %v3088
    %v3090 = vand.u32 %v3089, 4294901760
    %3091 = vmatpush.msra.mxu0 %v3090
    %v3092 = vand.u32 %v2127, 4294901760
    %v3093 = vsub.f32 %v2127, %v3092
    %v3094 = vand.u32 %v3093, 4294901760
    %3095 = vmatpush.msra.mxu0 %v3094
    %v3096 = vand.u32 %v2126, 4294901760
    %v3097 = vsub.f32 %v2126, %v3096
    %v3098 = vand.u32 %v3097, 4294901760
    %3099 = vmatpush.msra.mxu0 %v3098
    %v3100 = vand.u32 %v2125, 4294901760
    %v3101 = vsub.f32 %v2125, %v3100
    %v3102 = vand.u32 %v3101, 4294901760
    %3103 = vmatpush.msra.mxu0 %v3102
    %v3104 = vand.u32 %v2124, 4294901760
    %v3105 = vsub.f32 %v2124, %v3104
    %v3106 = vand.u32 %v3105, 4294901760
    %3107 = vmatpush.msra.mxu0 %v3106
    %v3108 = vand.u32 %v2123, 4294901760
    %v3109 = vsub.f32 %v2123, %v3108
    %v3110 = vand.u32 %v3109, 4294901760
    %3111 = vmatpush.msra.mxu0 %v3110
    %v3112 = vand.u32 %v2122, 4294901760
    %v3113 = vsub.f32 %v2122, %v3112
    %v3114 = vand.u32 %v3113, 4294901760
    %3115 = vmatpush.msra.mxu0 %v3114
    %v3116 = vand.u32 %v2121, 4294901760
    %v3117 = vsub.f32 %v2121, %v3116
    %v3118 = vand.u32 %v3117, 4294901760
    %3119 = vmatpush.msra.mxu0 %v3118
    %v3120 = vand.u32 %v2120, 4294901760
    %v3121 = vsub.f32 %v2120, %v3120
    %v3122 = vand.u32 %v3121, 4294901760
    %3123 = vmatpush.msra.mxu0 %v3122
    %v3124 = vand.u32 %v2119, 4294901760
    %v3125 = vsub.f32 %v2119, %v3124
    %v3126 = vand.u32 %v3125, 4294901760
    %3127 = vmatpush.msra.mxu0 %v3126
    %v3128 = vand.u32 %v2118, 4294901760
    %v3129 = vsub.f32 %v2118, %v3128
    %v3130 = vand.u32 %v3129, 4294901760
    %3131 = vmatpush.msra.mxu0 %v3130
    %v3132 = vand.u32 %v2117, 4294901760
    %v3133 = vsub.f32 %v2117, %v3132
    %v3134 = vand.u32 %v3133, 4294901760
    %3135 = vmatpush.msra.mxu0 %v3134
    %v3136 = vand.u32 %v2116, 4294901760
    %v3137 = vsub.f32 %v2116, %v3136
    %v3138 = vand.u32 %v3137, 4294901760
    %3139 = vmatpush.msra.mxu0 %v3138
    %v3140 = vand.u32 %v2115, 4294901760
    %v3141 = vsub.f32 %v2115, %v3140
    %v3142 = vand.u32 %v3141, 4294901760
    %3143 = vmatpush.msra.mxu0 %v3142
    %v3144 = vand.u32 %v2114, 4294901760
    %v3145 = vsub.f32 %v2114, %v3144
    %v3146 = vand.u32 %v3145, 4294901760
    %3147 = vmatpush.msra.mxu0 %v3146
    %v3148 = vand.u32 %v2083, 4294901760
    %3149 = vmatmul.f32.gmra.mxu0 %v3148
    %v3150 = vpop.f32.mrf.mxu0
    %v3151 = vadd.f32 %v3040, %v3150
    %v3152 = vand.u32 %v2085, 4294901760
    %3153 = vmatmul.f32.gmra.mxu0 %v3152
    %v3154 = vpop.f32.mrf.mxu0
    %v3155 = vadd.f32 %v3046, %v3154
    %v3156 = vand.u32 %v2087, 4294901760
    %3157 = vmatmul.f32.gmra.mxu0 %v3156
    %v3158 = vpop.f32.mrf.mxu0
    %v3159 = vadd.f32 %v3052, %v3158
    %v3160 = vand.u32 %v2089, 4294901760
    %3161 = vmatmul.f32.gmra.mxu0 %v3160
    %v3162 = vpop.f32.mrf.mxu0
    %v3163 = vadd.f32 %v3058, %v3162
    %v3164 = vand.u32 %v2091, 4294901760
    %3165 = vmatmul.f32.gmra.mxu0 %v3164
    %v3166 = vpop.f32.mrf.mxu0
    %v3167 = vadd.f32 %v3064, %v3166
    %v3168 = vand.u32 %v2093, 4294901760
    %3169 = vmatmul.f32.gmra.mxu0 %v3168
    %v3170 = vpop.f32.mrf.mxu0
    %v3171 = vadd.f32 %v3070, %v3170
    %v3172 = vand.u32 %v2095, 4294901760
    %3173 = vmatmul.f32.gmra.mxu0 %v3172
    %v3174 = vpop.f32.mrf.mxu0
    %v3175 = vadd.f32 %v3076, %v3174
    %v3176 = vand.u32 %v2097, 4294901760
    %3177 = vmatmul.f32.gmra.mxu0 %v3176
    %v3178 = vpop.f32.mrf.mxu0
    %v3179 = vadd.f32 %v3082, %v3178
    %3180 = vdwg.mxu0
    %v3181 = vand.u32 %v2129, 4294901760
    %3182 = vmatpush.msra.mxu0 %v3181
    %v3183 = vand.u32 %v2128, 4294901760
    %3184 = vmatpush.msra.mxu0 %v3183
    %v3185 = vand.u32 %v2127, 4294901760
    %3186 = vmatpush.msra.mxu0 %v3185
    %v3187 = vand.u32 %v2126, 4294901760
    %3188 = vmatpush.msra.mxu0 %v3187
    %v3189 = vand.u32 %v2125, 4294901760
    %3190 = vmatpush.msra.mxu0 %v3189
    %v3191 = vand.u32 %v2124, 4294901760
    %3192 = vmatpush.msra.mxu0 %v3191
    %v3193 = vand.u32 %v2123, 4294901760
    %3194 = vmatpush.msra.mxu0 %v3193
    %v3195 = vand.u32 %v2122, 4294901760
    %3196 = vmatpush.msra.mxu0 %v3195
    %v3197 = vand.u32 %v2121, 4294901760
    %3198 = vmatpush.msra.mxu0 %v3197
    %v3199 = vand.u32 %v2120, 4294901760
    %3200 = vmatpush.msra.mxu0 %v3199
    %v3201 = vand.u32 %v2119, 4294901760
    %3202 = vmatpush.msra.mxu0 %v3201
    %v3203 = vand.u32 %v2118, 4294901760
    %3204 = vmatpush.msra.mxu0 %v3203
    %v3205 = vand.u32 %v2117, 4294901760
    %3206 = vmatpush.msra.mxu0 %v3205
    %v3207 = vand.u32 %v2116, 4294901760
    %3208 = vmatpush.msra.mxu0 %v3207
    %v3209 = vand.u32 %v2115, 4294901760
    %3210 = vmatpush.msra.mxu0 %v3209
    %v3211 = vand.u32 %v2114, 4294901760
    %3212 = vmatpush.msra.mxu0 %v3211
    %v3213 = vand.u32 %v2083, 4294901760
    %3214 = vmatmul.f32.gmra.mxu0 %v3213
    %v3215 = vpop.f32.mrf.mxu0
    %v3216 = vadd.f32 %v3151, %v3215
    %v3217 = vand.u32 %v2085, 4294901760
    %3218 = vmatmul.f32.gmra.mxu0 %v3217
    %v3219 = vpop.f32.mrf.mxu0
    %v3220 = vadd.f32 %v3155, %v3219
    %v3221 = vand.u32 %v2087, 4294901760
    %3222 = vmatmul.f32.gmra.mxu0 %v3221
    %v3223 = vpop.f32.mrf.mxu0
    %v3224 = vadd.f32 %v3159, %v3223
    %v3225 = vand.u32 %v2089, 4294901760
    %3226 = vmatmul.f32.gmra.mxu0 %v3225
    %v3227 = vpop.f32.mrf.mxu0
    %v3228 = vadd.f32 %v3163, %v3227
    %v3229 = vand.u32 %v2091, 4294901760
    %3230 = vmatmul.f32.gmra.mxu0 %v3229
    %v3231 = vpop.f32.mrf.mxu0
    %v3232 = vadd.f32 %v3167, %v3231
    %v3233 = vand.u32 %v2093, 4294901760
    %3234 = vmatmul.f32.gmra.mxu0 %v3233
    %v3235 = vpop.f32.mrf.mxu0
    %v3236 = vadd.f32 %v3171, %v3235
    %v3237 = vand.u32 %v2095, 4294901760
    %3238 = vmatmul.f32.gmra.mxu0 %v3237
    %v3239 = vpop.f32.mrf.mxu0
    %v3240 = vadd.f32 %v3175, %v3239
    %v3241 = vand.u32 %v2097, 4294901760
    %3242 = vmatmul.f32.gmra.mxu0 %v3241
    %v3243 = vpop.f32.mrf.mxu0
    %v3244 = vadd.f32 %v3179, %v3243
    %3245 = vdwg.mxu0
    %3246 = vst [vmem:[#allocation10] sm:$0xff] %v3216
    %3247 = vst [vmem:[#allocation10 + $0x8] sm:$0xff] %v3220
    %3248 = vst [vmem:[#allocation10 + $0x10] sm:$0xff] %v3224
    %3249 = vst [vmem:[#allocation10 + $0x18] sm:$0xff] %v3228
    %3250 = vst [vmem:[#allocation10 + $0x20] sm:$0xff] %v3232
    %3251 = vst [vmem:[#allocation10 + $0x28] sm:$0xff] %v3236
    %3252 = vst [vmem:[#allocation10 + $0x30] sm:$0xff] %v3240
    %3253 = vst [vmem:[#allocation10 + $0x38] sm:$0xff] %v3244
    %vm3254 = vcmask 31744
    %3255 = vst.msk [vmem:[%s6] sm:$0xff] %vm3254, %v2035
    %3256 = vst.msk [vmem:[%s6 + $0x8] sm:$0xff] %vm3254, %v2037
    %3257 = vst.msk [vmem:[%s6 + $0x10] sm:$0xff] %vm3254, %v2039
    %3258 = vst.msk [vmem:[%s6 + $0x18] sm:$0xff] %vm3254, %v2041
    %3259 = vst.msk [vmem:[%s6 + $0x20] sm:$0xff] %vm3254, %v2043
    %3260 = vst.msk [vmem:[%s6 + $0x28] sm:$0xff] %vm3254, %v2045
    %3261 = vst.msk [vmem:[%s6 + $0x30] sm:$0xff] %vm3254, %v2047
    %3262 = vst.msk [vmem:[%s6 + $0x38] sm:$0xff] %vm3254, %v2049
    %v3263 = vsub.f32 %v3216, %v86
    %v3264 = vsub.f32 %v3220, %v87
    %v3265 = vsub.f32 %v3224, %v88
    %v3266 = vsub.f32 %v3228, %v89
    %v3267 = vsub.f32 %v3232, %v90
    %v3268 = vsub.f32 %v3236, %v91
    %v3269 = vsub.f32 %v3240, %v92
    %v3270 = vsub.f32 %v3244, %v93
    %v3271 = vmul.f32 %v3263, %v3263
    %v3272 = vmul.f32 %v3264, %v3264
    %v3273 = vmul.f32 %v3265, %v3265
    %v3274 = vmul.f32 %v3266, %v3266
    %v3275 = vmul.f32 %v3267, %v3267
    %v3276 = vmul.f32 %v3268, %v3268
    %v3277 = vmul.f32 %v3269, %v3269
    %v3278 = vmul.f32 %v3270, %v3270
    %v3279 = vadd.f32 %v3271, %v3272
    %v3280 = vadd.f32 %v3279, %v3273
    %v3281 = vadd.f32 %v3280, %v3274
    %v3282 = vadd.f32 %v3281, %v3275
    %v3283 = vadd.f32 %v3282, %v3276
    %v3284 = vadd.f32 %v3283, %v3277
    %v3285 = vadd.f32 %v3284, %v3278
    %3286 = vst [vmem:[#allocation11] sm:$0xff] %v3285
    // Predicated region
    $region38: #{tpu_custom_call.1} parent=1 // pred_check
      _
    $region39: #{tpu_custom_call.1} parent=1 // pred_check_branch
      %3288 = sbr.rel (0) target = $region41
    $region40: #{tpu_custom_call.1} parent=1 // pred_region
      %3290 = vsyncadd [#allocation4], 0
      %s3291 = sshll.u32 [#allocation10], 4
      %s3292 = int_to_ptr.vmem [resolvable:$true] %s3291
      %s3293 = sshll.u32 %s5, 4
      %s3294 = int_to_ptr.hbm [resolvable:$true] %s3293
      %3299 = dma.vmem_to_hbm [thread:$0]  %s3292, 1024, %s3294, [#allocation4], 128, 128, 8
    $region41: #{tpu_custom_call.1} parent=1 // pred_fallthru
      _
    // Predicated region
    $region42: #{tpu_custom_call.1} parent=1 // pred_check
      _
    $region43: #{tpu_custom_call.1} parent=1 // pred_check_branch
      %3301 = sbr.rel (0) target = $region45
    $region44: #{tpu_custom_call.1} parent=1 // pred_region
      _
    $region45: #{tpu_custom_call.1} parent=1 // pred_fallthru
      _
    // Predicated region
    $region46: #{tpu_custom_call.1} parent=1 // pred_check
      _
    $region47: #{tpu_custom_call.1} parent=1 // pred_check_branch
      %3303 = sbr.rel (0) target = $region49
    $region48: #{tpu_custom_call.1} parent=1 // pred_region
      %3305 = vsyncadd [#allocation12], 0
      %s3307 = sshll.u32 [#allocation11], 4
      %s3308 = int_to_ptr.vmem [resolvable:$true] %s3307
      %s3309 = sshll.u32 %s7, 4
      %s3310 = int_to_ptr.hbm [resolvable:$true] %s3309
      %3312 = dma.vmem_to_hbm [thread:$0]  %s3308, 128, %s3310, [#allocation12]
    $region49: #{tpu_custom_call.1} parent=1 // pred_fallthru
      _
    // Predicated region
    $region50: #{tpu_custom_call.1} parent=1 // pred_check
      _
    $region51: #{tpu_custom_call.1} parent=1 // pred_check_branch
      %3314 = sbr.rel (0) target = $region53
    $region52: #{tpu_custom_call.1} parent=1 // pred_region
      %3316 = dma.done [#allocation4], 1024
    $region53: #{tpu_custom_call.1} parent=1 // pred_fallthru
      _
    // Predicated region
    $region54: #{tpu_custom_call.1} parent=1 // pred_check
      _
    $region55: #{tpu_custom_call.1} parent=1 // pred_check_branch
      %3318 = sbr.rel (0) target = $region57
    $region56: #{tpu_custom_call.1} parent=1 // pred_region
      _
    $region57: #{tpu_custom_call.1} parent=1 // pred_fallthru
      _
    // Predicated region
    $region58: #{tpu_custom_call.1} parent=1 // pred_check
      _
    $region59: #{tpu_custom_call.1} parent=1 // pred_check_branch
      %3320 = sbr.rel (0) target = $region61
    $region60: #{tpu_custom_call.1} parent=1 // pred_region
      %3322 = dma.done [#allocation12], 128
    $region61: #{tpu_custom_call.1} parent=1 // pred_fallthru
      _
    %3323 = vsyncpa [#allocation3], 1
    %3324 = vsyncpa [#allocation6], 1
    %3325 = vsyncpa [#allocation9], 1
    %3326 = vsyncpa [#allocation4], 1
    %3327 = vsyncpa [#allocation12], 1

</llo_original>
